<compile_context>
chip_gen: v7x
topology: tpu7x:2x2x1
jax: 0.10.0
libtpu: 0.0.40
codegen_flags: <defaults>
</compile_context>

<pallas_src>
import numpy as np
import jax
import jax.numpy as jnp
from jax.experimental import pallas as pl
from jax.experimental.pallas import tpu as pltpu

HIDDEN = 32
SCALES = (1, 2, 3, 6)
BN_EPS = 1e-5
LANE = 128


def _round_up(x, m):
    return ((x + m - 1) // m) * m


def _num_tensorcores():
    # v7x exposes 2 TensorCores per chip; v5e/v6e have 1. Splitting the grid only
    # pays off when there is a second core to take the other tile.
    try:
        kind = jax.devices()[0].device_kind.lower()
    except Exception:
        return 1
    return 2 if "v7" in kind else 1


# ----------------------------- Pallas kernel -------------------------------

def _bottleneck_kernel(x_ref, w_ref, sh_ref, o_ref):
    # One MXU matmul per M tile: (tm, Kp) bf16 x (Kp, Cop) bf16 -> f32 acc,
    # then fused (BN shift, scale already folded into W) + ReLU, stored as bf16.
    y = jnp.dot(x_ref[...], w_ref[...], preferred_element_type=jnp.float32)
    o_ref[...] = jnp.maximum(y + sh_ref[...], 0.0).astype(o_ref.dtype)


def bottleneck_conv3x3_bn_relu(cat_nhwc, w_hwio, scale, shift, m_tiles=None):
    """3x3 ConvModule (conv bias=False + folded BN + ReLU), stride 1, padding 1.

    im2col is built in the wrapper so the kernel sees fully (8,128)-aligned bf16
    operands and does one MXU matmul per M tile (batch flattened into M).
    """
    n, h, w, c = cat_nhwc.shape
    cout = w_hwio.shape[-1]
    hw = h * w
    m = n * hw                     # batch folded into the matmul M dimension
    k = 9 * c
    kp = _round_up(k, LANE)        # 1224 -> 1280 (lane-aligned contraction dim)
    cop = _round_up(cout, LANE)    # 32   -> 128  (lane-dense, unmasked stores)

    # im2col: channel-block order (kh*3 + kw), matching the reshaped HWIO weight.
    xp = jnp.pad(cat_nhwc, ((0, 0), (1, 1), (1, 1), (0, 0)))
    cols = [xp[:, kh:kh + h, kw:kw + w, :] for kh in range(3) for kw in range(3)]
    x_col = jnp.concatenate(cols, axis=-1).reshape(m, k)
    x_col = jnp.pad(x_col, ((0, 0), (0, kp - k))).astype(jnp.bfloat16)
    # TODO(synk): at production H/W, build im2col inside the kernel from a
    # halo-padded NHWC tile to kill the 9x HBM read amplification.

    # Weight: HWIO (3,3,C,Cout) -> (9*C, Cout), BN scale folded in, padded, bf16.
    w_mat = w_hwio.reshape(k, cout) * scale[None, :]
    w_mat = jnp.pad(w_mat, ((0, kp - k), (0, cop - cout))).astype(jnp.bfloat16)

    sh = jnp.pad(shift, (0, cop - cout)).reshape(1, cop).astype(jnp.float32)

    # M tiling: 1 step on single-TC chips, 2-way "parallel" split on v7x.
    if m_tiles is None:
        m_tiles = _num_tensorcores()
    while m_tiles > 1 and (m % m_tiles != 0 or (m // m_tiles) % 8 != 0):
        m_tiles -= 1
    tm = m // m_tiles

    out = pl.pallas_call(
        _bottleneck_kernel,
        out_shape=jax.ShapeDtypeStruct((m, cop), jnp.bfloat16),
        grid=(m_tiles,),
        in_specs=[
            pl.BlockSpec((tm, kp), lambda i: (i, 0)),
            pl.BlockSpec((kp, cop), lambda i: (0, 0)),
            pl.BlockSpec((1, cop), lambda i: (0, 0)),
        ],
        out_specs=pl.BlockSpec((tm, cop), lambda i: (i, 0)),
        compiler_params=pltpu.CompilerParams(
            dimension_semantics=("parallel",)),
        cost_estimate=pl.CostEstimate(
            flops=2 * m * kp * cop,
            transcendentals=0,
            bytes_accessed=m * kp * 2 + kp * cop * 2 + cop * 4 + m * cop * 2),
    )(x_col, w_mat, sh)

    return out.reshape(n, h, w, cop)[..., :cout]


# ------------------------------- JAX glue -----------------------------------

def _pool_matrix(out_size, in_size):
    # AdaptiveAvgPool2d bins (PyTorch floor/ceil edges) as a dense (out, in) matrix.
    a = np.zeros((out_size, in_size), np.float32)
    for o in range(out_size):
        lo = (o * in_size) // out_size
        hi = -((-(o + 1) * in_size) // out_size)
        a[o, lo:hi] = 1.0 / (hi - lo)
    return a


def _interp_matrix(out_size, in_size):
    # Bilinear, align_corners=True, as a dense (out, in) interpolation matrix.
    a = np.zeros((out_size, in_size), np.float32)
    if in_size == 1 or out_size == 1:
        a[:, 0] = 1.0
        return a
    step = (in_size - 1) / (out_size - 1)
    for i in range(out_size):
        src = i * step
        lo = min(int(np.floor(src)), in_size - 1)
        hi = min(lo + 1, in_size - 1)
        frac = src - lo
        a[i, lo] += 1.0 - frac
        a[i, hi] += frac
    return a


def fold_bn(gamma, beta, mean, var, eps=BN_EPS):
    scale = gamma / jnp.sqrt(var + eps)
    shift = beta - mean * scale
    return scale, shift


def init_params(key, in_channels, hidden=HIDDEN, scales=SCALES):
    params = {"stages": []}
    for _ in scales:
        key, kw_, kg, kb, km, kv = jax.random.split(key, 6)
        w = 0.05 * jax.random.normal(kw_, (in_channels, hidden), jnp.float32)
        gamma = 1.0 + 0.1 * jax.random.normal(kg, (hidden,), jnp.float32)
        beta = 0.05 * jax.random.normal(kb, (hidden,), jnp.float32)
        mean = 0.05 * jax.random.normal(km, (hidden,), jnp.float32)
        var = jax.random.uniform(kv, (hidden,), jnp.float32, 0.5, 1.5)
        scale, shift = fold_bn(gamma, beta, mean, var)
        params["stages"].append({"w": w, "scale": scale, "shift": shift})

    c_total = in_channels + len(scales) * hidden
    key, kw_, kg, kb, km, kv = jax.random.split(key, 6)
    w3 = 0.05 * jax.random.normal(kw_, (3, 3, c_total, hidden), jnp.float32)  # HWIO
    gamma = 1.0 + 0.1 * jax.random.normal(kg, (hidden,), jnp.float32)
    beta = 0.05 * jax.random.normal(kb, (hidden,), jnp.float32)
    mean = 0.05 * jax.random.normal(km, (hidden,), jnp.float32)
    var = jax.random.uniform(kv, (hidden,), jnp.float32, 0.5, 1.5)
    scale, shift = fold_bn(gamma, beta, mean, var)
    params["bottleneck"] = {"w": w3, "scale": scale, "shift": shift}
    return params


def _stage_outputs(features_nhwc, params, scales):
    n, h, w, cin = features_nhwc.shape
    ups = []
    for s, p in zip(scales, params["stages"]):
        ph = jnp.asarray(_pool_matrix(s, h))
        pw = jnp.asarray(_pool_matrix(s, w))
        pooled = jnp.einsum("ph,nhwc,qw->npqc", ph, features_nhwc, pw)
        y = jnp.einsum("npqc,cd->npqd", pooled, p["w"])
        y = jnp.maximum(y * p["scale"] + p["shift"], 0.0)          # 1x1 conv+BN+ReLU
        ah = jnp.asarray(_interp_matrix(h, s))
        aw = jnp.asarray(_interp_matrix(w, s))
        ups.append(jnp.einsum("hp,npqd,wq->nhwd", ah, y, aw))       # bilinear upsample
    # PyTorch: outputs = [features] + outputs[::-1]
    return jnp.concatenate([features_nhwc] + ups[::-1], axis=-1)


def ppm_forward(features_nhwc, params, scales=SCALES, hidden=HIDDEN):
    cat = _stage_outputs(features_nhwc, params, scales)
    bp = params["bottleneck"]
    return bottleneck_conv3x3_bn_relu(cat, bp["w"], bp["scale"], bp["shift"])


def ppm_reference(features_nhwc, params, scales=SCALES, hidden=HIDDEN):
    # Pure-JAX f32 reference for numerical validation of the Pallas kernel.
    cat = _stage_outputs(features_nhwc, params, scales)
    bp = params["bottleneck"]
    y = jax.lax.conv_general_dilated(
        cat, bp["w"], window_strides=(1, 1), padding="SAME",
        dimension_numbers=("NHWC", "HWIO", "NHWC"))
    return jnp.maximum(y * bp["scale"] + bp["shift"], 0.0)


if __name__ == "__main__":
    N, CIN, H, W = 2, 8, 16, 16
    key = jax.random.PRNGKey(0)
    key, kx = jax.random.split(key)
    x_nchw = jax.random.normal(kx, (N, CIN, H, W), jnp.float32)   # PyTorch layout
    x_nhwc = jnp.transpose(x_nchw, (0, 2, 3, 1))                  # kernel layout

    params = init_params(key, CIN)

    fwd = jax.jit(ppm_forward)
    out = jax.block_until_ready(fwd(x_nhwc, params))
    assert out.shape == (N, H, W, HIDDEN), out.shape

    ref = jax.block_until_ready(ppm_reference(x_nhwc, params))
    max_err = float(jnp.max(jnp.abs(out.astype(jnp.float32) - ref)))
    # bf16 MXU operands + bf16 output store, f32 accumulation.
    assert jnp.allclose(out.astype(jnp.float32), ref, rtol=5e-2, atol=5e-2), max_err

    print("KERNEL_OK")
</pallas_src>

<mosaic_0001>
module attributes {stable_mosaic.version = 11 : i64} {
  func.func @_bottleneck_kernel(%arg0: i32, %arg1: memref<512x1280xbf16, #tpu.memory_space<vmem>>, %arg2: memref<1280x128xbf16, #tpu.memory_space<vmem>>, %arg3: memref<1x128xf32, #tpu.memory_space<vmem>>, %arg4: memref<512x128xbf16, #tpu.memory_space<vmem>>) attributes {dimension_semantics = [#tpu.dimension_semantics<parallel>], iteration_bounds = array<i64: 1>, scalar_prefetch = 0 : i64, scratch_operands = 0 : i64, tpu.core_type = #tpu.core_type<tc>, window_params = [{transform_indices = @transform_0, window_bounds = array<i64: 512, 1280>}, {pipeline_mode = #tpu.pipeline_mode<synchronous>, transform_indices = @transform_1, window_bounds = array<i64: 1280, 128>}, {pipeline_mode = #tpu.pipeline_mode<synchronous>, transform_indices = @transform_2, window_bounds = array<i64: 1, 128>}, {transform_indices = @transform_3, window_bounds = array<i64: 512, 128>}]} {
    %c0 = arith.constant 0 : index
    %c0_0 = arith.constant 0 : index
    %0 = vector.load %arg1[%c0, %c0_0] : memref<512x1280xbf16, #tpu.memory_space<vmem>>, vector<512x1280xbf16>
    %c0_1 = arith.constant 0 : index
    %c0_2 = arith.constant 0 : index
    %1 = vector.load %arg2[%c0_1, %c0_2] : memref<1280x128xbf16, #tpu.memory_space<vmem>>, vector<1280x128xbf16>
    %cst = arith.constant dense<0.000000e+00> : vector<512x128xf32>
    %2 = tpu.matmul %0, %1, %cst {dimension_numbers = #tpu.dot_dimension_numbers<[1], [0], [0], [1], [0, 0, 1, 1], [], []>} : vector<512x1280xbf16>, vector<1280x128xbf16>, vector<512x128xf32> -> vector<512x128xf32>
    %c0_3 = arith.constant 0 : index
    %c0_4 = arith.constant 0 : index
    %3 = vector.load %arg3[%c0_3, %c0_4] : memref<1x128xf32, #tpu.memory_space<vmem>>, vector<1x128xf32>
    %4 = vector.broadcast %3 : vector<1x128xf32> to vector<512x128xf32>
    %5 = arith.addf %2, %4 : vector<512x128xf32>
    %cst_5 = arith.constant 0.000000e+00 : f32
    %6 = vector.broadcast %cst_5 : f32 to vector<512x128xf32>
    %7 = arith.maximumf %5, %6 : vector<512x128xf32>
    %8 = arith.truncf %7 : vector<512x128xf32> to vector<512x128xbf16>
    %c0_6 = arith.constant 0 : index
    %c0_7 = arith.constant 0 : index
    %9 = vector.load %arg4[%c0_6, %c0_7] : memref<512x128xbf16, #tpu.memory_space<vmem>>, vector<512x128xbf16>
    tpu.vector_store %arg4[%c0_6, %c0_7], %8 {strides = array<i32>} : memref<512x128xbf16, #tpu.memory_space<vmem>>, vector<512x128xbf16>,
    return
  }
  func.func @transform_0(%arg0: i32) -> (i32, i32) {
    %c0_i32 = arith.constant 0 : i32
    %c0_i32_0 = arith.constant 0 : i32
    return %arg0, %c0_i32 : i32, i32
  }
  func.func @transform_1(%arg0: i32) -> (i32, i32) {
    %c0_i32 = arith.constant 0 : i32
    %c0_i32_0 = arith.constant 0 : i32
    %c0_i32_1 = arith.constant 0 : i32
    return %c0_i32, %c0_i32_0 : i32, i32
  }
  func.func @transform_2(%arg0: i32) -> (i32, i32) {
    %c0_i32 = arith.constant 0 : i32
    %c0_i32_0 = arith.constant 0 : i32
    %c0_i32_1 = arith.constant 0 : i32
    return %c0_i32, %c0_i32_0 : i32, i32
  }
  func.func @transform_3(%arg0: i32) -> (i32, i32) {
    %c0_i32 = arith.constant 0 : i32
    %c0_i32_0 = arith.constant 0 : i32
    return %arg0, %c0_i32 : i32, i32
  }
}

</mosaic_0001>

<llo_original>
// kernel: ppm_forward.1
$region0: #{ppm_forward.1}
  #allocation0 [shape = 'u32[]', space=smem, size = 0x4, offset = 0x4, fixed_abs, tag = 'smem constant byte address 0x4 - core index']
  #allocation1 [shape = 'u32[144,128]{1,0:T(1,128)}', space=vmem, size = 0x12000, scoped, tag = 'internal scratch']
  %s0 = inlined_call_operand.vmem [shape: bf16[512,1280], index: 0, kind: input, shape index: {}]
  %s1 = inlined_call_operand.vmem [shape: bf16[1280,128], index: 1, kind: input, shape index: {}]
  %s2 = inlined_call_operand.vmem [shape: f32[1,128], index: 2, kind: input, shape index: {}]
  %s3 = inlined_call_operand.hbm [shape: bf16[512,128], index: 3, kind: output, shape index: {}]
  %s4 = sld [smem:[#allocation0]]
  $region22: #{ppm_forward.1} parent=0
    _
  %s6 = ssub.s32 1, %s4
  %s7 = scalar_select 0, %s6, %s4
  $region1: #{ppm_forward.1} parent=0
    #allocation2 [shape = 'u8[131072]{0}', space=vmem, size = 0x20000, scoped, tag = 'output window, operand 0, single buffered']
    #allocation3 [shape = 's32[1]{0}', space=sflag, size = 0x4, scoped, tag = 'scoped memory for ppm_forward.1']
    %8 = vsyncpa [#allocation3], 0
    // Predicated region
    $region2: #{ppm_forward.1} parent=1 // pred_check
      _
    $region3: #{ppm_forward.1} parent=1 // pred_check_branch
      %10 = sbr.rel (0) target = $region5
    $region4: #{ppm_forward.1} parent=1 // pred_region
      _
    $region5: #{ppm_forward.1} parent=1 // pred_fallthru
      _
    // Predicated region
    $region6: #{ppm_forward.1} parent=1 // pred_check
      _
    $region7: #{ppm_forward.1} parent=1 // pred_check_branch
      %12 = sbr.rel (0) target = $region9
    $region8: #{ppm_forward.1} parent=1 // pred_region
      _
    $region9: #{ppm_forward.1} parent=1 // pred_fallthru
      _
    // Predicated region
    $region10: #{ppm_forward.1} parent=1 // pred_check
      _
    $region11: #{ppm_forward.1} parent=1 // pred_check_branch
      %14 = sbr.rel (0) target = $region13
    $region12: #{ppm_forward.1} parent=1 // pred_region
      _
    $region13: #{ppm_forward.1} parent=1 // pred_fallthru
      _
    %v16 = vld [vmem:[%s0] sm:$0xff]
    %v17 = vld [vmem:[%s0 + $0x8] sm:$0xff]
    %v18 = vld [vmem:[%s0 + $0x10] sm:$0xff]
    %v19 = vld [vmem:[%s0 + $0x18] sm:$0xff]
    %v20 = vld [vmem:[%s0 + $0x20] sm:$0xff]
    %v21 = vld [vmem:[%s0 + $0x28] sm:$0xff]
    %v22 = vld [vmem:[%s0 + $0x30] sm:$0xff]
    %v23 = vld [vmem:[%s0 + $0x38] sm:$0xff]
    %v24 = vld [vmem:[%s0 + $0x40] sm:$0xff]
    %v25 = vld [vmem:[%s0 + $0x48] sm:$0xff]
    %v26 = vld [vmem:[%s0 + $0x50] sm:$0xff]
    %v27 = vld [vmem:[%s0 + $0x58] sm:$0xff]
    %v28 = vld [vmem:[%s0 + $0x60] sm:$0xff]
    %v29 = vld [vmem:[%s0 + $0x68] sm:$0xff]
    %v30 = vld [vmem:[%s0 + $0x70] sm:$0xff]
    %v31 = vld [vmem:[%s0 + $0x78] sm:$0xff]
    %v32 = vld [vmem:[%s0 + $0x80] sm:$0xff]
    %v33 = vld [vmem:[%s0 + $0x88] sm:$0xff]
    %v34 = vld [vmem:[%s0 + $0x90] sm:$0xff]
    %v35 = vld [vmem:[%s0 + $0x98] sm:$0xff]
    %v36 = vld [vmem:[%s0 + $0xa0] sm:$0xff]
    %v37 = vld [vmem:[%s0 + $0xa8] sm:$0xff]
    %v38 = vld [vmem:[%s0 + $0xb0] sm:$0xff]
    %v39 = vld [vmem:[%s0 + $0xb8] sm:$0xff]
    %v40 = vld [vmem:[%s0 + $0xc0] sm:$0xff]
    %v41 = vld [vmem:[%s0 + $0xc8] sm:$0xff]
    %v42 = vld [vmem:[%s0 + $0xd0] sm:$0xff]
    %v43 = vld [vmem:[%s0 + $0xd8] sm:$0xff]
    %v44 = vld [vmem:[%s0 + $0xe0] sm:$0xff]
    %v45 = vld [vmem:[%s0 + $0xe8] sm:$0xff]
    %v46 = vld [vmem:[%s0 + $0xf0] sm:$0xff]
    %v47 = vld [vmem:[%s0 + $0xf8] sm:$0xff]
    %v48 = vld [vmem:[%s0 + $0x100] sm:$0xff]
    %v49 = vld [vmem:[%s0 + $0x108] sm:$0xff]
    %v50 = vld [vmem:[%s0 + $0x110] sm:$0xff]
    %v51 = vld [vmem:[%s0 + $0x118] sm:$0xff]
    %v52 = vld [vmem:[%s0 + $0x120] sm:$0xff]
    %v53 = vld [vmem:[%s0 + $0x128] sm:$0xff]
    %v54 = vld [vmem:[%s0 + $0x130] sm:$0xff]
    %v55 = vld [vmem:[%s0 + $0x138] sm:$0xff]
    %v56 = vld [vmem:[%s0 + $0x140] sm:$0xff]
    %v57 = vld [vmem:[%s0 + $0x148] sm:$0xff]
    %v58 = vld [vmem:[%s0 + $0x150] sm:$0xff]
    %v59 = vld [vmem:[%s0 + $0x158] sm:$0xff]
    %v60 = vld [vmem:[%s0 + $0x160] sm:$0xff]
    %v61 = vld [vmem:[%s0 + $0x168] sm:$0xff]
    %v62 = vld [vmem:[%s0 + $0x170] sm:$0xff]
    %v63 = vld [vmem:[%s0 + $0x178] sm:$0xff]
    %v64 = vld [vmem:[%s0 + $0x180] sm:$0xff]
    %v65 = vld [vmem:[%s0 + $0x188] sm:$0xff]
    %v66 = vld [vmem:[%s0 + $0x190] sm:$0xff]
    %v67 = vld [vmem:[%s0 + $0x198] sm:$0xff]
    %v68 = vld [vmem:[%s0 + $0x1a0] sm:$0xff]
    %v69 = vld [vmem:[%s0 + $0x1a8] sm:$0xff]
    %v70 = vld [vmem:[%s0 + $0x1b0] sm:$0xff]
    %v71 = vld [vmem:[%s0 + $0x1b8] sm:$0xff]
    %v72 = vld [vmem:[%s0 + $0x1c0] sm:$0xff]
    %v73 = vld [vmem:[%s0 + $0x1c8] sm:$0xff]
    %v74 = vld [vmem:[%s0 + $0x1d0] sm:$0xff]
    %v75 = vld [vmem:[%s0 + $0x1d8] sm:$0xff]
    %v76 = vld [vmem:[%s0 + $0x1e0] sm:$0xff]
    %v77 = vld [vmem:[%s0 + $0x1e8] sm:$0xff]
    %v78 = vld [vmem:[%s0 + $0x1f0] sm:$0xff]
    %v79 = vld [vmem:[%s0 + $0x1f8] sm:$0xff]
    %v80 = vld [vmem:[%s0 + $0x200] sm:$0xff]
    %v81 = vld [vmem:[%s0 + $0x208] sm:$0xff]
    %v82 = vld [vmem:[%s0 + $0x210] sm:$0xff]
    %v83 = vld [vmem:[%s0 + $0x218] sm:$0xff]
    %v84 = vld [vmem:[%s0 + $0x220] sm:$0xff]
    %v85 = vld [vmem:[%s0 + $0x228] sm:$0xff]
    %v86 = vld [vmem:[%s0 + $0x230] sm:$0xff]
    %v87 = vld [vmem:[%s0 + $0x238] sm:$0xff]
    %v88 = vld [vmem:[%s0 + $0x240] sm:$0xff]
    %v89 = vld [vmem:[%s0 + $0x248] sm:$0xff]
    %v90 = vld [vmem:[%s0 + $0x250] sm:$0xff]
    %v91 = vld [vmem:[%s0 + $0x258] sm:$0xff]
    %v92 = vld [vmem:[%s0 + $0x260] sm:$0xff]
    %v93 = vld [vmem:[%s0 + $0x268] sm:$0xff]
    %v94 = vld [vmem:[%s0 + $0x270] sm:$0xff]
    %v95 = vld [vmem:[%s0 + $0x278] sm:$0xff]
    %v96 = vld [vmem:[%s0 + $0x280] sm:$0xff]
    %v97 = vld [vmem:[%s0 + $0x288] sm:$0xff]
    %v98 = vld [vmem:[%s0 + $0x290] sm:$0xff]
    %v99 = vld [vmem:[%s0 + $0x298] sm:$0xff]
    %v100 = vld [vmem:[%s0 + $0x2a0] sm:$0xff]
    %v101 = vld [vmem:[%s0 + $0x2a8] sm:$0xff]
    %v102 = vld [vmem:[%s0 + $0x2b0] sm:$0xff]
    %v103 = vld [vmem:[%s0 + $0x2b8] sm:$0xff]
    %v104 = vld [vmem:[%s0 + $0x2c0] sm:$0xff]
    %v105 = vld [vmem:[%s0 + $0x2c8] sm:$0xff]
    %v106 = vld [vmem:[%s0 + $0x2d0] sm:$0xff]
    %v107 = vld [vmem:[%s0 + $0x2d8] sm:$0xff]
    %v108 = vld [vmem:[%s0 + $0x2e0] sm:$0xff]
    %v109 = vld [vmem:[%s0 + $0x2e8] sm:$0xff]
    %v110 = vld [vmem:[%s0 + $0x2f0] sm:$0xff]
    %v111 = vld [vmem:[%s0 + $0x2f8] sm:$0xff]
    %v112 = vld [vmem:[%s0 + $0x300] sm:$0xff]
    %v113 = vld [vmem:[%s0 + $0x308] sm:$0xff]
    %v114 = vld [vmem:[%s0 + $0x310] sm:$0xff]
    %v115 = vld [vmem:[%s0 + $0x318] sm:$0xff]
    %v116 = vld [vmem:[%s0 + $0x320] sm:$0xff]
    %v117 = vld [vmem:[%s0 + $0x328] sm:$0xff]
    %v118 = vld [vmem:[%s0 + $0x330] sm:$0xff]
    %v119 = vld [vmem:[%s0 + $0x338] sm:$0xff]
    %v120 = vld [vmem:[%s0 + $0x340] sm:$0xff]
    %v121 = vld [vmem:[%s0 + $0x348] sm:$0xff]
    %v122 = vld [vmem:[%s0 + $0x350] sm:$0xff]
    %v123 = vld [vmem:[%s0 + $0x358] sm:$0xff]
    %v124 = vld [vmem:[%s0 + $0x360] sm:$0xff]
    %v125 = vld [vmem:[%s0 + $0x368] sm:$0xff]
    %v126 = vld [vmem:[%s0 + $0x370] sm:$0xff]
    %v127 = vld [vmem:[%s0 + $0x378] sm:$0xff]
    %v128 = vld [vmem:[%s0 + $0x380] sm:$0xff]
    %v129 = vld [vmem:[%s0 + $0x388] sm:$0xff]
    %v130 = vld [vmem:[%s0 + $0x390] sm:$0xff]
    %v131 = vld [vmem:[%s0 + $0x398] sm:$0xff]
    %v132 = vld [vmem:[%s0 + $0x3a0] sm:$0xff]
    %v133 = vld [vmem:[%s0 + $0x3a8] sm:$0xff]
    %v134 = vld [vmem:[%s0 + $0x3b0] sm:$0xff]
    %v135 = vld [vmem:[%s0 + $0x3b8] sm:$0xff]
    %v136 = vld [vmem:[%s0 + $0x3c0] sm:$0xff]
    %v137 = vld [vmem:[%s0 + $0x3c8] sm:$0xff]
    %v138 = vld [vmem:[%s0 + $0x3d0] sm:$0xff]
    %v139 = vld [vmem:[%s0 + $0x3d8] sm:$0xff]
    %v140 = vld [vmem:[%s0 + $0x3e0] sm:$0xff]
    %v141 = vld [vmem:[%s0 + $0x3e8] sm:$0xff]
    %v142 = vld [vmem:[%s0 + $0x3f0] sm:$0xff]
    %v143 = vld [vmem:[%s0 + $0x3f8] sm:$0xff]
    %v144 = vld [vmem:[%s0 + $0x400] sm:$0xff]
    %v145 = vld [vmem:[%s0 + $0x408] sm:$0xff]
    %v146 = vld [vmem:[%s0 + $0x410] sm:$0xff]
    %v147 = vld [vmem:[%s0 + $0x418] sm:$0xff]
    %v148 = vld [vmem:[%s0 + $0x420] sm:$0xff]
    %v149 = vld [vmem:[%s0 + $0x428] sm:$0xff]
    %v150 = vld [vmem:[%s0 + $0x430] sm:$0xff]
    %v151 = vld [vmem:[%s0 + $0x438] sm:$0xff]
    %v152 = vld [vmem:[%s0 + $0x440] sm:$0xff]
    %v153 = vld [vmem:[%s0 + $0x448] sm:$0xff]
    %v154 = vld [vmem:[%s0 + $0x450] sm:$0xff]
    %v155 = vld [vmem:[%s0 + $0x458] sm:$0xff]
    %v156 = vld [vmem:[%s0 + $0x460] sm:$0xff]
    %v157 = vld [vmem:[%s0 + $0x468] sm:$0xff]
    %v158 = vld [vmem:[%s0 + $0x470] sm:$0xff]
    %v159 = vld [vmem:[%s0 + $0x478] sm:$0xff]
    %v160 = vld [vmem:[%s0 + $0x480] sm:$0xff]
    %v161 = vld [vmem:[%s0 + $0x488] sm:$0xff]
    %v162 = vld [vmem:[%s0 + $0x490] sm:$0xff]
    %v163 = vld [vmem:[%s0 + $0x498] sm:$0xff]
    %v164 = vld [vmem:[%s0 + $0x4a0] sm:$0xff]
    %v165 = vld [vmem:[%s0 + $0x4a8] sm:$0xff]
    %v166 = vld [vmem:[%s0 + $0x4b0] sm:$0xff]
    %v167 = vld [vmem:[%s0 + $0x4b8] sm:$0xff]
    %v168 = vld [vmem:[%s0 + $0x4c0] sm:$0xff]
    %v169 = vld [vmem:[%s0 + $0x4c8] sm:$0xff]
    %v170 = vld [vmem:[%s0 + $0x4d0] sm:$0xff]
    %v171 = vld [vmem:[%s0 + $0x4d8] sm:$0xff]
    %v172 = vld [vmem:[%s0 + $0x4e0] sm:$0xff]
    %v173 = vld [vmem:[%s0 + $0x4e8] sm:$0xff]
    %v174 = vld [vmem:[%s0 + $0x4f0] sm:$0xff]
    %v175 = vld [vmem:[%s0 + $0x4f8] sm:$0xff]
    %v176 = vld [vmem:[%s0 + $0x500] sm:$0xff]
    %v177 = vld [vmem:[%s0 + $0x508] sm:$0xff]
    %v178 = vld [vmem:[%s0 + $0x510] sm:$0xff]
    %v179 = vld [vmem:[%s0 + $0x518] sm:$0xff]
    %v180 = vld [vmem:[%s0 + $0x520] sm:$0xff]
    %v181 = vld [vmem:[%s0 + $0x528] sm:$0xff]
    %v182 = vld [vmem:[%s0 + $0x530] sm:$0xff]
    %v183 = vld [vmem:[%s0 + $0x538] sm:$0xff]
    %v184 = vld [vmem:[%s0 + $0x540] sm:$0xff]
    %v185 = vld [vmem:[%s0 + $0x548] sm:$0xff]
    %v186 = vld [vmem:[%s0 + $0x550] sm:$0xff]
    %v187 = vld [vmem:[%s0 + $0x558] sm:$0xff]
    %v188 = vld [vmem:[%s0 + $0x560] sm:$0xff]
    %v189 = vld [vmem:[%s0 + $0x568] sm:$0xff]
    %v190 = vld [vmem:[%s0 + $0x570] sm:$0xff]
    %v191 = vld [vmem:[%s0 + $0x578] sm:$0xff]
    %v192 = vld [vmem:[%s0 + $0x580] sm:$0xff]
    %v193 = vld [vmem:[%s0 + $0x588] sm:$0xff]
    %v194 = vld [vmem:[%s0 + $0x590] sm:$0xff]
    %v195 = vld [vmem:[%s0 + $0x598] sm:$0xff]
    %v196 = vld [vmem:[%s0 + $0x5a0] sm:$0xff]
    %v197 = vld [vmem:[%s0 + $0x5a8] sm:$0xff]
    %v198 = vld [vmem:[%s0 + $0x5b0] sm:$0xff]
    %v199 = vld [vmem:[%s0 + $0x5b8] sm:$0xff]
    %v200 = vld [vmem:[%s0 + $0x5c0] sm:$0xff]
    %v201 = vld [vmem:[%s0 + $0x5c8] sm:$0xff]
    %v202 = vld [vmem:[%s0 + $0x5d0] sm:$0xff]
    %v203 = vld [vmem:[%s0 + $0x5d8] sm:$0xff]
    %v204 = vld [vmem:[%s0 + $0x5e0] sm:$0xff]
    %v205 = vld [vmem:[%s0 + $0x5e8] sm:$0xff]
    %v206 = vld [vmem:[%s0 + $0x5f0] sm:$0xff]
    %v207 = vld [vmem:[%s0 + $0x5f8] sm:$0xff]
    %v208 = vld [vmem:[%s0 + $0x600] sm:$0xff]
    %v209 = vld [vmem:[%s0 + $0x608] sm:$0xff]
    %v210 = vld [vmem:[%s0 + $0x610] sm:$0xff]
    %v211 = vld [vmem:[%s0 + $0x618] sm:$0xff]
    %v212 = vld [vmem:[%s0 + $0x620] sm:$0xff]
    %v213 = vld [vmem:[%s0 + $0x628] sm:$0xff]
    %v214 = vld [vmem:[%s0 + $0x630] sm:$0xff]
    %v215 = vld [vmem:[%s0 + $0x638] sm:$0xff]
    %v216 = vld [vmem:[%s0 + $0x640] sm:$0xff]
    %v217 = vld [vmem:[%s0 + $0x648] sm:$0xff]
    %v218 = vld [vmem:[%s0 + $0x650] sm:$0xff]
    %v219 = vld [vmem:[%s0 + $0x658] sm:$0xff]
    %v220 = vld [vmem:[%s0 + $0x660] sm:$0xff]
    %v221 = vld [vmem:[%s0 + $0x668] sm:$0xff]
    %v222 = vld [vmem:[%s0 + $0x670] sm:$0xff]
    %v223 = vld [vmem:[%s0 + $0x678] sm:$0xff]
    %v224 = vld [vmem:[%s0 + $0x680] sm:$0xff]
    %v225 = vld [vmem:[%s0 + $0x688] sm:$0xff]
    %v226 = vld [vmem:[%s0 + $0x690] sm:$0xff]
    %v227 = vld [vmem:[%s0 + $0x698] sm:$0xff]
    %v228 = vld [vmem:[%s0 + $0x6a0] sm:$0xff]
    %v229 = vld [vmem:[%s0 + $0x6a8] sm:$0xff]
    %v230 = vld [vmem:[%s0 + $0x6b0] sm:$0xff]
    %v231 = vld [vmem:[%s0 + $0x6b8] sm:$0xff]
    %v232 = vld [vmem:[%s0 + $0x6c0] sm:$0xff]
    %v233 = vld [vmem:[%s0 + $0x6c8] sm:$0xff]
    %v234 = vld [vmem:[%s0 + $0x6d0] sm:$0xff]
    %v235 = vld [vmem:[%s0 + $0x6d8] sm:$0xff]
    %v236 = vld [vmem:[%s0 + $0x6e0] sm:$0xff]
    %v237 = vld [vmem:[%s0 + $0x6e8] sm:$0xff]
    %v238 = vld [vmem:[%s0 + $0x6f0] sm:$0xff]
    %v239 = vld [vmem:[%s0 + $0x6f8] sm:$0xff]
    %v240 = vld [vmem:[%s0 + $0x700] sm:$0xff]
    %v241 = vld [vmem:[%s0 + $0x708] sm:$0xff]
    %v242 = vld [vmem:[%s0 + $0x710] sm:$0xff]
    %v243 = vld [vmem:[%s0 + $0x718] sm:$0xff]
    %v244 = vld [vmem:[%s0 + $0x720] sm:$0xff]
    %v245 = vld [vmem:[%s0 + $0x728] sm:$0xff]
    %v246 = vld [vmem:[%s0 + $0x730] sm:$0xff]
    %v247 = vld [vmem:[%s0 + $0x738] sm:$0xff]
    %v248 = vld [vmem:[%s0 + $0x740] sm:$0xff]
    %v249 = vld [vmem:[%s0 + $0x748] sm:$0xff]
    %v250 = vld [vmem:[%s0 + $0x750] sm:$0xff]
    %v251 = vld [vmem:[%s0 + $0x758] sm:$0xff]
    %v252 = vld [vmem:[%s0 + $0x760] sm:$0xff]
    %v253 = vld [vmem:[%s0 + $0x768] sm:$0xff]
    %v254 = vld [vmem:[%s0 + $0x770] sm:$0xff]
    %v255 = vld [vmem:[%s0 + $0x778] sm:$0xff]
    %v256 = vld [vmem:[%s0 + $0x780] sm:$0xff]
    %v257 = vld [vmem:[%s0 + $0x788] sm:$0xff]
    %v258 = vld [vmem:[%s0 + $0x790] sm:$0xff]
    %v259 = vld [vmem:[%s0 + $0x798] sm:$0xff]
    %v260 = vld [vmem:[%s0 + $0x7a0] sm:$0xff]
    %v261 = vld [vmem:[%s0 + $0x7a8] sm:$0xff]
    %v262 = vld [vmem:[%s0 + $0x7b0] sm:$0xff]
    %v263 = vld [vmem:[%s0 + $0x7b8] sm:$0xff]
    %v264 = vld [vmem:[%s0 + $0x7c0] sm:$0xff]
    %v265 = vld [vmem:[%s0 + $0x7c8] sm:$0xff]
    %v266 = vld [vmem:[%s0 + $0x7d0] sm:$0xff]
    %v267 = vld [vmem:[%s0 + $0x7d8] sm:$0xff]
    %v268 = vld [vmem:[%s0 + $0x7e0] sm:$0xff]
    %v269 = vld [vmem:[%s0 + $0x7e8] sm:$0xff]
    %v270 = vld [vmem:[%s0 + $0x7f0] sm:$0xff]
    %v271 = vld [vmem:[%s0 + $0x7f8] sm:$0xff]
    %v272 = vld [vmem:[%s0 + $0x800] sm:$0xff]
    %v273 = vld [vmem:[%s0 + $0x808] sm:$0xff]
    %v274 = vld [vmem:[%s0 + $0x810] sm:$0xff]
    %v275 = vld [vmem:[%s0 + $0x818] sm:$0xff]
    %v276 = vld [vmem:[%s0 + $0x820] sm:$0xff]
    %v277 = vld [vmem:[%s0 + $0x828] sm:$0xff]
    %v278 = vld [vmem:[%s0 + $0x830] sm:$0xff]
    %v279 = vld [vmem:[%s0 + $0x838] sm:$0xff]
    %v280 = vld [vmem:[%s0 + $0x840] sm:$0xff]
    %v281 = vld [vmem:[%s0 + $0x848] sm:$0xff]
    %v282 = vld [vmem:[%s0 + $0x850] sm:$0xff]
    %v283 = vld [vmem:[%s0 + $0x858] sm:$0xff]
    %v284 = vld [vmem:[%s0 + $0x860] sm:$0xff]
    %v285 = vld [vmem:[%s0 + $0x868] sm:$0xff]
    %v286 = vld [vmem:[%s0 + $0x870] sm:$0xff]
    %v287 = vld [vmem:[%s0 + $0x878] sm:$0xff]
    %v288 = vld [vmem:[%s0 + $0x880] sm:$0xff]
    %v289 = vld [vmem:[%s0 + $0x888] sm:$0xff]
    %v290 = vld [vmem:[%s0 + $0x890] sm:$0xff]
    %v291 = vld [vmem:[%s0 + $0x898] sm:$0xff]
    %v292 = vld [vmem:[%s0 + $0x8a0] sm:$0xff]
    %v293 = vld [vmem:[%s0 + $0x8a8] sm:$0xff]
    %v294 = vld [vmem:[%s0 + $0x8b0] sm:$0xff]
    %v295 = vld [vmem:[%s0 + $0x8b8] sm:$0xff]
    %v296 = vld [vmem:[%s0 + $0x8c0] sm:$0xff]
    %v297 = vld [vmem:[%s0 + $0x8c8] sm:$0xff]
    %v298 = vld [vmem:[%s0 + $0x8d0] sm:$0xff]
    %v299 = vld [vmem:[%s0 + $0x8d8] sm:$0xff]
    %v300 = vld [vmem:[%s0 + $0x8e0] sm:$0xff]
    %v301 = vld [vmem:[%s0 + $0x8e8] sm:$0xff]
    %v302 = vld [vmem:[%s0 + $0x8f0] sm:$0xff]
    %v303 = vld [vmem:[%s0 + $0x8f8] sm:$0xff]
    %v304 = vld [vmem:[%s0 + $0x900] sm:$0xff]
    %v305 = vld [vmem:[%s0 + $0x908] sm:$0xff]
    %v306 = vld [vmem:[%s0 + $0x910] sm:$0xff]
    %v307 = vld [vmem:[%s0 + $0x918] sm:$0xff]
    %v308 = vld [vmem:[%s0 + $0x920] sm:$0xff]
    %v309 = vld [vmem:[%s0 + $0x928] sm:$0xff]
    %v310 = vld [vmem:[%s0 + $0x930] sm:$0xff]
    %v311 = vld [vmem:[%s0 + $0x938] sm:$0xff]
    %v312 = vld [vmem:[%s0 + $0x940] sm:$0xff]
    %v313 = vld [vmem:[%s0 + $0x948] sm:$0xff]
    %v314 = vld [vmem:[%s0 + $0x950] sm:$0xff]
    %v315 = vld [vmem:[%s0 + $0x958] sm:$0xff]
    %v316 = vld [vmem:[%s0 + $0x960] sm:$0xff]
    %v317 = vld [vmem:[%s0 + $0x968] sm:$0xff]
    %v318 = vld [vmem:[%s0 + $0x970] sm:$0xff]
    %v319 = vld [vmem:[%s0 + $0x978] sm:$0xff]
    %v320 = vld [vmem:[%s0 + $0x980] sm:$0xff]
    %v321 = vld [vmem:[%s0 + $0x988] sm:$0xff]
    %v322 = vld [vmem:[%s0 + $0x990] sm:$0xff]
    %v323 = vld [vmem:[%s0 + $0x998] sm:$0xff]
    %v324 = vld [vmem:[%s0 + $0x9a0] sm:$0xff]
    %v325 = vld [vmem:[%s0 + $0x9a8] sm:$0xff]
    %v326 = vld [vmem:[%s0 + $0x9b0] sm:$0xff]
    %v327 = vld [vmem:[%s0 + $0x9b8] sm:$0xff]
    %v328 = vld [vmem:[%s0 + $0x9c0] sm:$0xff]
    %v329 = vld [vmem:[%s0 + $0x9c8] sm:$0xff]
    %v330 = vld [vmem:[%s0 + $0x9d0] sm:$0xff]
    %v331 = vld [vmem:[%s0 + $0x9d8] sm:$0xff]
    %v332 = vld [vmem:[%s0 + $0x9e0] sm:$0xff]
    %v333 = vld [vmem:[%s0 + $0x9e8] sm:$0xff]
    %v334 = vld [vmem:[%s0 + $0x9f0] sm:$0xff]
    %v335 = vld [vmem:[%s0 + $0x9f8] sm:$0xff]
    %v336 = vld [vmem:[%s1] sm:$0xf]
    %v337 = vld [vmem:[%s1 + $0x4] sm:$0xf]
    %v338 = vld [vmem:[%s1 + $0x8] sm:$0xf]
    %v339 = vld [vmem:[%s1 + $0xc] sm:$0xf]
    %v340 = vld [vmem:[%s1 + $0x10] sm:$0xf]
    %v341 = vld [vmem:[%s1 + $0x14] sm:$0xf]
    %v342 = vld [vmem:[%s1 + $0x18] sm:$0xf]
    %v343 = vld [vmem:[%s1 + $0x1c] sm:$0xf]
    %v344 = vld [vmem:[%s1 + $0x20] sm:$0xf]
    %v345 = vld [vmem:[%s1 + $0x24] sm:$0xf]
    %v346 = vld [vmem:[%s1 + $0x28] sm:$0xf]
    %v347 = vld [vmem:[%s1 + $0x2c] sm:$0xf]
    %v348 = vld [vmem:[%s1 + $0x30] sm:$0xf]
    %v349 = vld [vmem:[%s1 + $0x34] sm:$0xf]
    %v350 = vld [vmem:[%s1 + $0x38] sm:$0xf]
    %v351 = vld [vmem:[%s1 + $0x3c] sm:$0xf]
    %v352 = vld [vmem:[%s1 + $0x40] sm:$0xf]
    %v353 = vld [vmem:[%s1 + $0x44] sm:$0xf]
    %v354 = vld [vmem:[%s1 + $0x48] sm:$0xf]
    %v355 = vld [vmem:[%s1 + $0x4c] sm:$0xf]
    %v356 = vld [vmem:[%s1 + $0x50] sm:$0xf]
    %v357 = vld [vmem:[%s1 + $0x54] sm:$0xf]
    %v358 = vld [vmem:[%s1 + $0x58] sm:$0xf]
    %v359 = vld [vmem:[%s1 + $0x5c] sm:$0xf]
    %v360 = vld [vmem:[%s1 + $0x60] sm:$0xf]
    %v361 = vld [vmem:[%s1 + $0x64] sm:$0xf]
    %v362 = vld [vmem:[%s1 + $0x68] sm:$0xf]
    %v363 = vld [vmem:[%s1 + $0x6c] sm:$0xf]
    %v364 = vld [vmem:[%s1 + $0x70] sm:$0xf]
    %v365 = vld [vmem:[%s1 + $0x74] sm:$0xf]
    %v366 = vld [vmem:[%s1 + $0x78] sm:$0xf]
    %v367 = vld [vmem:[%s1 + $0x7c] sm:$0xf]
    %v368 = vld [vmem:[%s1 + $0x80] sm:$0xf]
    %v369 = vld [vmem:[%s1 + $0x84] sm:$0xf]
    %v370 = vld [vmem:[%s1 + $0x88] sm:$0xf]
    %v371 = vld [vmem:[%s1 + $0x8c] sm:$0xf]
    %v372 = vld [vmem:[%s1 + $0x90] sm:$0xf]
    %v373 = vld [vmem:[%s1 + $0x94] sm:$0xf]
    %v374 = vld [vmem:[%s1 + $0x98] sm:$0xf]
    %v375 = vld [vmem:[%s1 + $0x9c] sm:$0xf]
    %v376 = vld [vmem:[%s1 + $0xa0] sm:$0xf]
    %v377 = vld [vmem:[%s1 + $0xa4] sm:$0xf]
    %v378 = vld [vmem:[%s1 + $0xa8] sm:$0xf]
    %v379 = vld [vmem:[%s1 + $0xac] sm:$0xf]
    %v380 = vld [vmem:[%s1 + $0xb0] sm:$0xf]
    %v381 = vld [vmem:[%s1 + $0xb4] sm:$0xf]
    %v382 = vld [vmem:[%s1 + $0xb8] sm:$0xf]
    %v383 = vld [vmem:[%s1 + $0xbc] sm:$0xf]
    %v384 = vld [vmem:[%s1 + $0xc0] sm:$0xf]
    %v385 = vld [vmem:[%s1 + $0xc4] sm:$0xf]
    %v386 = vld [vmem:[%s1 + $0xc8] sm:$0xf]
    %v387 = vld [vmem:[%s1 + $0xcc] sm:$0xf]
    %v388 = vld [vmem:[%s1 + $0xd0] sm:$0xf]
    %v389 = vld [vmem:[%s1 + $0xd4] sm:$0xf]
    %v390 = vld [vmem:[%s1 + $0xd8] sm:$0xf]
    %v391 = vld [vmem:[%s1 + $0xdc] sm:$0xf]
    %v392 = vld [vmem:[%s1 + $0xe0] sm:$0xf]
    %v393 = vld [vmem:[%s1 + $0xe4] sm:$0xf]
    %v394 = vld [vmem:[%s1 + $0xe8] sm:$0xf]
    %v395 = vld [vmem:[%s1 + $0xec] sm:$0xf]
    %v396 = vld [vmem:[%s1 + $0xf0] sm:$0xf]
    %v397 = vld [vmem:[%s1 + $0xf4] sm:$0xf]
    %v398 = vld [vmem:[%s1 + $0xf8] sm:$0xf]
    %v399 = vld [vmem:[%s1 + $0xfc] sm:$0xf]
    %v400 = vld [vmem:[%s1 + $0x100] sm:$0xf]
    %v401 = vld [vmem:[%s1 + $0x104] sm:$0xf]
    %v402 = vld [vmem:[%s1 + $0x108] sm:$0xf]
    %v403 = vld [vmem:[%s1 + $0x10c] sm:$0xf]
    %v404 = vld [vmem:[%s1 + $0x110] sm:$0xf]
    %v405 = vld [vmem:[%s1 + $0x114] sm:$0xf]
    %v406 = vld [vmem:[%s1 + $0x118] sm:$0xf]
    %v407 = vld [vmem:[%s1 + $0x11c] sm:$0xf]
    %v408 = vld [vmem:[%s1 + $0x120] sm:$0xf]
    %v409 = vld [vmem:[%s1 + $0x124] sm:$0xf]
    %v410 = vld [vmem:[%s1 + $0x128] sm:$0xf]
    %v411 = vld [vmem:[%s1 + $0x12c] sm:$0xf]
    %v412 = vld [vmem:[%s1 + $0x130] sm:$0xf]
    %v413 = vld [vmem:[%s1 + $0x134] sm:$0xf]
    %v414 = vld [vmem:[%s1 + $0x138] sm:$0xf]
    %v415 = vld [vmem:[%s1 + $0x13c] sm:$0xf]
    %v416 = vld [vmem:[%s1 + $0x140] sm:$0xf]
    %v417 = vld [vmem:[%s1 + $0x144] sm:$0xf]
    %v418 = vld [vmem:[%s1 + $0x148] sm:$0xf]
    %v419 = vld [vmem:[%s1 + $0x14c] sm:$0xf]
    %v420 = vld [vmem:[%s1 + $0x150] sm:$0xf]
    %v421 = vld [vmem:[%s1 + $0x154] sm:$0xf]
    %v422 = vld [vmem:[%s1 + $0x158] sm:$0xf]
    %v423 = vld [vmem:[%s1 + $0x15c] sm:$0xf]
    %v424 = vld [vmem:[%s1 + $0x160] sm:$0xf]
    %v425 = vld [vmem:[%s1 + $0x164] sm:$0xf]
    %v426 = vld [vmem:[%s1 + $0x168] sm:$0xf]
    %v427 = vld [vmem:[%s1 + $0x16c] sm:$0xf]
    %v428 = vld [vmem:[%s1 + $0x170] sm:$0xf]
    %v429 = vld [vmem:[%s1 + $0x174] sm:$0xf]
    %v430 = vld [vmem:[%s1 + $0x178] sm:$0xf]
    %v431 = vld [vmem:[%s1 + $0x17c] sm:$0xf]
    %v432 = vld [vmem:[%s1 + $0x180] sm:$0xf]
    %v433 = vld [vmem:[%s1 + $0x184] sm:$0xf]
    %v434 = vld [vmem:[%s1 + $0x188] sm:$0xf]
    %v435 = vld [vmem:[%s1 + $0x18c] sm:$0xf]
    %v436 = vld [vmem:[%s1 + $0x190] sm:$0xf]
    %v437 = vld [vmem:[%s1 + $0x194] sm:$0xf]
    %v438 = vld [vmem:[%s1 + $0x198] sm:$0xf]
    %v439 = vld [vmem:[%s1 + $0x19c] sm:$0xf]
    %v440 = vld [vmem:[%s1 + $0x1a0] sm:$0xf]
    %v441 = vld [vmem:[%s1 + $0x1a4] sm:$0xf]
    %v442 = vld [vmem:[%s1 + $0x1a8] sm:$0xf]
    %v443 = vld [vmem:[%s1 + $0x1ac] sm:$0xf]
    %v444 = vld [vmem:[%s1 + $0x1b0] sm:$0xf]
    %v445 = vld [vmem:[%s1 + $0x1b4] sm:$0xf]
    %v446 = vld [vmem:[%s1 + $0x1b8] sm:$0xf]
    %v447 = vld [vmem:[%s1 + $0x1bc] sm:$0xf]
    %v448 = vld [vmem:[%s1 + $0x1c0] sm:$0xf]
    %v449 = vld [vmem:[%s1 + $0x1c4] sm:$0xf]
    %v450 = vld [vmem:[%s1 + $0x1c8] sm:$0xf]
    %v451 = vld [vmem:[%s1 + $0x1cc] sm:$0xf]
    %v452 = vld [vmem:[%s1 + $0x1d0] sm:$0xf]
    %v453 = vld [vmem:[%s1 + $0x1d4] sm:$0xf]
    %v454 = vld [vmem:[%s1 + $0x1d8] sm:$0xf]
    %v455 = vld [vmem:[%s1 + $0x1dc] sm:$0xf]
    %v456 = vld [vmem:[%s1 + $0x1e0] sm:$0xf]
    %v457 = vld [vmem:[%s1 + $0x1e4] sm:$0xf]
    %v458 = vld [vmem:[%s1 + $0x1e8] sm:$0xf]
    %v459 = vld [vmem:[%s1 + $0x1ec] sm:$0xf]
    %v460 = vld [vmem:[%s1 + $0x1f0] sm:$0xf]
    %v461 = vld [vmem:[%s1 + $0x1f4] sm:$0xf]
    %v462 = vld [vmem:[%s1 + $0x1f8] sm:$0xf]
    %v463 = vld [vmem:[%s1 + $0x1fc] sm:$0xf]
    %v464 = vld [vmem:[%s1 + $0x200] sm:$0xf]
    %v465 = vld [vmem:[%s1 + $0x204] sm:$0xf]
    %v466 = vld [vmem:[%s1 + $0x208] sm:$0xf]
    %v467 = vld [vmem:[%s1 + $0x20c] sm:$0xf]
    %v468 = vld [vmem:[%s1 + $0x210] sm:$0xf]
    %v469 = vld [vmem:[%s1 + $0x214] sm:$0xf]
    %v470 = vld [vmem:[%s1 + $0x218] sm:$0xf]
    %v471 = vld [vmem:[%s1 + $0x21c] sm:$0xf]
    %v472 = vld [vmem:[%s1 + $0x220] sm:$0xf]
    %v473 = vld [vmem:[%s1 + $0x224] sm:$0xf]
    %v474 = vld [vmem:[%s1 + $0x228] sm:$0xf]
    %v475 = vld [vmem:[%s1 + $0x22c] sm:$0xf]
    %v476 = vld [vmem:[%s1 + $0x230] sm:$0xf]
    %v477 = vld [vmem:[%s1 + $0x234] sm:$0xf]
    %v478 = vld [vmem:[%s1 + $0x238] sm:$0xf]
    %v479 = vld [vmem:[%s1 + $0x23c] sm:$0xf]
    %v480 = vld [vmem:[%s1 + $0x240] sm:$0xf]
    %v481 = vld [vmem:[%s1 + $0x244] sm:$0xf]
    %v482 = vld [vmem:[%s1 + $0x248] sm:$0xf]
    %v483 = vld [vmem:[%s1 + $0x24c] sm:$0xf]
    %v484 = vld [vmem:[%s1 + $0x250] sm:$0xf]
    %v485 = vld [vmem:[%s1 + $0x254] sm:$0xf]
    %v486 = vld [vmem:[%s1 + $0x258] sm:$0xf]
    %v487 = vld [vmem:[%s1 + $0x25c] sm:$0xf]
    %v488 = vld [vmem:[%s1 + $0x260] sm:$0xf]
    %v489 = vld [vmem:[%s1 + $0x264] sm:$0xf]
    %v490 = vld [vmem:[%s1 + $0x268] sm:$0xf]
    %v491 = vld [vmem:[%s1 + $0x26c] sm:$0xf]
    %v492 = vld [vmem:[%s1 + $0x270] sm:$0xf]
    %v493 = vld [vmem:[%s1 + $0x274] sm:$0xf]
    %v494 = vld [vmem:[%s1 + $0x278] sm:$0xf]
    %v495 = vld [vmem:[%s1 + $0x27c] sm:$0xf]
    %v496 = vld [vmem:[%s2] sm:$0x1]
    %v498 = vlaneseq
    %v499 = vshrl.u32 %v498, 7
    %v500 = vsub.s32 0, %v499
    %v501 = vrot.slane %v496, %v500
    %v823 = vunpack.c.l.b16 %v16
    %v824 = vunpack.c.h.b16 %v16
    %v825 = vunpack.c.l.b16 %v17
    %v826 = vunpack.c.h.b16 %v17
    %v827 = vunpack.c.l.b16 %v18
    %v828 = vunpack.c.h.b16 %v18
    %v829 = vunpack.c.l.b16 %v19
    %v830 = vunpack.c.h.b16 %v19
    %v831 = vunpack.c.l.b16 %v20
    %v832 = vunpack.c.h.b16 %v20
    %v833 = vunpack.c.l.b16 %v21
    %v834 = vunpack.c.h.b16 %v21
    %v835 = vunpack.c.l.b16 %v22
    %v836 = vunpack.c.h.b16 %v22
    %v837 = vunpack.c.l.b16 %v23
    %v838 = vunpack.c.h.b16 %v23
    %v839 = vunpack.c.l.b16 %v24
    %v840 = vunpack.c.h.b16 %v24
    %v841 = vunpack.c.l.b16 %v25
    %v842 = vunpack.c.h.b16 %v25
    %v843 = vunpack.c.l.b16 %v26
    %v844 = vunpack.c.h.b16 %v26
    %v845 = vunpack.c.l.b16 %v27
    %v846 = vunpack.c.h.b16 %v27
    %v847 = vunpack.c.l.b16 %v28
    %v848 = vunpack.c.h.b16 %v28
    %v849 = vunpack.c.l.b16 %v29
    %v850 = vunpack.c.h.b16 %v29
    %v851 = vunpack.c.l.b16 %v30
    %v852 = vunpack.c.h.b16 %v30
    %v853 = vunpack.c.l.b16 %v31
    %v854 = vunpack.c.h.b16 %v31
    %v855 = vunpack.c.l.b16 %v32
    %v856 = vunpack.c.h.b16 %v32
    %v857 = vunpack.c.l.b16 %v33
    %v858 = vunpack.c.h.b16 %v33
    %v859 = vunpack.c.l.b16 %v34
    %v860 = vunpack.c.h.b16 %v34
    %v861 = vunpack.c.l.b16 %v35
    %v862 = vunpack.c.h.b16 %v35
    %v863 = vunpack.c.l.b16 %v36
    %v864 = vunpack.c.h.b16 %v36
    %v865 = vunpack.c.l.b16 %v37
    %v866 = vunpack.c.h.b16 %v37
    %v867 = vunpack.c.l.b16 %v38
    %v868 = vunpack.c.h.b16 %v38
    %v869 = vunpack.c.l.b16 %v39
    %v870 = vunpack.c.h.b16 %v39
    %v871 = vunpack.c.l.b16 %v40
    %v872 = vunpack.c.h.b16 %v40
    %v873 = vunpack.c.l.b16 %v41
    %v874 = vunpack.c.h.b16 %v41
    %v875 = vunpack.c.l.b16 %v42
    %v876 = vunpack.c.h.b16 %v42
    %v877 = vunpack.c.l.b16 %v43
    %v878 = vunpack.c.h.b16 %v43
    %v879 = vunpack.c.l.b16 %v44
    %v880 = vunpack.c.h.b16 %v44
    %v881 = vunpack.c.l.b16 %v45
    %v882 = vunpack.c.h.b16 %v45
    %v883 = vunpack.c.l.b16 %v46
    %v884 = vunpack.c.h.b16 %v46
    %v885 = vunpack.c.l.b16 %v47
    %v886 = vunpack.c.h.b16 %v47
    %v887 = vunpack.c.l.b16 %v48
    %v888 = vunpack.c.h.b16 %v48
    %v889 = vunpack.c.l.b16 %v49
    %v890 = vunpack.c.h.b16 %v49
    %v891 = vunpack.c.l.b16 %v50
    %v892 = vunpack.c.h.b16 %v50
    %v893 = vunpack.c.l.b16 %v51
    %v894 = vunpack.c.h.b16 %v51
    %v895 = vunpack.c.l.b16 %v52
    %v896 = vunpack.c.h.b16 %v52
    %v897 = vunpack.c.l.b16 %v53
    %v898 = vunpack.c.h.b16 %v53
    %v899 = vunpack.c.l.b16 %v54
    %v900 = vunpack.c.h.b16 %v54
    %v901 = vunpack.c.l.b16 %v55
    %v902 = vunpack.c.h.b16 %v55
    %v903 = vunpack.c.l.b16 %v56
    %v904 = vunpack.c.h.b16 %v56
    %v905 = vunpack.c.l.b16 %v57
    %v906 = vunpack.c.h.b16 %v57
    %v907 = vunpack.c.l.b16 %v58
    %v908 = vunpack.c.h.b16 %v58
    %v909 = vunpack.c.l.b16 %v59
    %v910 = vunpack.c.h.b16 %v59
    %v911 = vunpack.c.l.b16 %v60
    %v912 = vunpack.c.h.b16 %v60
    %v913 = vunpack.c.l.b16 %v61
    %v914 = vunpack.c.h.b16 %v61
    %v915 = vunpack.c.l.b16 %v62
    %v916 = vunpack.c.h.b16 %v62
    %v917 = vunpack.c.l.b16 %v63
    %v918 = vunpack.c.h.b16 %v63
    %v919 = vunpack.c.l.b16 %v64
    %v920 = vunpack.c.h.b16 %v64
    %v921 = vunpack.c.l.b16 %v65
    %v922 = vunpack.c.h.b16 %v65
    %v923 = vunpack.c.l.b16 %v66
    %v924 = vunpack.c.h.b16 %v66
    %v925 = vunpack.c.l.b16 %v67
    %v926 = vunpack.c.h.b16 %v67
    %v927 = vunpack.c.l.b16 %v68
    %v928 = vunpack.c.h.b16 %v68
    %v929 = vunpack.c.l.b16 %v69
    %v930 = vunpack.c.h.b16 %v69
    %v931 = vunpack.c.l.b16 %v70
    %v932 = vunpack.c.h.b16 %v70
    %v933 = vunpack.c.l.b16 %v71
    %v934 = vunpack.c.h.b16 %v71
    %v935 = vunpack.c.l.b16 %v72
    %v936 = vunpack.c.h.b16 %v72
    %v937 = vunpack.c.l.b16 %v73
    %v938 = vunpack.c.h.b16 %v73
    %v939 = vunpack.c.l.b16 %v74
    %v940 = vunpack.c.h.b16 %v74
    %v941 = vunpack.c.l.b16 %v75
    %v942 = vunpack.c.h.b16 %v75
    %v943 = vunpack.c.l.b16 %v76
    %v944 = vunpack.c.h.b16 %v76
    %v945 = vunpack.c.l.b16 %v77
    %v946 = vunpack.c.h.b16 %v77
    %v947 = vunpack.c.l.b16 %v78
    %v948 = vunpack.c.h.b16 %v78
    %v949 = vunpack.c.l.b16 %v79
    %v950 = vunpack.c.h.b16 %v79
    %v951 = vunpack.c.l.b16 %v80
    %v952 = vunpack.c.h.b16 %v80
    %v953 = vunpack.c.l.b16 %v81
    %v954 = vunpack.c.h.b16 %v81
    %v955 = vunpack.c.l.b16 %v82
    %v956 = vunpack.c.h.b16 %v82
    %v957 = vunpack.c.l.b16 %v83
    %v958 = vunpack.c.h.b16 %v83
    %v959 = vunpack.c.l.b16 %v84
    %v960 = vunpack.c.h.b16 %v84
    %v961 = vunpack.c.l.b16 %v85
    %v962 = vunpack.c.h.b16 %v85
    %v963 = vunpack.c.l.b16 %v86
    %v964 = vunpack.c.h.b16 %v86
    %v965 = vunpack.c.l.b16 %v87
    %v966 = vunpack.c.h.b16 %v87
    %v967 = vunpack.c.l.b16 %v88
    %v968 = vunpack.c.h.b16 %v88
    %v969 = vunpack.c.l.b16 %v89
    %v970 = vunpack.c.h.b16 %v89
    %v971 = vunpack.c.l.b16 %v90
    %v972 = vunpack.c.h.b16 %v90
    %v973 = vunpack.c.l.b16 %v91
    %v974 = vunpack.c.h.b16 %v91
    %v975 = vunpack.c.l.b16 %v92
    %v976 = vunpack.c.h.b16 %v92
    %v977 = vunpack.c.l.b16 %v93
    %v978 = vunpack.c.h.b16 %v93
    %v979 = vunpack.c.l.b16 %v94
    %v980 = vunpack.c.h.b16 %v94
    %v981 = vunpack.c.l.b16 %v95
    %v982 = vunpack.c.h.b16 %v95
    %v983 = vunpack.c.l.b16 %v96
    %v984 = vunpack.c.h.b16 %v96
    %v985 = vunpack.c.l.b16 %v97
    %v986 = vunpack.c.h.b16 %v97
    %v987 = vunpack.c.l.b16 %v98
    %v988 = vunpack.c.h.b16 %v98
    %v989 = vunpack.c.l.b16 %v99
    %v990 = vunpack.c.h.b16 %v99
    %v991 = vunpack.c.l.b16 %v100
    %v992 = vunpack.c.h.b16 %v100
    %v993 = vunpack.c.l.b16 %v101
    %v994 = vunpack.c.h.b16 %v101
    %v995 = vunpack.c.l.b16 %v102
    %v996 = vunpack.c.h.b16 %v102
    %v997 = vunpack.c.l.b16 %v103
    %v998 = vunpack.c.h.b16 %v103
    %v999 = vunpack.c.l.b16 %v104
    %v1000 = vunpack.c.h.b16 %v104
    %v1001 = vunpack.c.l.b16 %v105
    %v1002 = vunpack.c.h.b16 %v105
    %v1003 = vunpack.c.l.b16 %v106
    %v1004 = vunpack.c.h.b16 %v106
    %v1005 = vunpack.c.l.b16 %v107
    %v1006 = vunpack.c.h.b16 %v107
    %v1007 = vunpack.c.l.b16 %v108
    %v1008 = vunpack.c.h.b16 %v108
    %v1009 = vunpack.c.l.b16 %v109
    %v1010 = vunpack.c.h.b16 %v109
    %v1011 = vunpack.c.l.b16 %v110
    %v1012 = vunpack.c.h.b16 %v110
    %v1013 = vunpack.c.l.b16 %v111
    %v1014 = vunpack.c.h.b16 %v111
    %v1015 = vunpack.c.l.b16 %v112
    %v1016 = vunpack.c.h.b16 %v112
    %v1017 = vunpack.c.l.b16 %v113
    %v1018 = vunpack.c.h.b16 %v113
    %v1019 = vunpack.c.l.b16 %v114
    %v1020 = vunpack.c.h.b16 %v114
    %v1021 = vunpack.c.l.b16 %v115
    %v1022 = vunpack.c.h.b16 %v115
    %v1023 = vunpack.c.l.b16 %v116
    %v1024 = vunpack.c.h.b16 %v116
    %v1025 = vunpack.c.l.b16 %v117
    %v1026 = vunpack.c.h.b16 %v117
    %v1027 = vunpack.c.l.b16 %v118
    %v1028 = vunpack.c.h.b16 %v118
    %v1029 = vunpack.c.l.b16 %v119
    %v1030 = vunpack.c.h.b16 %v119
    %v1031 = vunpack.c.l.b16 %v120
    %v1032 = vunpack.c.h.b16 %v120
    %v1033 = vunpack.c.l.b16 %v121
    %v1034 = vunpack.c.h.b16 %v121
    %v1035 = vunpack.c.l.b16 %v122
    %v1036 = vunpack.c.h.b16 %v122
    %v1037 = vunpack.c.l.b16 %v123
    %v1038 = vunpack.c.h.b16 %v123
    %v1039 = vunpack.c.l.b16 %v124
    %v1040 = vunpack.c.h.b16 %v124
    %v1041 = vunpack.c.l.b16 %v125
    %v1042 = vunpack.c.h.b16 %v125
    %v1043 = vunpack.c.l.b16 %v126
    %v1044 = vunpack.c.h.b16 %v126
    %v1045 = vunpack.c.l.b16 %v127
    %v1046 = vunpack.c.h.b16 %v127
    %v1047 = vunpack.c.l.b16 %v128
    %v1048 = vunpack.c.h.b16 %v128
    %v1049 = vunpack.c.l.b16 %v129
    %v1050 = vunpack.c.h.b16 %v129
    %v1051 = vunpack.c.l.b16 %v130
    %v1052 = vunpack.c.h.b16 %v130
    %v1053 = vunpack.c.l.b16 %v131
    %v1054 = vunpack.c.h.b16 %v131
    %v1055 = vunpack.c.l.b16 %v132
    %v1056 = vunpack.c.h.b16 %v132
    %v1057 = vunpack.c.l.b16 %v133
    %v1058 = vunpack.c.h.b16 %v133
    %v1059 = vunpack.c.l.b16 %v134
    %v1060 = vunpack.c.h.b16 %v134
    %v1061 = vunpack.c.l.b16 %v135
    %v1062 = vunpack.c.h.b16 %v135
    %v1063 = vunpack.c.l.b16 %v136
    %v1064 = vunpack.c.h.b16 %v136
    %v1065 = vunpack.c.l.b16 %v137
    %v1066 = vunpack.c.h.b16 %v137
    %v1067 = vunpack.c.l.b16 %v138
    %v1068 = vunpack.c.h.b16 %v138
    %v1069 = vunpack.c.l.b16 %v139
    %v1070 = vunpack.c.h.b16 %v139
    %v1071 = vunpack.c.l.b16 %v140
    %v1072 = vunpack.c.h.b16 %v140
    %v1073 = vunpack.c.l.b16 %v141
    %v1074 = vunpack.c.h.b16 %v141
    %v1075 = vunpack.c.l.b16 %v142
    %v1076 = vunpack.c.h.b16 %v142
    %v1077 = vunpack.c.l.b16 %v143
    %v1078 = vunpack.c.h.b16 %v143
    %v1079 = vunpack.c.l.b16 %v144
    %v1080 = vunpack.c.h.b16 %v144
    %v1081 = vunpack.c.l.b16 %v145
    %v1082 = vunpack.c.h.b16 %v145
    %v1083 = vunpack.c.l.b16 %v146
    %v1084 = vunpack.c.h.b16 %v146
    %v1085 = vunpack.c.l.b16 %v147
    %v1086 = vunpack.c.h.b16 %v147
    %v1087 = vunpack.c.l.b16 %v148
    %v1088 = vunpack.c.h.b16 %v148
    %v1089 = vunpack.c.l.b16 %v149
    %v1090 = vunpack.c.h.b16 %v149
    %v1091 = vunpack.c.l.b16 %v150
    %v1092 = vunpack.c.h.b16 %v150
    %v1093 = vunpack.c.l.b16 %v151
    %v1094 = vunpack.c.h.b16 %v151
    %v1095 = vunpack.c.l.b16 %v152
    %v1096 = vunpack.c.h.b16 %v152
    %v1097 = vunpack.c.l.b16 %v153
    %v1098 = vunpack.c.h.b16 %v153
    %v1099 = vunpack.c.l.b16 %v154
    %v1100 = vunpack.c.h.b16 %v154
    %v1101 = vunpack.c.l.b16 %v155
    %v1102 = vunpack.c.h.b16 %v155
    %v1103 = vunpack.c.l.b16 %v156
    %v1104 = vunpack.c.h.b16 %v156
    %v1105 = vunpack.c.l.b16 %v157
    %v1106 = vunpack.c.h.b16 %v157
    %v1107 = vunpack.c.l.b16 %v158
    %v1108 = vunpack.c.h.b16 %v158
    %v1109 = vunpack.c.l.b16 %v159
    %v1110 = vunpack.c.h.b16 %v159
    %v1111 = vunpack.c.l.b16 %v160
    %v1112 = vunpack.c.h.b16 %v160
    %v1113 = vunpack.c.l.b16 %v161
    %v1114 = vunpack.c.h.b16 %v161
    %v1115 = vunpack.c.l.b16 %v162
    %v1116 = vunpack.c.h.b16 %v162
    %v1117 = vunpack.c.l.b16 %v163
    %v1118 = vunpack.c.h.b16 %v163
    %v1119 = vunpack.c.l.b16 %v164
    %v1120 = vunpack.c.h.b16 %v164
    %v1121 = vunpack.c.l.b16 %v165
    %v1122 = vunpack.c.h.b16 %v165
    %v1123 = vunpack.c.l.b16 %v166
    %v1124 = vunpack.c.h.b16 %v166
    %v1125 = vunpack.c.l.b16 %v167
    %v1126 = vunpack.c.h.b16 %v167
    %v1127 = vunpack.c.l.b16 %v168
    %v1128 = vunpack.c.h.b16 %v168
    %v1129 = vunpack.c.l.b16 %v169
    %v1130 = vunpack.c.h.b16 %v169
    %v1131 = vunpack.c.l.b16 %v170
    %v1132 = vunpack.c.h.b16 %v170
    %v1133 = vunpack.c.l.b16 %v171
    %v1134 = vunpack.c.h.b16 %v171
    %v1135 = vunpack.c.l.b16 %v172
    %v1136 = vunpack.c.h.b16 %v172
    %v1137 = vunpack.c.l.b16 %v173
    %v1138 = vunpack.c.h.b16 %v173
    %v1139 = vunpack.c.l.b16 %v174
    %v1140 = vunpack.c.h.b16 %v174
    %v1141 = vunpack.c.l.b16 %v175
    %v1142 = vunpack.c.h.b16 %v175
    %v1143 = vunpack.c.l.b16 %v176
    %v1144 = vunpack.c.h.b16 %v176
    %v1145 = vunpack.c.l.b16 %v177
    %v1146 = vunpack.c.h.b16 %v177
    %v1147 = vunpack.c.l.b16 %v178
    %v1148 = vunpack.c.h.b16 %v178
    %v1149 = vunpack.c.l.b16 %v179
    %v1150 = vunpack.c.h.b16 %v179
    %v1151 = vunpack.c.l.b16 %v180
    %v1152 = vunpack.c.h.b16 %v180
    %v1153 = vunpack.c.l.b16 %v181
    %v1154 = vunpack.c.h.b16 %v181
    %v1155 = vunpack.c.l.b16 %v182
    %v1156 = vunpack.c.h.b16 %v182
    %v1157 = vunpack.c.l.b16 %v183
    %v1158 = vunpack.c.h.b16 %v183
    %v1159 = vunpack.c.l.b16 %v184
    %v1160 = vunpack.c.h.b16 %v184
    %v1161 = vunpack.c.l.b16 %v185
    %v1162 = vunpack.c.h.b16 %v185
    %v1163 = vunpack.c.l.b16 %v186
    %v1164 = vunpack.c.h.b16 %v186
    %v1165 = vunpack.c.l.b16 %v187
    %v1166 = vunpack.c.h.b16 %v187
    %v1167 = vunpack.c.l.b16 %v188
    %v1168 = vunpack.c.h.b16 %v188
    %v1169 = vunpack.c.l.b16 %v189
    %v1170 = vunpack.c.h.b16 %v189
    %v1171 = vunpack.c.l.b16 %v190
    %v1172 = vunpack.c.h.b16 %v190
    %v1173 = vunpack.c.l.b16 %v191
    %v1174 = vunpack.c.h.b16 %v191
    %v1175 = vunpack.c.l.b16 %v192
    %v1176 = vunpack.c.h.b16 %v192
    %v1177 = vunpack.c.l.b16 %v193
    %v1178 = vunpack.c.h.b16 %v193
    %v1179 = vunpack.c.l.b16 %v194
    %v1180 = vunpack.c.h.b16 %v194
    %v1181 = vunpack.c.l.b16 %v195
    %v1182 = vunpack.c.h.b16 %v195
    %v1183 = vunpack.c.l.b16 %v196
    %v1184 = vunpack.c.h.b16 %v196
    %v1185 = vunpack.c.l.b16 %v197
    %v1186 = vunpack.c.h.b16 %v197
    %v1187 = vunpack.c.l.b16 %v198
    %v1188 = vunpack.c.h.b16 %v198
    %v1189 = vunpack.c.l.b16 %v199
    %v1190 = vunpack.c.h.b16 %v199
    %v1191 = vunpack.c.l.b16 %v200
    %v1192 = vunpack.c.h.b16 %v200
    %v1193 = vunpack.c.l.b16 %v201
    %v1194 = vunpack.c.h.b16 %v201
    %v1195 = vunpack.c.l.b16 %v202
    %v1196 = vunpack.c.h.b16 %v202
    %v1197 = vunpack.c.l.b16 %v203
    %v1198 = vunpack.c.h.b16 %v203
    %v1199 = vunpack.c.l.b16 %v204
    %v1200 = vunpack.c.h.b16 %v204
    %v1201 = vunpack.c.l.b16 %v205
    %v1202 = vunpack.c.h.b16 %v205
    %v1203 = vunpack.c.l.b16 %v206
    %v1204 = vunpack.c.h.b16 %v206
    %v1205 = vunpack.c.l.b16 %v207
    %v1206 = vunpack.c.h.b16 %v207
    %v1207 = vunpack.c.l.b16 %v208
    %v1208 = vunpack.c.h.b16 %v208
    %v1209 = vunpack.c.l.b16 %v209
    %v1210 = vunpack.c.h.b16 %v209
    %v1211 = vunpack.c.l.b16 %v210
    %v1212 = vunpack.c.h.b16 %v210
    %v1213 = vunpack.c.l.b16 %v211
    %v1214 = vunpack.c.h.b16 %v211
    %v1215 = vunpack.c.l.b16 %v212
    %v1216 = vunpack.c.h.b16 %v212
    %v1217 = vunpack.c.l.b16 %v213
    %v1218 = vunpack.c.h.b16 %v213
    %v1219 = vunpack.c.l.b16 %v214
    %v1220 = vunpack.c.h.b16 %v214
    %v1221 = vunpack.c.l.b16 %v215
    %v1222 = vunpack.c.h.b16 %v215
    %v1223 = vunpack.c.l.b16 %v216
    %v1224 = vunpack.c.h.b16 %v216
    %v1225 = vunpack.c.l.b16 %v217
    %v1226 = vunpack.c.h.b16 %v217
    %v1227 = vunpack.c.l.b16 %v218
    %v1228 = vunpack.c.h.b16 %v218
    %v1229 = vunpack.c.l.b16 %v219
    %v1230 = vunpack.c.h.b16 %v219
    %v1231 = vunpack.c.l.b16 %v220
    %v1232 = vunpack.c.h.b16 %v220
    %v1233 = vunpack.c.l.b16 %v221
    %v1234 = vunpack.c.h.b16 %v221
    %v1235 = vunpack.c.l.b16 %v222
    %v1236 = vunpack.c.h.b16 %v222
    %v1237 = vunpack.c.l.b16 %v223
    %v1238 = vunpack.c.h.b16 %v223
    %v1239 = vunpack.c.l.b16 %v224
    %v1240 = vunpack.c.h.b16 %v224
    %v1241 = vunpack.c.l.b16 %v225
    %v1242 = vunpack.c.h.b16 %v225
    %v1243 = vunpack.c.l.b16 %v226
    %v1244 = vunpack.c.h.b16 %v226
    %v1245 = vunpack.c.l.b16 %v227
    %v1246 = vunpack.c.h.b16 %v227
    %v1247 = vunpack.c.l.b16 %v228
    %v1248 = vunpack.c.h.b16 %v228
    %v1249 = vunpack.c.l.b16 %v229
    %v1250 = vunpack.c.h.b16 %v229
    %v1251 = vunpack.c.l.b16 %v230
    %v1252 = vunpack.c.h.b16 %v230
    %v1253 = vunpack.c.l.b16 %v231
    %v1254 = vunpack.c.h.b16 %v231
    %v1255 = vunpack.c.l.b16 %v232
    %v1256 = vunpack.c.h.b16 %v232
    %v1257 = vunpack.c.l.b16 %v233
    %v1258 = vunpack.c.h.b16 %v233
    %v1259 = vunpack.c.l.b16 %v234
    %v1260 = vunpack.c.h.b16 %v234
    %v1261 = vunpack.c.l.b16 %v235
    %v1262 = vunpack.c.h.b16 %v235
    %v1263 = vunpack.c.l.b16 %v236
    %v1264 = vunpack.c.h.b16 %v236
    %v1265 = vunpack.c.l.b16 %v237
    %v1266 = vunpack.c.h.b16 %v237
    %v1267 = vunpack.c.l.b16 %v238
    %v1268 = vunpack.c.h.b16 %v238
    %v1269 = vunpack.c.l.b16 %v239
    %v1270 = vunpack.c.h.b16 %v239
    %v1271 = vunpack.c.l.b16 %v240
    %v1272 = vunpack.c.h.b16 %v240
    %v1273 = vunpack.c.l.b16 %v241
    %v1274 = vunpack.c.h.b16 %v241
    %v1275 = vunpack.c.l.b16 %v242
    %v1276 = vunpack.c.h.b16 %v242
    %v1277 = vunpack.c.l.b16 %v243
    %v1278 = vunpack.c.h.b16 %v243
    %v1279 = vunpack.c.l.b16 %v244
    %v1280 = vunpack.c.h.b16 %v244
    %v1281 = vunpack.c.l.b16 %v245
    %v1282 = vunpack.c.h.b16 %v245
    %v1283 = vunpack.c.l.b16 %v246
    %v1284 = vunpack.c.h.b16 %v246
    %v1285 = vunpack.c.l.b16 %v247
    %v1286 = vunpack.c.h.b16 %v247
    %v1287 = vunpack.c.l.b16 %v248
    %v1288 = vunpack.c.h.b16 %v248
    %v1289 = vunpack.c.l.b16 %v249
    %v1290 = vunpack.c.h.b16 %v249
    %v1291 = vunpack.c.l.b16 %v250
    %v1292 = vunpack.c.h.b16 %v250
    %v1293 = vunpack.c.l.b16 %v251
    %v1294 = vunpack.c.h.b16 %v251
    %v1295 = vunpack.c.l.b16 %v252
    %v1296 = vunpack.c.h.b16 %v252
    %v1297 = vunpack.c.l.b16 %v253
    %v1298 = vunpack.c.h.b16 %v253
    %v1299 = vunpack.c.l.b16 %v254
    %v1300 = vunpack.c.h.b16 %v254
    %v1301 = vunpack.c.l.b16 %v255
    %v1302 = vunpack.c.h.b16 %v255
    %v1303 = vunpack.c.l.b16 %v256
    %v1304 = vunpack.c.h.b16 %v256
    %v1305 = vunpack.c.l.b16 %v257
    %v1306 = vunpack.c.h.b16 %v257
    %v1307 = vunpack.c.l.b16 %v258
    %v1308 = vunpack.c.h.b16 %v258
    %v1309 = vunpack.c.l.b16 %v259
    %v1310 = vunpack.c.h.b16 %v259
    %v1311 = vunpack.c.l.b16 %v260
    %v1312 = vunpack.c.h.b16 %v260
    %v1313 = vunpack.c.l.b16 %v261
    %v1314 = vunpack.c.h.b16 %v261
    %v1315 = vunpack.c.l.b16 %v262
    %v1316 = vunpack.c.h.b16 %v262
    %v1317 = vunpack.c.l.b16 %v263
    %v1318 = vunpack.c.h.b16 %v263
    %v1319 = vunpack.c.l.b16 %v264
    %v1320 = vunpack.c.h.b16 %v264
    %v1321 = vunpack.c.l.b16 %v265
    %v1322 = vunpack.c.h.b16 %v265
    %v1323 = vunpack.c.l.b16 %v266
    %v1324 = vunpack.c.h.b16 %v266
    %v1325 = vunpack.c.l.b16 %v267
    %v1326 = vunpack.c.h.b16 %v267
    %v1327 = vunpack.c.l.b16 %v268
    %v1328 = vunpack.c.h.b16 %v268
    %v1329 = vunpack.c.l.b16 %v269
    %v1330 = vunpack.c.h.b16 %v269
    %v1331 = vunpack.c.l.b16 %v270
    %v1332 = vunpack.c.h.b16 %v270
    %v1333 = vunpack.c.l.b16 %v271
    %v1334 = vunpack.c.h.b16 %v271
    %v1335 = vunpack.c.l.b16 %v272
    %v1336 = vunpack.c.h.b16 %v272
    %v1337 = vunpack.c.l.b16 %v273
    %v1338 = vunpack.c.h.b16 %v273
    %v1339 = vunpack.c.l.b16 %v274
    %v1340 = vunpack.c.h.b16 %v274
    %v1341 = vunpack.c.l.b16 %v275
    %v1342 = vunpack.c.h.b16 %v275
    %v1343 = vunpack.c.l.b16 %v276
    %v1344 = vunpack.c.h.b16 %v276
    %v1345 = vunpack.c.l.b16 %v277
    %v1346 = vunpack.c.h.b16 %v277
    %v1347 = vunpack.c.l.b16 %v278
    %v1348 = vunpack.c.h.b16 %v278
    %v1349 = vunpack.c.l.b16 %v279
    %v1350 = vunpack.c.h.b16 %v279
    %v1351 = vunpack.c.l.b16 %v280
    %v1352 = vunpack.c.h.b16 %v280
    %v1353 = vunpack.c.l.b16 %v281
    %v1354 = vunpack.c.h.b16 %v281
    %v1355 = vunpack.c.l.b16 %v282
    %v1356 = vunpack.c.h.b16 %v282
    %v1357 = vunpack.c.l.b16 %v283
    %v1358 = vunpack.c.h.b16 %v283
    %v1359 = vunpack.c.l.b16 %v284
    %v1360 = vunpack.c.h.b16 %v284
    %v1361 = vunpack.c.l.b16 %v285
    %v1362 = vunpack.c.h.b16 %v285
    %v1363 = vunpack.c.l.b16 %v286
    %v1364 = vunpack.c.h.b16 %v286
    %v1365 = vunpack.c.l.b16 %v287
    %v1366 = vunpack.c.h.b16 %v287
    %v1367 = vunpack.c.l.b16 %v288
    %v1368 = vunpack.c.h.b16 %v288
    %v1369 = vunpack.c.l.b16 %v289
    %v1370 = vunpack.c.h.b16 %v289
    %v1371 = vunpack.c.l.b16 %v290
    %v1372 = vunpack.c.h.b16 %v290
    %v1373 = vunpack.c.l.b16 %v291
    %v1374 = vunpack.c.h.b16 %v291
    %v1375 = vunpack.c.l.b16 %v292
    %v1376 = vunpack.c.h.b16 %v292
    %v1377 = vunpack.c.l.b16 %v293
    %v1378 = vunpack.c.h.b16 %v293
    %v1379 = vunpack.c.l.b16 %v294
    %v1380 = vunpack.c.h.b16 %v294
    %v1381 = vunpack.c.l.b16 %v295
    %v1382 = vunpack.c.h.b16 %v295
    %v1383 = vunpack.c.l.b16 %v296
    %v1384 = vunpack.c.h.b16 %v296
    %v1385 = vunpack.c.l.b16 %v297
    %v1386 = vunpack.c.h.b16 %v297
    %v1387 = vunpack.c.l.b16 %v298
    %v1388 = vunpack.c.h.b16 %v298
    %v1389 = vunpack.c.l.b16 %v299
    %v1390 = vunpack.c.h.b16 %v299
    %v1391 = vunpack.c.l.b16 %v300
    %v1392 = vunpack.c.h.b16 %v300
    %v1393 = vunpack.c.l.b16 %v301
    %v1394 = vunpack.c.h.b16 %v301
    %v1395 = vunpack.c.l.b16 %v302
    %v1396 = vunpack.c.h.b16 %v302
    %v1397 = vunpack.c.l.b16 %v303
    %v1398 = vunpack.c.h.b16 %v303
    %v1399 = vunpack.c.l.b16 %v304
    %v1400 = vunpack.c.h.b16 %v304
    %v1401 = vunpack.c.l.b16 %v305
    %v1402 = vunpack.c.h.b16 %v305
    %v1403 = vunpack.c.l.b16 %v306
    %v1404 = vunpack.c.h.b16 %v306
    %v1405 = vunpack.c.l.b16 %v307
    %v1406 = vunpack.c.h.b16 %v307
    %v1407 = vunpack.c.l.b16 %v308
    %v1408 = vunpack.c.h.b16 %v308
    %v1409 = vunpack.c.l.b16 %v309
    %v1410 = vunpack.c.h.b16 %v309
    %v1411 = vunpack.c.l.b16 %v310
    %v1412 = vunpack.c.h.b16 %v310
    %v1413 = vunpack.c.l.b16 %v311
    %v1414 = vunpack.c.h.b16 %v311
    %v1415 = vunpack.c.l.b16 %v312
    %v1416 = vunpack.c.h.b16 %v312
    %v1417 = vunpack.c.l.b16 %v313
    %v1418 = vunpack.c.h.b16 %v313
    %v1419 = vunpack.c.l.b16 %v314
    %v1420 = vunpack.c.h.b16 %v314
    %v1421 = vunpack.c.l.b16 %v315
    %v1422 = vunpack.c.h.b16 %v315
    %v1423 = vunpack.c.l.b16 %v316
    %v1424 = vunpack.c.h.b16 %v316
    %v1425 = vunpack.c.l.b16 %v317
    %v1426 = vunpack.c.h.b16 %v317
    %v1427 = vunpack.c.l.b16 %v318
    %v1428 = vunpack.c.h.b16 %v318
    %v1429 = vunpack.c.l.b16 %v319
    %v1430 = vunpack.c.h.b16 %v319
    %v1431 = vunpack.c.l.b16 %v320
    %v1432 = vunpack.c.h.b16 %v320
    %v1433 = vunpack.c.l.b16 %v321
    %v1434 = vunpack.c.h.b16 %v321
    %v1435 = vunpack.c.l.b16 %v322
    %v1436 = vunpack.c.h.b16 %v322
    %v1437 = vunpack.c.l.b16 %v323
    %v1438 = vunpack.c.h.b16 %v323
    %v1439 = vunpack.c.l.b16 %v324
    %v1440 = vunpack.c.h.b16 %v324
    %v1441 = vunpack.c.l.b16 %v325
    %v1442 = vunpack.c.h.b16 %v325
    %v1443 = vunpack.c.l.b16 %v326
    %v1444 = vunpack.c.h.b16 %v326
    %v1445 = vunpack.c.l.b16 %v327
    %v1446 = vunpack.c.h.b16 %v327
    %v1447 = vunpack.c.l.b16 %v328
    %v1448 = vunpack.c.h.b16 %v328
    %v1449 = vunpack.c.l.b16 %v329
    %v1450 = vunpack.c.h.b16 %v329
    %v1451 = vunpack.c.l.b16 %v330
    %v1452 = vunpack.c.h.b16 %v330
    %v1453 = vunpack.c.l.b16 %v331
    %v1454 = vunpack.c.h.b16 %v331
    %v1455 = vunpack.c.l.b16 %v332
    %v1456 = vunpack.c.h.b16 %v332
    %v1457 = vunpack.c.l.b16 %v333
    %v1458 = vunpack.c.h.b16 %v333
    %v1459 = vunpack.c.l.b16 %v334
    %v1460 = vunpack.c.h.b16 %v334
    %v1461 = vunpack.c.l.b16 %v335
    %v1462 = vunpack.c.h.b16 %v335
    %v1463 = vpack.c.b16 %v833, %v823
    %v1464 = vpack.c.b16 %v834, %v824
    %v1465 = vpack.c.b16 %v835, %v825
    %v1466 = vpack.c.b16 %v836, %v826
    %v1467 = vpack.c.b16 %v837, %v827
    %v1468 = vpack.c.b16 %v838, %v828
    %v1469 = vpack.c.b16 %v839, %v829
    %v1470 = vpack.c.b16 %v840, %v830
    %v1471 = vpack.c.b16 %v841, %v831
    %v1472 = vpack.c.b16 %v842, %v832
    %v1473 = vpack.c.b16 %v853, %v843
    %v1474 = vpack.c.b16 %v854, %v844
    %v1475 = vpack.c.b16 %v855, %v845
    %v1476 = vpack.c.b16 %v856, %v846
    %v1477 = vpack.c.b16 %v857, %v847
    %v1478 = vpack.c.b16 %v858, %v848
    %v1479 = vpack.c.b16 %v859, %v849
    %v1480 = vpack.c.b16 %v860, %v850
    %v1481 = vpack.c.b16 %v861, %v851
    %v1482 = vpack.c.b16 %v862, %v852
    %v1483 = vpack.c.b16 %v873, %v863
    %v1484 = vpack.c.b16 %v874, %v864
    %v1485 = vpack.c.b16 %v875, %v865
    %v1486 = vpack.c.b16 %v876, %v866
    %v1487 = vpack.c.b16 %v877, %v867
    %v1488 = vpack.c.b16 %v878, %v868
    %v1489 = vpack.c.b16 %v879, %v869
    %v1490 = vpack.c.b16 %v880, %v870
    %v1491 = vpack.c.b16 %v881, %v871
    %v1492 = vpack.c.b16 %v882, %v872
    %v1493 = vpack.c.b16 %v893, %v883
    %v1494 = vpack.c.b16 %v894, %v884
    %v1495 = vpack.c.b16 %v895, %v885
    %v1496 = vpack.c.b16 %v896, %v886
    %v1497 = vpack.c.b16 %v897, %v887
    %v1498 = vpack.c.b16 %v898, %v888
    %v1499 = vpack.c.b16 %v899, %v889
    %v1500 = vpack.c.b16 %v900, %v890
    %v1501 = vpack.c.b16 %v901, %v891
    %v1502 = vpack.c.b16 %v902, %v892
    %v1503 = vpack.c.b16 %v913, %v903
    %v1504 = vpack.c.b16 %v914, %v904
    %v1505 = vpack.c.b16 %v915, %v905
    %v1506 = vpack.c.b16 %v916, %v906
    %v1507 = vpack.c.b16 %v917, %v907
    %v1508 = vpack.c.b16 %v918, %v908
    %v1509 = vpack.c.b16 %v919, %v909
    %v1510 = vpack.c.b16 %v920, %v910
    %v1511 = vpack.c.b16 %v921, %v911
    %v1512 = vpack.c.b16 %v922, %v912
    %v1513 = vpack.c.b16 %v933, %v923
    %v1514 = vpack.c.b16 %v934, %v924
    %v1515 = vpack.c.b16 %v935, %v925
    %v1516 = vpack.c.b16 %v936, %v926
    %v1517 = vpack.c.b16 %v937, %v927
    %v1518 = vpack.c.b16 %v938, %v928
    %v1519 = vpack.c.b16 %v939, %v929
    %v1520 = vpack.c.b16 %v940, %v930
    %v1521 = vpack.c.b16 %v941, %v931
    %v1522 = vpack.c.b16 %v942, %v932
    %v1523 = vpack.c.b16 %v953, %v943
    %v1524 = vpack.c.b16 %v954, %v944
    %v1525 = vpack.c.b16 %v955, %v945
    %v1526 = vpack.c.b16 %v956, %v946
    %v1527 = vpack.c.b16 %v957, %v947
    %v1528 = vpack.c.b16 %v958, %v948
    %v1529 = vpack.c.b16 %v959, %v949
    %v1530 = vpack.c.b16 %v960, %v950
    %v1531 = vpack.c.b16 %v961, %v951
    %v1532 = vpack.c.b16 %v962, %v952
    %v1533 = vpack.c.b16 %v973, %v963
    %v1534 = vpack.c.b16 %v974, %v964
    %v1535 = vpack.c.b16 %v975, %v965
    %v1536 = vpack.c.b16 %v976, %v966
    %v1537 = vpack.c.b16 %v977, %v967
    %v1538 = vpack.c.b16 %v978, %v968
    %v1539 = vpack.c.b16 %v979, %v969
    %v1540 = vpack.c.b16 %v980, %v970
    %v1541 = vpack.c.b16 %v981, %v971
    %v1542 = vpack.c.b16 %v982, %v972
    %v1543 = vpack.c.b16 %v993, %v983
    %v1544 = vpack.c.b16 %v994, %v984
    %v1545 = vpack.c.b16 %v995, %v985
    %v1546 = vpack.c.b16 %v996, %v986
    %v1547 = vpack.c.b16 %v997, %v987
    %v1548 = vpack.c.b16 %v998, %v988
    %v1549 = vpack.c.b16 %v999, %v989
    %v1550 = vpack.c.b16 %v1000, %v990
    %v1551 = vpack.c.b16 %v1001, %v991
    %v1552 = vpack.c.b16 %v1002, %v992
    %v1553 = vpack.c.b16 %v1013, %v1003
    %v1554 = vpack.c.b16 %v1014, %v1004
    %v1555 = vpack.c.b16 %v1015, %v1005
    %v1556 = vpack.c.b16 %v1016, %v1006
    %v1557 = vpack.c.b16 %v1017, %v1007
    %v1558 = vpack.c.b16 %v1018, %v1008
    %v1559 = vpack.c.b16 %v1019, %v1009
    %v1560 = vpack.c.b16 %v1020, %v1010
    %v1561 = vpack.c.b16 %v1021, %v1011
    %v1562 = vpack.c.b16 %v1022, %v1012
    %v1563 = vpack.c.b16 %v1033, %v1023
    %v1564 = vpack.c.b16 %v1034, %v1024
    %v1565 = vpack.c.b16 %v1035, %v1025
    %v1566 = vpack.c.b16 %v1036, %v1026
    %v1567 = vpack.c.b16 %v1037, %v1027
    %v1568 = vpack.c.b16 %v1038, %v1028
    %v1569 = vpack.c.b16 %v1039, %v1029
    %v1570 = vpack.c.b16 %v1040, %v1030
    %v1571 = vpack.c.b16 %v1041, %v1031
    %v1572 = vpack.c.b16 %v1042, %v1032
    %v1573 = vpack.c.b16 %v1053, %v1043
    %v1574 = vpack.c.b16 %v1054, %v1044
    %v1575 = vpack.c.b16 %v1055, %v1045
    %v1576 = vpack.c.b16 %v1056, %v1046
    %v1577 = vpack.c.b16 %v1057, %v1047
    %v1578 = vpack.c.b16 %v1058, %v1048
    %v1579 = vpack.c.b16 %v1059, %v1049
    %v1580 = vpack.c.b16 %v1060, %v1050
    %v1581 = vpack.c.b16 %v1061, %v1051
    %v1582 = vpack.c.b16 %v1062, %v1052
    %v1583 = vpack.c.b16 %v1073, %v1063
    %v1584 = vpack.c.b16 %v1074, %v1064
    %v1585 = vpack.c.b16 %v1075, %v1065
    %v1586 = vpack.c.b16 %v1076, %v1066
    %v1587 = vpack.c.b16 %v1077, %v1067
    %v1588 = vpack.c.b16 %v1078, %v1068
    %v1589 = vpack.c.b16 %v1079, %v1069
    %v1590 = vpack.c.b16 %v1080, %v1070
    %v1591 = vpack.c.b16 %v1081, %v1071
    %v1592 = vpack.c.b16 %v1082, %v1072
    %v1593 = vpack.c.b16 %v1093, %v1083
    %v1594 = vpack.c.b16 %v1094, %v1084
    %v1595 = vpack.c.b16 %v1095, %v1085
    %v1596 = vpack.c.b16 %v1096, %v1086
    %v1597 = vpack.c.b16 %v1097, %v1087
    %v1598 = vpack.c.b16 %v1098, %v1088
    %v1599 = vpack.c.b16 %v1099, %v1089
    %v1600 = vpack.c.b16 %v1100, %v1090
    %v1601 = vpack.c.b16 %v1101, %v1091
    %v1602 = vpack.c.b16 %v1102, %v1092
    %v1603 = vpack.c.b16 %v1113, %v1103
    %v1604 = vpack.c.b16 %v1114, %v1104
    %v1605 = vpack.c.b16 %v1115, %v1105
    %v1606 = vpack.c.b16 %v1116, %v1106
    %v1607 = vpack.c.b16 %v1117, %v1107
    %v1608 = vpack.c.b16 %v1118, %v1108
    %v1609 = vpack.c.b16 %v1119, %v1109
    %v1610 = vpack.c.b16 %v1120, %v1110
    %v1611 = vpack.c.b16 %v1121, %v1111
    %v1612 = vpack.c.b16 %v1122, %v1112
    %v1613 = vpack.c.b16 %v1133, %v1123
    %v1614 = vpack.c.b16 %v1134, %v1124
    %v1615 = vpack.c.b16 %v1135, %v1125
    %v1616 = vpack.c.b16 %v1136, %v1126
    %v1617 = vpack.c.b16 %v1137, %v1127
    %v1618 = vpack.c.b16 %v1138, %v1128
    %v1619 = vpack.c.b16 %v1139, %v1129
    %v1620 = vpack.c.b16 %v1140, %v1130
    %v1621 = vpack.c.b16 %v1141, %v1131
    %v1622 = vpack.c.b16 %v1142, %v1132
    %v1623 = vpack.c.b16 %v1153, %v1143
    %v1624 = vpack.c.b16 %v1154, %v1144
    %v1625 = vpack.c.b16 %v1155, %v1145
    %v1626 = vpack.c.b16 %v1156, %v1146
    %v1627 = vpack.c.b16 %v1157, %v1147
    %v1628 = vpack.c.b16 %v1158, %v1148
    %v1629 = vpack.c.b16 %v1159, %v1149
    %v1630 = vpack.c.b16 %v1160, %v1150
    %v1631 = vpack.c.b16 %v1161, %v1151
    %v1632 = vpack.c.b16 %v1162, %v1152
    %v1633 = vpack.c.b16 %v1173, %v1163
    %v1634 = vpack.c.b16 %v1174, %v1164
    %v1635 = vpack.c.b16 %v1175, %v1165
    %v1636 = vpack.c.b16 %v1176, %v1166
    %v1637 = vpack.c.b16 %v1177, %v1167
    %v1638 = vpack.c.b16 %v1178, %v1168
    %v1639 = vpack.c.b16 %v1179, %v1169
    %v1640 = vpack.c.b16 %v1180, %v1170
    %v1641 = vpack.c.b16 %v1181, %v1171
    %v1642 = vpack.c.b16 %v1182, %v1172
    %v1643 = vpack.c.b16 %v1193, %v1183
    %v1644 = vpack.c.b16 %v1194, %v1184
    %v1645 = vpack.c.b16 %v1195, %v1185
    %v1646 = vpack.c.b16 %v1196, %v1186
    %v1647 = vpack.c.b16 %v1197, %v1187
    %v1648 = vpack.c.b16 %v1198, %v1188
    %v1649 = vpack.c.b16 %v1199, %v1189
    %v1650 = vpack.c.b16 %v1200, %v1190
    %v1651 = vpack.c.b16 %v1201, %v1191
    %v1652 = vpack.c.b16 %v1202, %v1192
    %v1653 = vpack.c.b16 %v1213, %v1203
    %v1654 = vpack.c.b16 %v1214, %v1204
    %v1655 = vpack.c.b16 %v1215, %v1205
    %v1656 = vpack.c.b16 %v1216, %v1206
    %v1657 = vpack.c.b16 %v1217, %v1207
    %v1658 = vpack.c.b16 %v1218, %v1208
    %v1659 = vpack.c.b16 %v1219, %v1209
    %v1660 = vpack.c.b16 %v1220, %v1210
    %v1661 = vpack.c.b16 %v1221, %v1211
    %v1662 = vpack.c.b16 %v1222, %v1212
    %v1663 = vpack.c.b16 %v1233, %v1223
    %v1664 = vpack.c.b16 %v1234, %v1224
    %v1665 = vpack.c.b16 %v1235, %v1225
    %v1666 = vpack.c.b16 %v1236, %v1226
    %v1667 = vpack.c.b16 %v1237, %v1227
    %v1668 = vpack.c.b16 %v1238, %v1228
    %v1669 = vpack.c.b16 %v1239, %v1229
    %v1670 = vpack.c.b16 %v1240, %v1230
    %v1671 = vpack.c.b16 %v1241, %v1231
    %v1672 = vpack.c.b16 %v1242, %v1232
    %v1673 = vpack.c.b16 %v1253, %v1243
    %v1674 = vpack.c.b16 %v1254, %v1244
    %v1675 = vpack.c.b16 %v1255, %v1245
    %v1676 = vpack.c.b16 %v1256, %v1246
    %v1677 = vpack.c.b16 %v1257, %v1247
    %v1678 = vpack.c.b16 %v1258, %v1248
    %v1679 = vpack.c.b16 %v1259, %v1249
    %v1680 = vpack.c.b16 %v1260, %v1250
    %v1681 = vpack.c.b16 %v1261, %v1251
    %v1682 = vpack.c.b16 %v1262, %v1252
    %v1683 = vpack.c.b16 %v1273, %v1263
    %v1684 = vpack.c.b16 %v1274, %v1264
    %v1685 = vpack.c.b16 %v1275, %v1265
    %v1686 = vpack.c.b16 %v1276, %v1266
    %v1687 = vpack.c.b16 %v1277, %v1267
    %v1688 = vpack.c.b16 %v1278, %v1268
    %v1689 = vpack.c.b16 %v1279, %v1269
    %v1690 = vpack.c.b16 %v1280, %v1270
    %v1691 = vpack.c.b16 %v1281, %v1271
    %v1692 = vpack.c.b16 %v1282, %v1272
    %v1693 = vpack.c.b16 %v1293, %v1283
    %v1694 = vpack.c.b16 %v1294, %v1284
    %v1695 = vpack.c.b16 %v1295, %v1285
    %v1696 = vpack.c.b16 %v1296, %v1286
    %v1697 = vpack.c.b16 %v1297, %v1287
    %v1698 = vpack.c.b16 %v1298, %v1288
    %v1699 = vpack.c.b16 %v1299, %v1289
    %v1700 = vpack.c.b16 %v1300, %v1290
    %v1701 = vpack.c.b16 %v1301, %v1291
    %v1702 = vpack.c.b16 %v1302, %v1292
    %v1703 = vpack.c.b16 %v1313, %v1303
    %v1704 = vpack.c.b16 %v1314, %v1304
    %v1705 = vpack.c.b16 %v1315, %v1305
    %v1706 = vpack.c.b16 %v1316, %v1306
    %v1707 = vpack.c.b16 %v1317, %v1307
    %v1708 = vpack.c.b16 %v1318, %v1308
    %v1709 = vpack.c.b16 %v1319, %v1309
    %v1710 = vpack.c.b16 %v1320, %v1310
    %v1711 = vpack.c.b16 %v1321, %v1311
    %v1712 = vpack.c.b16 %v1322, %v1312
    %v1713 = vpack.c.b16 %v1333, %v1323
    %v1714 = vpack.c.b16 %v1334, %v1324
    %v1715 = vpack.c.b16 %v1335, %v1325
    %v1716 = vpack.c.b16 %v1336, %v1326
    %v1717 = vpack.c.b16 %v1337, %v1327
    %v1718 = vpack.c.b16 %v1338, %v1328
    %v1719 = vpack.c.b16 %v1339, %v1329
    %v1720 = vpack.c.b16 %v1340, %v1330
    %v1721 = vpack.c.b16 %v1341, %v1331
    %v1722 = vpack.c.b16 %v1342, %v1332
    %v1723 = vpack.c.b16 %v1353, %v1343
    %v1724 = vpack.c.b16 %v1354, %v1344
    %v1725 = vpack.c.b16 %v1355, %v1345
    %v1726 = vpack.c.b16 %v1356, %v1346
    %v1727 = vpack.c.b16 %v1357, %v1347
    %v1728 = vpack.c.b16 %v1358, %v1348
    %v1729 = vpack.c.b16 %v1359, %v1349
    %v1730 = vpack.c.b16 %v1360, %v1350
    %v1731 = vpack.c.b16 %v1361, %v1351
    %v1732 = vpack.c.b16 %v1362, %v1352
    %v1733 = vpack.c.b16 %v1373, %v1363
    %v1734 = vpack.c.b16 %v1374, %v1364
    %v1735 = vpack.c.b16 %v1375, %v1365
    %v1736 = vpack.c.b16 %v1376, %v1366
    %v1737 = vpack.c.b16 %v1377, %v1367
    %v1738 = vpack.c.b16 %v1378, %v1368
    %v1739 = vpack.c.b16 %v1379, %v1369
    %v1740 = vpack.c.b16 %v1380, %v1370
    %v1741 = vpack.c.b16 %v1381, %v1371
    %v1742 = vpack.c.b16 %v1382, %v1372
    %v1743 = vpack.c.b16 %v1393, %v1383
    %v1744 = vpack.c.b16 %v1394, %v1384
    %v1745 = vpack.c.b16 %v1395, %v1385
    %v1746 = vpack.c.b16 %v1396, %v1386
    %v1747 = vpack.c.b16 %v1397, %v1387
    %v1748 = vpack.c.b16 %v1398, %v1388
    %v1749 = vpack.c.b16 %v1399, %v1389
    %v1750 = vpack.c.b16 %v1400, %v1390
    %v1751 = vpack.c.b16 %v1401, %v1391
    %v1752 = vpack.c.b16 %v1402, %v1392
    %v1753 = vpack.c.b16 %v1413, %v1403
    %v1754 = vpack.c.b16 %v1414, %v1404
    %v1755 = vpack.c.b16 %v1415, %v1405
    %v1756 = vpack.c.b16 %v1416, %v1406
    %v1757 = vpack.c.b16 %v1417, %v1407
    %v1758 = vpack.c.b16 %v1418, %v1408
    %v1759 = vpack.c.b16 %v1419, %v1409
    %v1760 = vpack.c.b16 %v1420, %v1410
    %v1761 = vpack.c.b16 %v1421, %v1411
    %v1762 = vpack.c.b16 %v1422, %v1412
    %v1763 = vpack.c.b16 %v1433, %v1423
    %v1764 = vpack.c.b16 %v1434, %v1424
    %v1765 = vpack.c.b16 %v1435, %v1425
    %v1766 = vpack.c.b16 %v1436, %v1426
    %v1767 = vpack.c.b16 %v1437, %v1427
    %v1768 = vpack.c.b16 %v1438, %v1428
    %v1769 = vpack.c.b16 %v1439, %v1429
    %v1770 = vpack.c.b16 %v1440, %v1430
    %v1771 = vpack.c.b16 %v1441, %v1431
    %v1772 = vpack.c.b16 %v1442, %v1432
    %v1773 = vpack.c.b16 %v1453, %v1443
    %v1774 = vpack.c.b16 %v1454, %v1444
    %v1775 = vpack.c.b16 %v1455, %v1445
    %v1776 = vpack.c.b16 %v1456, %v1446
    %v1777 = vpack.c.b16 %v1457, %v1447
    %v1778 = vpack.c.b16 %v1458, %v1448
    %v1779 = vpack.c.b16 %v1459, %v1449
    %v1780 = vpack.c.b16 %v1460, %v1450
    %v1781 = vpack.c.b16 %v1461, %v1451
    %v1782 = vpack.c.b16 %v1462, %v1452
    %v2263 = vunpack.c.l.b16 %v336
    %v2264 = vunpack.c.l.b16 %v337
    %v2265 = vunpack.c.l.b16 %v338
    %v2266 = vunpack.c.l.b16 %v339
    %v2267 = vunpack.c.l.b16 %v340
    %v2268 = vunpack.c.l.b16 %v341
    %v2269 = vunpack.c.l.b16 %v342
    %v2270 = vunpack.c.l.b16 %v343
    %v2271 = vunpack.c.l.b16 %v344
    %v2272 = vunpack.c.l.b16 %v345
    %v2273 = vunpack.c.l.b16 %v346
    %v2274 = vunpack.c.l.b16 %v347
    %v2275 = vunpack.c.l.b16 %v348
    %v2276 = vunpack.c.l.b16 %v349
    %v2277 = vunpack.c.l.b16 %v350
    %v2278 = vunpack.c.l.b16 %v351
    %v2279 = vunpack.c.l.b16 %v352
    %v2280 = vunpack.c.l.b16 %v353
    %v2281 = vunpack.c.l.b16 %v354
    %v2282 = vunpack.c.l.b16 %v355
    %v2283 = vunpack.c.l.b16 %v356
    %v2284 = vunpack.c.l.b16 %v357
    %v2285 = vunpack.c.l.b16 %v358
    %v2286 = vunpack.c.l.b16 %v359
    %v2287 = vunpack.c.l.b16 %v360
    %v2288 = vunpack.c.l.b16 %v361
    %v2289 = vunpack.c.l.b16 %v362
    %v2290 = vunpack.c.l.b16 %v363
    %v2291 = vunpack.c.l.b16 %v364
    %v2292 = vunpack.c.l.b16 %v365
    %v2293 = vunpack.c.l.b16 %v366
    %v2294 = vunpack.c.l.b16 %v367
    %v2295 = vunpack.c.l.b16 %v368
    %v2296 = vunpack.c.l.b16 %v369
    %v2297 = vunpack.c.l.b16 %v370
    %v2298 = vunpack.c.l.b16 %v371
    %v2299 = vunpack.c.l.b16 %v372
    %v2300 = vunpack.c.l.b16 %v373
    %v2301 = vunpack.c.l.b16 %v374
    %v2302 = vunpack.c.l.b16 %v375
    %v2303 = vunpack.c.l.b16 %v376
    %v2304 = vunpack.c.l.b16 %v377
    %v2305 = vunpack.c.l.b16 %v378
    %v2306 = vunpack.c.l.b16 %v379
    %v2307 = vunpack.c.l.b16 %v380
    %v2308 = vunpack.c.l.b16 %v381
    %v2309 = vunpack.c.l.b16 %v382
    %v2310 = vunpack.c.l.b16 %v383
    %v2311 = vunpack.c.l.b16 %v384
    %v2312 = vunpack.c.l.b16 %v385
    %v2313 = vunpack.c.l.b16 %v386
    %v2314 = vunpack.c.l.b16 %v387
    %v2315 = vunpack.c.l.b16 %v388
    %v2316 = vunpack.c.l.b16 %v389
    %v2317 = vunpack.c.l.b16 %v390
    %v2318 = vunpack.c.l.b16 %v391
    %v2319 = vunpack.c.l.b16 %v392
    %v2320 = vunpack.c.l.b16 %v393
    %v2321 = vunpack.c.l.b16 %v394
    %v2322 = vunpack.c.l.b16 %v395
    %v2323 = vunpack.c.l.b16 %v396
    %v2324 = vunpack.c.l.b16 %v397
    %v2325 = vunpack.c.l.b16 %v398
    %v2326 = vunpack.c.l.b16 %v399
    %v2327 = vunpack.c.l.b16 %v400
    %v2328 = vunpack.c.l.b16 %v401
    %v2329 = vunpack.c.l.b16 %v402
    %v2330 = vunpack.c.l.b16 %v403
    %v2331 = vunpack.c.l.b16 %v404
    %v2332 = vunpack.c.l.b16 %v405
    %v2333 = vunpack.c.l.b16 %v406
    %v2334 = vunpack.c.l.b16 %v407
    %v2335 = vunpack.c.l.b16 %v408
    %v2336 = vunpack.c.l.b16 %v409
    %v2337 = vunpack.c.l.b16 %v410
    %v2338 = vunpack.c.l.b16 %v411
    %v2339 = vunpack.c.l.b16 %v412
    %v2340 = vunpack.c.l.b16 %v413
    %v2341 = vunpack.c.l.b16 %v414
    %v2342 = vunpack.c.l.b16 %v415
    %v2343 = vunpack.c.l.b16 %v416
    %v2344 = vunpack.c.l.b16 %v417
    %v2345 = vunpack.c.l.b16 %v418
    %v2346 = vunpack.c.l.b16 %v419
    %v2347 = vunpack.c.l.b16 %v420
    %v2348 = vunpack.c.l.b16 %v421
    %v2349 = vunpack.c.l.b16 %v422
    %v2350 = vunpack.c.l.b16 %v423
    %v2351 = vunpack.c.l.b16 %v424
    %v2352 = vunpack.c.l.b16 %v425
    %v2353 = vunpack.c.l.b16 %v426
    %v2354 = vunpack.c.l.b16 %v427
    %v2355 = vunpack.c.l.b16 %v428
    %v2356 = vunpack.c.l.b16 %v429
    %v2357 = vunpack.c.l.b16 %v430
    %v2358 = vunpack.c.l.b16 %v431
    %v2359 = vunpack.c.l.b16 %v432
    %v2360 = vunpack.c.l.b16 %v433
    %v2361 = vunpack.c.l.b16 %v434
    %v2362 = vunpack.c.l.b16 %v435
    %v2363 = vunpack.c.l.b16 %v436
    %v2364 = vunpack.c.l.b16 %v437
    %v2365 = vunpack.c.l.b16 %v438
    %v2366 = vunpack.c.l.b16 %v439
    %v2367 = vunpack.c.l.b16 %v440
    %v2368 = vunpack.c.l.b16 %v441
    %v2369 = vunpack.c.l.b16 %v442
    %v2370 = vunpack.c.l.b16 %v443
    %v2371 = vunpack.c.l.b16 %v444
    %v2372 = vunpack.c.l.b16 %v445
    %v2373 = vunpack.c.l.b16 %v446
    %v2374 = vunpack.c.l.b16 %v447
    %v2375 = vunpack.c.l.b16 %v448
    %v2376 = vunpack.c.l.b16 %v449
    %v2377 = vunpack.c.l.b16 %v450
    %v2378 = vunpack.c.l.b16 %v451
    %v2379 = vunpack.c.l.b16 %v452
    %v2380 = vunpack.c.l.b16 %v453
    %v2381 = vunpack.c.l.b16 %v454
    %v2382 = vunpack.c.l.b16 %v455
    %v2383 = vunpack.c.l.b16 %v456
    %v2384 = vunpack.c.l.b16 %v457
    %v2385 = vunpack.c.l.b16 %v458
    %v2386 = vunpack.c.l.b16 %v459
    %v2387 = vunpack.c.l.b16 %v460
    %v2388 = vunpack.c.l.b16 %v461
    %v2389 = vunpack.c.l.b16 %v462
    %v2390 = vunpack.c.l.b16 %v463
    %v2391 = vunpack.c.l.b16 %v464
    %v2392 = vunpack.c.l.b16 %v465
    %v2393 = vunpack.c.l.b16 %v466
    %v2394 = vunpack.c.l.b16 %v467
    %v2395 = vunpack.c.l.b16 %v468
    %v2396 = vunpack.c.l.b16 %v469
    %v2397 = vunpack.c.l.b16 %v470
    %v2398 = vunpack.c.l.b16 %v471
    %v2399 = vunpack.c.l.b16 %v472
    %v2400 = vunpack.c.l.b16 %v473
    %v2401 = vunpack.c.l.b16 %v474
    %v2402 = vunpack.c.l.b16 %v475
    %v2403 = vunpack.c.l.b16 %v476
    %v2404 = vunpack.c.l.b16 %v477
    %v2405 = vunpack.c.l.b16 %v478
    %v2406 = vunpack.c.l.b16 %v479
    %v2407 = vunpack.c.l.b16 %v480
    %v2408 = vunpack.c.l.b16 %v481
    %v2409 = vunpack.c.l.b16 %v482
    %v2410 = vunpack.c.l.b16 %v483
    %v2411 = vunpack.c.l.b16 %v484
    %v2412 = vunpack.c.l.b16 %v485
    %v2413 = vunpack.c.l.b16 %v486
    %v2414 = vunpack.c.l.b16 %v487
    %v2415 = vunpack.c.l.b16 %v488
    %v2416 = vunpack.c.l.b16 %v489
    %v2417 = vunpack.c.l.b16 %v490
    %v2418 = vunpack.c.l.b16 %v491
    %v2419 = vunpack.c.l.b16 %v492
    %v2420 = vunpack.c.l.b16 %v493
    %v2421 = vunpack.c.l.b16 %v494
    %v2422 = vunpack.c.l.b16 %v495
    %v2423 = vpack.c.b16 %v2264, %v2263
    %v2424 = vpack.c.b16 %v2266, %v2265
    %v2425 = vpack.c.b16 %v2268, %v2267
    %v2426 = vpack.c.b16 %v2270, %v2269
    %v2427 = vpack.c.b16 %v2272, %v2271
    %v2428 = vpack.c.b16 %v2274, %v2273
    %v2429 = vpack.c.b16 %v2276, %v2275
    %v2430 = vpack.c.b16 %v2278, %v2277
    %v2431 = vpack.c.b16 %v2280, %v2279
    %v2432 = vpack.c.b16 %v2282, %v2281
    %v2433 = vpack.c.b16 %v2284, %v2283
    %v2434 = vpack.c.b16 %v2286, %v2285
    %v2435 = vpack.c.b16 %v2288, %v2287
    %v2436 = vpack.c.b16 %v2290, %v2289
    %v2437 = vpack.c.b16 %v2292, %v2291
    %v2438 = vpack.c.b16 %v2294, %v2293
    %v2439 = vpack.c.b16 %v2296, %v2295
    %v2440 = vpack.c.b16 %v2298, %v2297
    %v2441 = vpack.c.b16 %v2300, %v2299
    %v2442 = vpack.c.b16 %v2302, %v2301
    %v2443 = vpack.c.b16 %v2304, %v2303
    %v2444 = vpack.c.b16 %v2306, %v2305
    %v2445 = vpack.c.b16 %v2308, %v2307
    %v2446 = vpack.c.b16 %v2310, %v2309
    %v2447 = vpack.c.b16 %v2312, %v2311
    %v2448 = vpack.c.b16 %v2314, %v2313
    %v2449 = vpack.c.b16 %v2316, %v2315
    %v2450 = vpack.c.b16 %v2318, %v2317
    %v2451 = vpack.c.b16 %v2320, %v2319
    %v2452 = vpack.c.b16 %v2322, %v2321
    %v2453 = vpack.c.b16 %v2324, %v2323
    %v2454 = vpack.c.b16 %v2326, %v2325
    %v2455 = vpack.c.b16 %v2328, %v2327
    %v2456 = vpack.c.b16 %v2330, %v2329
    %v2457 = vpack.c.b16 %v2332, %v2331
    %v2458 = vpack.c.b16 %v2334, %v2333
    %v2459 = vpack.c.b16 %v2336, %v2335
    %v2460 = vpack.c.b16 %v2338, %v2337
    %v2461 = vpack.c.b16 %v2340, %v2339
    %v2462 = vpack.c.b16 %v2342, %v2341
    %v2463 = vpack.c.b16 %v2344, %v2343
    %v2464 = vpack.c.b16 %v2346, %v2345
    %v2465 = vpack.c.b16 %v2348, %v2347
    %v2466 = vpack.c.b16 %v2350, %v2349
    %v2467 = vpack.c.b16 %v2352, %v2351
    %v2468 = vpack.c.b16 %v2354, %v2353
    %v2469 = vpack.c.b16 %v2356, %v2355
    %v2470 = vpack.c.b16 %v2358, %v2357
    %v2471 = vpack.c.b16 %v2360, %v2359
    %v2472 = vpack.c.b16 %v2362, %v2361
    %v2473 = vpack.c.b16 %v2364, %v2363
    %v2474 = vpack.c.b16 %v2366, %v2365
    %v2475 = vpack.c.b16 %v2368, %v2367
    %v2476 = vpack.c.b16 %v2370, %v2369
    %v2477 = vpack.c.b16 %v2372, %v2371
    %v2478 = vpack.c.b16 %v2374, %v2373
    %v2479 = vpack.c.b16 %v2376, %v2375
    %v2480 = vpack.c.b16 %v2378, %v2377
    %v2481 = vpack.c.b16 %v2380, %v2379
    %v2482 = vpack.c.b16 %v2382, %v2381
    %v2483 = vpack.c.b16 %v2384, %v2383
    %v2484 = vpack.c.b16 %v2386, %v2385
    %v2485 = vpack.c.b16 %v2388, %v2387
    %v2486 = vpack.c.b16 %v2390, %v2389
    %v2487 = vpack.c.b16 %v2392, %v2391
    %v2488 = vpack.c.b16 %v2394, %v2393
    %v2489 = vpack.c.b16 %v2396, %v2395
    %v2490 = vpack.c.b16 %v2398, %v2397
    %v2491 = vpack.c.b16 %v2400, %v2399
    %v2492 = vpack.c.b16 %v2402, %v2401
    %v2493 = vpack.c.b16 %v2404, %v2403
    %v2494 = vpack.c.b16 %v2406, %v2405
    %v2495 = vpack.c.b16 %v2408, %v2407
    %v2496 = vpack.c.b16 %v2410, %v2409
    %v2497 = vpack.c.b16 %v2412, %v2411
    %v2498 = vpack.c.b16 %v2414, %v2413
    %v2499 = vpack.c.b16 %v2416, %v2415
    %v2500 = vpack.c.b16 %v2418, %v2417
    %v2501 = vpack.c.b16 %v2420, %v2419
    %v2502 = vpack.c.b16 %v2422, %v2421
    %2583 = vmatprep.subr.bf16.mxu0 0
    %2584 = vmatpush1.bf16.msra.mxu0 %v2423
    %2585 = vmatprep.subr.bf16.mxu0 0
    %2586 = vmatpush1.bf16.msra.mxu0 %v2424
    %2587 = vmatprep.subr.bf16.mxu0 0
    %2588 = vmatpush1.bf16.msra.mxu0 %v2425
    %2589 = vmatprep.subr.bf16.mxu0 0
    %2590 = vmatpush1.bf16.msra.mxu0 %v2426
    %2591 = vmatprep.subr.bf16.mxu0 0
    %2592 = vmatpush1.bf16.msra.mxu0 %v2427
    %2593 = vmatprep.subr.bf16.mxu0 0
    %2594 = vmatpush1.bf16.msra.mxu0 %v2428
    %2595 = vmatprep.subr.bf16.mxu0 0
    %2596 = vmatpush1.bf16.msra.mxu0 %v2429
    %2597 = vmatprep.subr.bf16.mxu0 0
    %2598 = vmatpush1.bf16.msra.mxu0 %v2430
    %2599 = vmatprep.subr.bf16.mxu0 0
    %2600 = vmatpush1.bf16.msra.mxu0 %v2431
    %2601 = vmatprep.subr.bf16.mxu0 0
    %2602 = vmatpush1.bf16.msra.mxu0 %v2432
    %2603 = vmatprep.subr.bf16.mxu0 0
    %2604 = vmatpush1.bf16.msra.mxu0 %v2433
    %2605 = vmatprep.subr.bf16.mxu0 0
    %2606 = vmatpush1.bf16.msra.mxu0 %v2434
    %2607 = vmatprep.subr.bf16.mxu0 0
    %2608 = vmatpush1.bf16.msra.mxu0 %v2435
    %2609 = vmatprep.subr.bf16.mxu0 0
    %2610 = vmatpush1.bf16.msra.mxu0 %v2436
    %2611 = vmatprep.subr.bf16.mxu0 0
    %2612 = vmatpush1.bf16.msra.mxu0 %v2437
    %2613 = vmatprep.subr.bf16.mxu0 0
    %2614 = vmatpush1.bf16.msra.mxu0 %v2438
    %2615 = vmatprep.mubr.bf16.mxu0 %v1464
    %2616 = vmatmul.mubr.bf16.gmra.mrb[0].mxu0 %v1463
    %v2617 = vpop.f32.mrb[0].mxu0
    %v2618 = vadd.f32 %v501, %v2617
    %v2619 = vpop.f32.mrb[0].mxu0
    %v2620 = vpop.f32.mrb[0].mxu0
    %v2621 = vadd.f32 %v501, %v2620
    %v2622 = vpop.f32.mrb[0].mxu0
    %2623 = vmatprep.mubr.bf16.mxu0 %v1474
    %2624 = vmatmul.mubr.bf16.gmra.mrb[0].mxu0 %v1473
    %v2625 = vpop.f32.mrb[0].mxu0
    %v2626 = vadd.f32 %v501, %v2625
    %v2627 = vpop.f32.mrb[0].mxu0
    %v2628 = vpop.f32.mrb[0].mxu0
    %v2629 = vadd.f32 %v501, %v2628
    %v2630 = vpop.f32.mrb[0].mxu0
    %2631 = vmatprep.mubr.bf16.mxu0 %v1484
    %2632 = vmatmul.mubr.bf16.gmra.mrb[0].mxu0 %v1483
    %v2633 = vpop.f32.mrb[0].mxu0
    %v2634 = vadd.f32 %v501, %v2633
    %v2635 = vpop.f32.mrb[0].mxu0
    %v2636 = vpop.f32.mrb[0].mxu0
    %v2637 = vadd.f32 %v501, %v2636
    %v2638 = vpop.f32.mrb[0].mxu0
    %2639 = vmatprep.mubr.bf16.mxu0 %v1494
    %2640 = vmatmul.mubr.bf16.gmra.mrb[0].mxu0 %v1493
    %v2641 = vpop.f32.mrb[0].mxu0
    %v2642 = vadd.f32 %v501, %v2641
    %v2643 = vpop.f32.mrb[0].mxu0
    %v2644 = vpop.f32.mrb[0].mxu0
    %v2645 = vadd.f32 %v501, %v2644
    %v2646 = vpop.f32.mrb[0].mxu0
    %2647 = vmatprep.mubr.bf16.mxu0 %v1504
    %2648 = vmatmul.mubr.bf16.gmra.mrb[0].mxu0 %v1503
    %v2649 = vpop.f32.mrb[0].mxu0
    %v2650 = vadd.f32 %v501, %v2649
    %v2651 = vpop.f32.mrb[0].mxu0
    %v2652 = vpop.f32.mrb[0].mxu0
    %v2653 = vadd.f32 %v501, %v2652
    %v2654 = vpop.f32.mrb[0].mxu0
    %2655 = vmatprep.mubr.bf16.mxu0 %v1514
    %2656 = vmatmul.mubr.bf16.gmra.mrb[0].mxu0 %v1513
    %v2657 = vpop.f32.mrb[0].mxu0
    %v2658 = vadd.f32 %v501, %v2657
    %v2659 = vpop.f32.mrb[0].mxu0
    %v2660 = vpop.f32.mrb[0].mxu0
    %v2661 = vadd.f32 %v501, %v2660
    %v2662 = vpop.f32.mrb[0].mxu0
    %2663 = vmatprep.mubr.bf16.mxu0 %v1524
    %2664 = vmatmul.mubr.bf16.gmra.mrb[0].mxu0 %v1523
    %v2665 = vpop.f32.mrb[0].mxu0
    %v2666 = vadd.f32 %v501, %v2665
    %v2667 = vpop.f32.mrb[0].mxu0
    %v2668 = vpop.f32.mrb[0].mxu0
    %v2669 = vadd.f32 %v501, %v2668
    %v2670 = vpop.f32.mrb[0].mxu0
    %2671 = vmatprep.mubr.bf16.mxu0 %v1534
    %2672 = vmatmul.mubr.bf16.gmra.mrb[0].mxu0 %v1533
    %v2673 = vpop.f32.mrb[0].mxu0
    %v2674 = vadd.f32 %v501, %v2673
    %v2675 = vpop.f32.mrb[0].mxu0
    %v2676 = vpop.f32.mrb[0].mxu0
    %v2677 = vadd.f32 %v501, %v2676
    %v2678 = vpop.f32.mrb[0].mxu0
    %2679 = vmatprep.mubr.bf16.mxu0 %v1544
    %2680 = vmatmul.mubr.bf16.gmra.mrb[0].mxu0 %v1543
    %v2681 = vpop.f32.mrb[0].mxu0
    %v2682 = vadd.f32 %v501, %v2681
    %v2683 = vpop.f32.mrb[0].mxu0
    %v2684 = vpop.f32.mrb[0].mxu0
    %v2685 = vadd.f32 %v501, %v2684
    %v2686 = vpop.f32.mrb[0].mxu0
    %2687 = vmatprep.mubr.bf16.mxu0 %v1554
    %2688 = vmatmul.mubr.bf16.gmra.mrb[0].mxu0 %v1553
    %v2689 = vpop.f32.mrb[0].mxu0
    %v2690 = vadd.f32 %v501, %v2689
    %v2691 = vpop.f32.mrb[0].mxu0
    %v2692 = vpop.f32.mrb[0].mxu0
    %v2693 = vadd.f32 %v501, %v2692
    %v2694 = vpop.f32.mrb[0].mxu0
    %2695 = vmatprep.mubr.bf16.mxu0 %v1564
    %2696 = vmatmul.mubr.bf16.gmra.mrb[0].mxu0 %v1563
    %v2697 = vpop.f32.mrb[0].mxu0
    %v2698 = vadd.f32 %v501, %v2697
    %v2699 = vpop.f32.mrb[0].mxu0
    %v2700 = vpop.f32.mrb[0].mxu0
    %v2701 = vadd.f32 %v501, %v2700
    %v2702 = vpop.f32.mrb[0].mxu0
    %2703 = vmatprep.mubr.bf16.mxu0 %v1574
    %2704 = vmatmul.mubr.bf16.gmra.mrb[0].mxu0 %v1573
    %v2705 = vpop.f32.mrb[0].mxu0
    %v2706 = vadd.f32 %v501, %v2705
    %v2707 = vpop.f32.mrb[0].mxu0
    %v2708 = vpop.f32.mrb[0].mxu0
    %v2709 = vadd.f32 %v501, %v2708
    %v2710 = vpop.f32.mrb[0].mxu0
    %2711 = vmatprep.mubr.bf16.mxu0 %v1584
    %2712 = vmatmul.mubr.bf16.gmra.mrb[0].mxu0 %v1583
    %v2713 = vpop.f32.mrb[0].mxu0
    %v2714 = vadd.f32 %v501, %v2713
    %v2715 = vpop.f32.mrb[0].mxu0
    %v2716 = vpop.f32.mrb[0].mxu0
    %v2717 = vadd.f32 %v501, %v2716
    %v2718 = vpop.f32.mrb[0].mxu0
    %2719 = vmatprep.mubr.bf16.mxu0 %v1594
    %2720 = vmatmul.mubr.bf16.gmra.mrb[0].mxu0 %v1593
    %v2721 = vpop.f32.mrb[0].mxu0
    %v2722 = vadd.f32 %v501, %v2721
    %v2723 = vpop.f32.mrb[0].mxu0
    %v2724 = vpop.f32.mrb[0].mxu0
    %v2725 = vadd.f32 %v501, %v2724
    %v2726 = vpop.f32.mrb[0].mxu0
    %2727 = vmatprep.mubr.bf16.mxu0 %v1604
    %2728 = vmatmul.mubr.bf16.gmra.mrb[0].mxu0 %v1603
    %v2729 = vpop.f32.mrb[0].mxu0
    %v2730 = vadd.f32 %v501, %v2729
    %v2731 = vpop.f32.mrb[0].mxu0
    %v2732 = vpop.f32.mrb[0].mxu0
    %v2733 = vadd.f32 %v501, %v2732
    %v2734 = vpop.f32.mrb[0].mxu0
    %2735 = vmatprep.mubr.bf16.mxu0 %v1614
    %2736 = vmatmul.mubr.bf16.gmra.mrb[0].mxu0 %v1613
    %v2737 = vpop.f32.mrb[0].mxu0
    %v2738 = vadd.f32 %v501, %v2737
    %v2739 = vpop.f32.mrb[0].mxu0
    %v2740 = vpop.f32.mrb[0].mxu0
    %v2741 = vadd.f32 %v501, %v2740
    %v2742 = vpop.f32.mrb[0].mxu0
    %2743 = vmatprep.mubr.bf16.mxu0 %v1624
    %2744 = vmatmul.mubr.bf16.gmra.mrb[0].mxu0 %v1623
    %v2745 = vpop.f32.mrb[0].mxu0
    %v2746 = vadd.f32 %v501, %v2745
    %v2747 = vpop.f32.mrb[0].mxu0
    %v2748 = vpop.f32.mrb[0].mxu0
    %v2749 = vadd.f32 %v501, %v2748
    %v2750 = vpop.f32.mrb[0].mxu0
    %2751 = vmatprep.mubr.bf16.mxu0 %v1634
    %2752 = vmatmul.mubr.bf16.gmra.mrb[0].mxu0 %v1633
    %v2753 = vpop.f32.mrb[0].mxu0
    %v2754 = vadd.f32 %v501, %v2753
    %v2755 = vpop.f32.mrb[0].mxu0
    %v2756 = vpop.f32.mrb[0].mxu0
    %v2757 = vadd.f32 %v501, %v2756
    %v2758 = vpop.f32.mrb[0].mxu0
    %2759 = vmatprep.mubr.bf16.mxu0 %v1644
    %2760 = vmatmul.mubr.bf16.gmra.mrb[0].mxu0 %v1643
    %v2761 = vpop.f32.mrb[0].mxu0
    %v2762 = vadd.f32 %v501, %v2761
    %v2763 = vpop.f32.mrb[0].mxu0
    %v2764 = vpop.f32.mrb[0].mxu0
    %v2765 = vadd.f32 %v501, %v2764
    %v2766 = vpop.f32.mrb[0].mxu0
    %2767 = vmatprep.mubr.bf16.mxu0 %v1654
    %2768 = vmatmul.mubr.bf16.gmra.mrb[0].mxu0 %v1653
    %v2769 = vpop.f32.mrb[0].mxu0
    %v2770 = vadd.f32 %v501, %v2769
    %v2771 = vpop.f32.mrb[0].mxu0
    %v2772 = vpop.f32.mrb[0].mxu0
    %v2773 = vadd.f32 %v501, %v2772
    %v2774 = vpop.f32.mrb[0].mxu0
    %2775 = vmatprep.mubr.bf16.mxu0 %v1664
    %2776 = vmatmul.mubr.bf16.gmra.mrb[0].mxu0 %v1663
    %v2777 = vpop.f32.mrb[0].mxu0
    %v2778 = vadd.f32 %v501, %v2777
    %v2779 = vpop.f32.mrb[0].mxu0
    %v2780 = vpop.f32.mrb[0].mxu0
    %v2781 = vadd.f32 %v501, %v2780
    %v2782 = vpop.f32.mrb[0].mxu0
    %2783 = vmatprep.mubr.bf16.mxu0 %v1674
    %2784 = vmatmul.mubr.bf16.gmra.mrb[0].mxu0 %v1673
    %v2785 = vpop.f32.mrb[0].mxu0
    %v2786 = vadd.f32 %v501, %v2785
    %v2787 = vpop.f32.mrb[0].mxu0
    %v2788 = vpop.f32.mrb[0].mxu0
    %v2789 = vadd.f32 %v501, %v2788
    %v2790 = vpop.f32.mrb[0].mxu0
    %2791 = vmatprep.mubr.bf16.mxu0 %v1684
    %2792 = vmatmul.mubr.bf16.gmra.mrb[0].mxu0 %v1683
    %v2793 = vpop.f32.mrb[0].mxu0
    %v2794 = vadd.f32 %v501, %v2793
    %v2795 = vpop.f32.mrb[0].mxu0
    %v2796 = vpop.f32.mrb[0].mxu0
    %v2797 = vadd.f32 %v501, %v2796
    %v2798 = vpop.f32.mrb[0].mxu0
    %2799 = vmatprep.mubr.bf16.mxu0 %v1694
    %2800 = vmatmul.mubr.bf16.gmra.mrb[0].mxu0 %v1693
    %v2801 = vpop.f32.mrb[0].mxu0
    %v2802 = vadd.f32 %v501, %v2801
    %v2803 = vpop.f32.mrb[0].mxu0
    %v2804 = vpop.f32.mrb[0].mxu0
    %v2805 = vadd.f32 %v501, %v2804
    %v2806 = vpop.f32.mrb[0].mxu0
    %2807 = vmatprep.mubr.bf16.mxu0 %v1704
    %2808 = vmatmul.mubr.bf16.gmra.mrb[0].mxu0 %v1703
    %v2809 = vpop.f32.mrb[0].mxu0
    %v2810 = vadd.f32 %v501, %v2809
    %v2811 = vpop.f32.mrb[0].mxu0
    %v2812 = vpop.f32.mrb[0].mxu0
    %v2813 = vadd.f32 %v501, %v2812
    %v2814 = vpop.f32.mrb[0].mxu0
    %2815 = vmatprep.mubr.bf16.mxu0 %v1714
    %2816 = vmatmul.mubr.bf16.gmra.mrb[0].mxu0 %v1713
    %v2817 = vpop.f32.mrb[0].mxu0
    %v2818 = vadd.f32 %v501, %v2817
    %v2819 = vpop.f32.mrb[0].mxu0
    %v2820 = vpop.f32.mrb[0].mxu0
    %v2821 = vadd.f32 %v501, %v2820
    %v2822 = vpop.f32.mrb[0].mxu0
    %2823 = vmatprep.mubr.bf16.mxu0 %v1724
    %2824 = vmatmul.mubr.bf16.gmra.mrb[0].mxu0 %v1723
    %v2825 = vpop.f32.mrb[0].mxu0
    %v2826 = vadd.f32 %v501, %v2825
    %v2827 = vpop.f32.mrb[0].mxu0
    %v2828 = vpop.f32.mrb[0].mxu0
    %v2829 = vadd.f32 %v501, %v2828
    %v2830 = vpop.f32.mrb[0].mxu0
    %2831 = vmatprep.mubr.bf16.mxu0 %v1734
    %2832 = vmatmul.mubr.bf16.gmra.mrb[0].mxu0 %v1733
    %v2833 = vpop.f32.mrb[0].mxu0
    %v2834 = vadd.f32 %v501, %v2833
    %v2835 = vpop.f32.mrb[0].mxu0
    %v2836 = vpop.f32.mrb[0].mxu0
    %v2837 = vadd.f32 %v501, %v2836
    %v2838 = vpop.f32.mrb[0].mxu0
    %2839 = vmatprep.mubr.bf16.mxu0 %v1744
    %2840 = vmatmul.mubr.bf16.gmra.mrb[0].mxu0 %v1743
    %v2841 = vpop.f32.mrb[0].mxu0
    %v2842 = vadd.f32 %v501, %v2841
    %v2843 = vpop.f32.mrb[0].mxu0
    %v2844 = vpop.f32.mrb[0].mxu0
    %v2845 = vadd.f32 %v501, %v2844
    %v2846 = vpop.f32.mrb[0].mxu0
    %2847 = vmatprep.mubr.bf16.mxu0 %v1754
    %2848 = vmatmul.mubr.bf16.gmra.mrb[0].mxu0 %v1753
    %v2849 = vpop.f32.mrb[0].mxu0
    %v2850 = vadd.f32 %v501, %v2849
    %v2851 = vpop.f32.mrb[0].mxu0
    %v2852 = vpop.f32.mrb[0].mxu0
    %v2853 = vadd.f32 %v501, %v2852
    %v2854 = vpop.f32.mrb[0].mxu0
    %2855 = vmatprep.mubr.bf16.mxu0 %v1764
    %2856 = vmatmul.mubr.bf16.gmra.mrb[0].mxu0 %v1763
    %v2857 = vpop.f32.mrb[0].mxu0
    %v2858 = vadd.f32 %v501, %v2857
    %v2859 = vpop.f32.mrb[0].mxu0
    %v2860 = vpop.f32.mrb[0].mxu0
    %v2861 = vadd.f32 %v501, %v2860
    %v2862 = vpop.f32.mrb[0].mxu0
    %2863 = vmatprep.mubr.bf16.mxu0 %v1774
    %2864 = vmatmul.mubr.bf16.gmra.mrb[0].mxu0 %v1773
    %v2865 = vpop.f32.mrb[0].mxu0
    %v2866 = vadd.f32 %v501, %v2865
    %v2867 = vpop.f32.mrb[0].mxu0
    %v2868 = vpop.f32.mrb[0].mxu0
    %v2869 = vadd.f32 %v501, %v2868
    %v2870 = vpop.f32.mrb[0].mxu0
    %2871 = vdwg.mxu0
    %2872 = vmatprep.subr.bf16.mxu0 0
    %2873 = vmatpush1.bf16.msra.mxu0 %v2439
    %2874 = vmatprep.subr.bf16.mxu0 0
    %2875 = vmatpush1.bf16.msra.mxu0 %v2440
    %2876 = vmatprep.subr.bf16.mxu0 0
    %2877 = vmatpush1.bf16.msra.mxu0 %v2441
    %2878 = vmatprep.subr.bf16.mxu0 0
    %2879 = vmatpush1.bf16.msra.mxu0 %v2442
    %2880 = vmatprep.subr.bf16.mxu0 0
    %2881 = vmatpush1.bf16.msra.mxu0 %v2443
    %2882 = vmatprep.subr.bf16.mxu0 0
    %2883 = vmatpush1.bf16.msra.mxu0 %v2444
    %2884 = vmatprep.subr.bf16.mxu0 0
    %2885 = vmatpush1.bf16.msra.mxu0 %v2445
    %2886 = vmatprep.subr.bf16.mxu0 0
    %2887 = vmatpush1.bf16.msra.mxu0 %v2446
    %2888 = vmatprep.subr.bf16.mxu0 0
    %2889 = vmatpush1.bf16.msra.mxu0 %v2447
    %2890 = vmatprep.subr.bf16.mxu0 0
    %2891 = vmatpush1.bf16.msra.mxu0 %v2448
    %2892 = vmatprep.subr.bf16.mxu0 0
    %2893 = vmatpush1.bf16.msra.mxu0 %v2449
    %2894 = vmatprep.subr.bf16.mxu0 0
    %2895 = vmatpush1.bf16.msra.mxu0 %v2450
    %2896 = vmatprep.subr.bf16.mxu0 0
    %2897 = vmatpush1.bf16.msra.mxu0 %v2451
    %2898 = vmatprep.subr.bf16.mxu0 0
    %2899 = vmatpush1.bf16.msra.mxu0 %v2452
    %2900 = vmatprep.subr.bf16.mxu0 0
    %2901 = vmatpush1.bf16.msra.mxu0 %v2453
    %2902 = vmatprep.subr.bf16.mxu0 0
    %2903 = vmatpush1.bf16.msra.mxu0 %v2454
    %2904 = vmatprep.mubr.bf16.mxu0 %v1466
    %2905 = vmatmul.mubr.bf16.gmra.mrb[0].mxu0 %v1465
    %v2906 = vpop.f32.mrb[0].mxu0
    %v2907 = vadd.f32 %v2618, %v2906
    %v2908 = vpop.f32.mrb[0].mxu0
    %v2909 = vpop.f32.mrb[0].mxu0
    %v2910 = vadd.f32 %v2621, %v2909
    %v2911 = vpop.f32.mrb[0].mxu0
    %2912 = vmatprep.mubr.bf16.mxu0 %v1476
    %2913 = vmatmul.mubr.bf16.gmra.mrb[0].mxu0 %v1475
    %v2914 = vpop.f32.mrb[0].mxu0
    %v2915 = vadd.f32 %v2626, %v2914
    %v2916 = vpop.f32.mrb[0].mxu0
    %v2917 = vpop.f32.mrb[0].mxu0
    %v2918 = vadd.f32 %v2629, %v2917
    %v2919 = vpop.f32.mrb[0].mxu0
    %2920 = vmatprep.mubr.bf16.mxu0 %v1486
    %2921 = vmatmul.mubr.bf16.gmra.mrb[0].mxu0 %v1485
    %v2922 = vpop.f32.mrb[0].mxu0
    %v2923 = vadd.f32 %v2634, %v2922
    %v2924 = vpop.f32.mrb[0].mxu0
    %v2925 = vpop.f32.mrb[0].mxu0
    %v2926 = vadd.f32 %v2637, %v2925
    %v2927 = vpop.f32.mrb[0].mxu0
    %2928 = vmatprep.mubr.bf16.mxu0 %v1496
    %2929 = vmatmul.mubr.bf16.gmra.mrb[0].mxu0 %v1495
    %v2930 = vpop.f32.mrb[0].mxu0
    %v2931 = vadd.f32 %v2642, %v2930
    %v2932 = vpop.f32.mrb[0].mxu0
    %v2933 = vpop.f32.mrb[0].mxu0
    %v2934 = vadd.f32 %v2645, %v2933
    %v2935 = vpop.f32.mrb[0].mxu0
    %2936 = vmatprep.mubr.bf16.mxu0 %v1506
    %2937 = vmatmul.mubr.bf16.gmra.mrb[0].mxu0 %v1505
    %v2938 = vpop.f32.mrb[0].mxu0
    %v2939 = vadd.f32 %v2650, %v2938
    %v2940 = vpop.f32.mrb[0].mxu0
    %v2941 = vpop.f32.mrb[0].mxu0
    %v2942 = vadd.f32 %v2653, %v2941
    %v2943 = vpop.f32.mrb[0].mxu0
    %2944 = vmatprep.mubr.bf16.mxu0 %v1516
    %2945 = vmatmul.mubr.bf16.gmra.mrb[0].mxu0 %v1515
    %v2946 = vpop.f32.mrb[0].mxu0
    %v2947 = vadd.f32 %v2658, %v2946
    %v2948 = vpop.f32.mrb[0].mxu0
    %v2949 = vpop.f32.mrb[0].mxu0
    %v2950 = vadd.f32 %v2661, %v2949
    %v2951 = vpop.f32.mrb[0].mxu0
    %2952 = vmatprep.mubr.bf16.mxu0 %v1526
    %2953 = vmatmul.mubr.bf16.gmra.mrb[0].mxu0 %v1525
    %v2954 = vpop.f32.mrb[0].mxu0
    %v2955 = vadd.f32 %v2666, %v2954
    %v2956 = vpop.f32.mrb[0].mxu0
    %v2957 = vpop.f32.mrb[0].mxu0
    %v2958 = vadd.f32 %v2669, %v2957
    %v2959 = vpop.f32.mrb[0].mxu0
    %2960 = vmatprep.mubr.bf16.mxu0 %v1536
    %2961 = vmatmul.mubr.bf16.gmra.mrb[0].mxu0 %v1535
    %v2962 = vpop.f32.mrb[0].mxu0
    %v2963 = vadd.f32 %v2674, %v2962
    %v2964 = vpop.f32.mrb[0].mxu0
    %v2965 = vpop.f32.mrb[0].mxu0
    %v2966 = vadd.f32 %v2677, %v2965
    %v2967 = vpop.f32.mrb[0].mxu0
    %2968 = vmatprep.mubr.bf16.mxu0 %v1546
    %2969 = vmatmul.mubr.bf16.gmra.mrb[0].mxu0 %v1545
    %v2970 = vpop.f32.mrb[0].mxu0
    %v2971 = vadd.f32 %v2682, %v2970
    %v2972 = vpop.f32.mrb[0].mxu0
    %v2973 = vpop.f32.mrb[0].mxu0
    %v2974 = vadd.f32 %v2685, %v2973
    %v2975 = vpop.f32.mrb[0].mxu0
    %2976 = vmatprep.mubr.bf16.mxu0 %v1556
    %2977 = vmatmul.mubr.bf16.gmra.mrb[0].mxu0 %v1555
    %v2978 = vpop.f32.mrb[0].mxu0
    %v2979 = vadd.f32 %v2690, %v2978
    %v2980 = vpop.f32.mrb[0].mxu0
    %v2981 = vpop.f32.mrb[0].mxu0
    %v2982 = vadd.f32 %v2693, %v2981
    %v2983 = vpop.f32.mrb[0].mxu0
    %2984 = vmatprep.mubr.bf16.mxu0 %v1566
    %2985 = vmatmul.mubr.bf16.gmra.mrb[0].mxu0 %v1565
    %v2986 = vpop.f32.mrb[0].mxu0
    %v2987 = vadd.f32 %v2698, %v2986
    %v2988 = vpop.f32.mrb[0].mxu0
    %v2989 = vpop.f32.mrb[0].mxu0
    %v2990 = vadd.f32 %v2701, %v2989
    %v2991 = vpop.f32.mrb[0].mxu0
    %2992 = vmatprep.mubr.bf16.mxu0 %v1576
    %2993 = vmatmul.mubr.bf16.gmra.mrb[0].mxu0 %v1575
    %v2994 = vpop.f32.mrb[0].mxu0
    %v2995 = vadd.f32 %v2706, %v2994
    %v2996 = vpop.f32.mrb[0].mxu0
    %v2997 = vpop.f32.mrb[0].mxu0
    %v2998 = vadd.f32 %v2709, %v2997
    %v2999 = vpop.f32.mrb[0].mxu0
    %3000 = vmatprep.mubr.bf16.mxu0 %v1586
    %3001 = vmatmul.mubr.bf16.gmra.mrb[0].mxu0 %v1585
    %v3002 = vpop.f32.mrb[0].mxu0
    %v3003 = vadd.f32 %v2714, %v3002
    %v3004 = vpop.f32.mrb[0].mxu0
    %v3005 = vpop.f32.mrb[0].mxu0
    %v3006 = vadd.f32 %v2717, %v3005
    %v3007 = vpop.f32.mrb[0].mxu0
    %3008 = vmatprep.mubr.bf16.mxu0 %v1596
    %3009 = vmatmul.mubr.bf16.gmra.mrb[0].mxu0 %v1595
    %v3010 = vpop.f32.mrb[0].mxu0
    %v3011 = vadd.f32 %v2722, %v3010
    %v3012 = vpop.f32.mrb[0].mxu0
    %v3013 = vpop.f32.mrb[0].mxu0
    %v3014 = vadd.f32 %v2725, %v3013
    %v3015 = vpop.f32.mrb[0].mxu0
    %3016 = vmatprep.mubr.bf16.mxu0 %v1606
    %3017 = vmatmul.mubr.bf16.gmra.mrb[0].mxu0 %v1605
    %v3018 = vpop.f32.mrb[0].mxu0
    %v3019 = vadd.f32 %v2730, %v3018
    %v3020 = vpop.f32.mrb[0].mxu0
    %v3021 = vpop.f32.mrb[0].mxu0
    %v3022 = vadd.f32 %v2733, %v3021
    %v3023 = vpop.f32.mrb[0].mxu0
    %3024 = vmatprep.mubr.bf16.mxu0 %v1616
    %3025 = vmatmul.mubr.bf16.gmra.mrb[0].mxu0 %v1615
    %v3026 = vpop.f32.mrb[0].mxu0
    %v3027 = vadd.f32 %v2738, %v3026
    %v3028 = vpop.f32.mrb[0].mxu0
    %v3029 = vpop.f32.mrb[0].mxu0
    %v3030 = vadd.f32 %v2741, %v3029
    %v3031 = vpop.f32.mrb[0].mxu0
    %3032 = vmatprep.mubr.bf16.mxu0 %v1626
    %3033 = vmatmul.mubr.bf16.gmra.mrb[0].mxu0 %v1625
    %v3034 = vpop.f32.mrb[0].mxu0
    %v3035 = vadd.f32 %v2746, %v3034
    %v3036 = vpop.f32.mrb[0].mxu0
    %v3037 = vpop.f32.mrb[0].mxu0
    %v3038 = vadd.f32 %v2749, %v3037
    %v3039 = vpop.f32.mrb[0].mxu0
    %3040 = vmatprep.mubr.bf16.mxu0 %v1636
    %3041 = vmatmul.mubr.bf16.gmra.mrb[0].mxu0 %v1635
    %v3042 = vpop.f32.mrb[0].mxu0
    %v3043 = vadd.f32 %v2754, %v3042
    %v3044 = vpop.f32.mrb[0].mxu0
    %v3045 = vpop.f32.mrb[0].mxu0
    %v3046 = vadd.f32 %v2757, %v3045
    %v3047 = vpop.f32.mrb[0].mxu0
    %3048 = vmatprep.mubr.bf16.mxu0 %v1646
    %3049 = vmatmul.mubr.bf16.gmra.mrb[0].mxu0 %v1645
    %v3050 = vpop.f32.mrb[0].mxu0
    %v3051 = vadd.f32 %v2762, %v3050
    %v3052 = vpop.f32.mrb[0].mxu0
    %v3053 = vpop.f32.mrb[0].mxu0
    %v3054 = vadd.f32 %v2765, %v3053
    %v3055 = vpop.f32.mrb[0].mxu0
    %3056 = vmatprep.mubr.bf16.mxu0 %v1656
    %3057 = vmatmul.mubr.bf16.gmra.mrb[0].mxu0 %v1655
    %v3058 = vpop.f32.mrb[0].mxu0
    %v3059 = vadd.f32 %v2770, %v3058
    %v3060 = vpop.f32.mrb[0].mxu0
    %v3061 = vpop.f32.mrb[0].mxu0
    %v3062 = vadd.f32 %v2773, %v3061
    %v3063 = vpop.f32.mrb[0].mxu0
    %3064 = vmatprep.mubr.bf16.mxu0 %v1666
    %3065 = vmatmul.mubr.bf16.gmra.mrb[0].mxu0 %v1665
    %v3066 = vpop.f32.mrb[0].mxu0
    %v3067 = vadd.f32 %v2778, %v3066
    %v3068 = vpop.f32.mrb[0].mxu0
    %v3069 = vpop.f32.mrb[0].mxu0
    %v3070 = vadd.f32 %v2781, %v3069
    %v3071 = vpop.f32.mrb[0].mxu0
    %3072 = vmatprep.mubr.bf16.mxu0 %v1676
    %3073 = vmatmul.mubr.bf16.gmra.mrb[0].mxu0 %v1675
    %v3074 = vpop.f32.mrb[0].mxu0
    %v3075 = vadd.f32 %v2786, %v3074
    %v3076 = vpop.f32.mrb[0].mxu0
    %v3077 = vpop.f32.mrb[0].mxu0
    %v3078 = vadd.f32 %v2789, %v3077
    %v3079 = vpop.f32.mrb[0].mxu0
    %3080 = vmatprep.mubr.bf16.mxu0 %v1686
    %3081 = vmatmul.mubr.bf16.gmra.mrb[0].mxu0 %v1685
    %v3082 = vpop.f32.mrb[0].mxu0
    %v3083 = vadd.f32 %v2794, %v3082
    %v3084 = vpop.f32.mrb[0].mxu0
    %v3085 = vpop.f32.mrb[0].mxu0
    %v3086 = vadd.f32 %v2797, %v3085
    %v3087 = vpop.f32.mrb[0].mxu0
    %3088 = vmatprep.mubr.bf16.mxu0 %v1696
    %3089 = vmatmul.mubr.bf16.gmra.mrb[0].mxu0 %v1695
    %v3090 = vpop.f32.mrb[0].mxu0
    %v3091 = vadd.f32 %v2802, %v3090
    %v3092 = vpop.f32.mrb[0].mxu0
    %v3093 = vpop.f32.mrb[0].mxu0
    %v3094 = vadd.f32 %v2805, %v3093
    %v3095 = vpop.f32.mrb[0].mxu0
    %3096 = vmatprep.mubr.bf16.mxu0 %v1706
    %3097 = vmatmul.mubr.bf16.gmra.mrb[0].mxu0 %v1705
    %v3098 = vpop.f32.mrb[0].mxu0
    %v3099 = vadd.f32 %v2810, %v3098
    %v3100 = vpop.f32.mrb[0].mxu0
    %v3101 = vpop.f32.mrb[0].mxu0
    %v3102 = vadd.f32 %v2813, %v3101
    %v3103 = vpop.f32.mrb[0].mxu0
    %3104 = vmatprep.mubr.bf16.mxu0 %v1716
    %3105 = vmatmul.mubr.bf16.gmra.mrb[0].mxu0 %v1715
    %v3106 = vpop.f32.mrb[0].mxu0
    %v3107 = vadd.f32 %v2818, %v3106
    %v3108 = vpop.f32.mrb[0].mxu0
    %v3109 = vpop.f32.mrb[0].mxu0
    %v3110 = vadd.f32 %v2821, %v3109
    %v3111 = vpop.f32.mrb[0].mxu0
    %3112 = vmatprep.mubr.bf16.mxu0 %v1726
    %3113 = vmatmul.mubr.bf16.gmra.mrb[0].mxu0 %v1725
    %v3114 = vpop.f32.mrb[0].mxu0
    %v3115 = vadd.f32 %v2826, %v3114
    %v3116 = vpop.f32.mrb[0].mxu0
    %v3117 = vpop.f32.mrb[0].mxu0
    %v3118 = vadd.f32 %v2829, %v3117
    %v3119 = vpop.f32.mrb[0].mxu0
    %3120 = vmatprep.mubr.bf16.mxu0 %v1736
    %3121 = vmatmul.mubr.bf16.gmra.mrb[0].mxu0 %v1735
    %v3122 = vpop.f32.mrb[0].mxu0
    %v3123 = vadd.f32 %v2834, %v3122
    %v3124 = vpop.f32.mrb[0].mxu0
    %v3125 = vpop.f32.mrb[0].mxu0
    %v3126 = vadd.f32 %v2837, %v3125
    %v3127 = vpop.f32.mrb[0].mxu0
    %3128 = vmatprep.mubr.bf16.mxu0 %v1746
    %3129 = vmatmul.mubr.bf16.gmra.mrb[0].mxu0 %v1745
    %v3130 = vpop.f32.mrb[0].mxu0
    %v3131 = vadd.f32 %v2842, %v3130
    %v3132 = vpop.f32.mrb[0].mxu0
    %v3133 = vpop.f32.mrb[0].mxu0
    %v3134 = vadd.f32 %v2845, %v3133
    %v3135 = vpop.f32.mrb[0].mxu0
    %3136 = vmatprep.mubr.bf16.mxu0 %v1756
    %3137 = vmatmul.mubr.bf16.gmra.mrb[0].mxu0 %v1755
    %v3138 = vpop.f32.mrb[0].mxu0
    %v3139 = vadd.f32 %v2850, %v3138
    %v3140 = vpop.f32.mrb[0].mxu0
    %v3141 = vpop.f32.mrb[0].mxu0
    %v3142 = vadd.f32 %v2853, %v3141
    %v3143 = vpop.f32.mrb[0].mxu0
    %3144 = vmatprep.mubr.bf16.mxu0 %v1766
    %3145 = vmatmul.mubr.bf16.gmra.mrb[0].mxu0 %v1765
    %v3146 = vpop.f32.mrb[0].mxu0
    %v3147 = vadd.f32 %v2858, %v3146
    %v3148 = vpop.f32.mrb[0].mxu0
    %v3149 = vpop.f32.mrb[0].mxu0
    %v3150 = vadd.f32 %v2861, %v3149
    %v3151 = vpop.f32.mrb[0].mxu0
    %3152 = vmatprep.mubr.bf16.mxu0 %v1776
    %3153 = vmatmul.mubr.bf16.gmra.mrb[0].mxu0 %v1775
    %v3154 = vpop.f32.mrb[0].mxu0
    %v3155 = vadd.f32 %v2866, %v3154
    %v3156 = vpop.f32.mrb[0].mxu0
    %v3157 = vpop.f32.mrb[0].mxu0
    %v3158 = vadd.f32 %v2869, %v3157
    %v3159 = vpop.f32.mrb[0].mxu0
    %3160 = vdwg.mxu0
    %3161 = vmatprep.subr.bf16.mxu0 0
    %3162 = vmatpush1.bf16.msra.mxu0 %v2455
    %3163 = vmatprep.subr.bf16.mxu0 0
    %3164 = vmatpush1.bf16.msra.mxu0 %v2456
    %3165 = vmatprep.subr.bf16.mxu0 0
    %3166 = vmatpush1.bf16.msra.mxu0 %v2457
    %3167 = vmatprep.subr.bf16.mxu0 0
    %3168 = vmatpush1.bf16.msra.mxu0 %v2458
    %3169 = vmatprep.subr.bf16.mxu0 0
    %3170 = vmatpush1.bf16.msra.mxu0 %v2459
    %3171 = vmatprep.subr.bf16.mxu0 0
    %3172 = vmatpush1.bf16.msra.mxu0 %v2460
    %3173 = vmatprep.subr.bf16.mxu0 0
    %3174 = vmatpush1.bf16.msra.mxu0 %v2461
    %3175 = vmatprep.subr.bf16.mxu0 0
    %3176 = vmatpush1.bf16.msra.mxu0 %v2462
    %3177 = vmatprep.subr.bf16.mxu0 0
    %3178 = vmatpush1.bf16.msra.mxu0 %v2463
    %3179 = vmatprep.subr.bf16.mxu0 0
    %3180 = vmatpush1.bf16.msra.mxu0 %v2464
    %3181 = vmatprep.subr.bf16.mxu0 0
    %3182 = vmatpush1.bf16.msra.mxu0 %v2465
    %3183 = vmatprep.subr.bf16.mxu0 0
    %3184 = vmatpush1.bf16.msra.mxu0 %v2466
    %3185 = vmatprep.subr.bf16.mxu0 0
    %3186 = vmatpush1.bf16.msra.mxu0 %v2467
    %3187 = vmatprep.subr.bf16.mxu0 0
    %3188 = vmatpush1.bf16.msra.mxu0 %v2468
    %3189 = vmatprep.subr.bf16.mxu0 0
    %3190 = vmatpush1.bf16.msra.mxu0 %v2469
    %3191 = vmatprep.subr.bf16.mxu0 0
    %3192 = vmatpush1.bf16.msra.mxu0 %v2470
    %3193 = vmatprep.mubr.bf16.mxu0 %v1468
    %3194 = vmatmul.mubr.bf16.gmra.mrb[0].mxu0 %v1467
    %v3195 = vpop.f32.mrb[0].mxu0
    %v3196 = vadd.f32 %v2907, %v3195
    %v3197 = vpop.f32.mrb[0].mxu0
    %v3198 = vpop.f32.mrb[0].mxu0
    %v3199 = vadd.f32 %v2910, %v3198
    %v3200 = vpop.f32.mrb[0].mxu0
    %3201 = vmatprep.mubr.bf16.mxu0 %v1478
    %3202 = vmatmul.mubr.bf16.gmra.mrb[0].mxu0 %v1477
    %v3203 = vpop.f32.mrb[0].mxu0
    %v3204 = vadd.f32 %v2915, %v3203
    %v3205 = vpop.f32.mrb[0].mxu0
    %v3206 = vpop.f32.mrb[0].mxu0
    %v3207 = vadd.f32 %v2918, %v3206
    %v3208 = vpop.f32.mrb[0].mxu0
    %3209 = vmatprep.mubr.bf16.mxu0 %v1488
    %3210 = vmatmul.mubr.bf16.gmra.mrb[0].mxu0 %v1487
    %v3211 = vpop.f32.mrb[0].mxu0
    %v3212 = vadd.f32 %v2923, %v3211
    %v3213 = vpop.f32.mrb[0].mxu0
    %v3214 = vpop.f32.mrb[0].mxu0
    %v3215 = vadd.f32 %v2926, %v3214
    %v3216 = vpop.f32.mrb[0].mxu0
    %3217 = vmatprep.mubr.bf16.mxu0 %v1498
    %3218 = vmatmul.mubr.bf16.gmra.mrb[0].mxu0 %v1497
    %v3219 = vpop.f32.mrb[0].mxu0
    %v3220 = vadd.f32 %v2931, %v3219
    %v3221 = vpop.f32.mrb[0].mxu0
    %v3222 = vpop.f32.mrb[0].mxu0
    %v3223 = vadd.f32 %v2934, %v3222
    %v3224 = vpop.f32.mrb[0].mxu0
    %3225 = vmatprep.mubr.bf16.mxu0 %v1508
    %3226 = vmatmul.mubr.bf16.gmra.mrb[0].mxu0 %v1507
    %v3227 = vpop.f32.mrb[0].mxu0
    %v3228 = vadd.f32 %v2939, %v3227
    %v3229 = vpop.f32.mrb[0].mxu0
    %v3230 = vpop.f32.mrb[0].mxu0
    %v3231 = vadd.f32 %v2942, %v3230
    %v3232 = vpop.f32.mrb[0].mxu0
    %3233 = vmatprep.mubr.bf16.mxu0 %v1518
    %3234 = vmatmul.mubr.bf16.gmra.mrb[0].mxu0 %v1517
    %v3235 = vpop.f32.mrb[0].mxu0
    %v3236 = vadd.f32 %v2947, %v3235
    %v3237 = vpop.f32.mrb[0].mxu0
    %v3238 = vpop.f32.mrb[0].mxu0
    %v3239 = vadd.f32 %v2950, %v3238
    %v3240 = vpop.f32.mrb[0].mxu0
    %3241 = vmatprep.mubr.bf16.mxu0 %v1528
    %3242 = vmatmul.mubr.bf16.gmra.mrb[0].mxu0 %v1527
    %v3243 = vpop.f32.mrb[0].mxu0
    %v3244 = vadd.f32 %v2955, %v3243
    %v3245 = vpop.f32.mrb[0].mxu0
    %v3246 = vpop.f32.mrb[0].mxu0
    %v3247 = vadd.f32 %v2958, %v3246
    %v3248 = vpop.f32.mrb[0].mxu0
    %3249 = vmatprep.mubr.bf16.mxu0 %v1538
    %3250 = vmatmul.mubr.bf16.gmra.mrb[0].mxu0 %v1537
    %v3251 = vpop.f32.mrb[0].mxu0
    %v3252 = vadd.f32 %v2963, %v3251
    %v3253 = vpop.f32.mrb[0].mxu0
    %v3254 = vpop.f32.mrb[0].mxu0
    %v3255 = vadd.f32 %v2966, %v3254
    %v3256 = vpop.f32.mrb[0].mxu0
    %3257 = vmatprep.mubr.bf16.mxu0 %v1548
    %3258 = vmatmul.mubr.bf16.gmra.mrb[0].mxu0 %v1547
    %v3259 = vpop.f32.mrb[0].mxu0
    %v3260 = vadd.f32 %v2971, %v3259
    %v3261 = vpop.f32.mrb[0].mxu0
    %v3262 = vpop.f32.mrb[0].mxu0
    %v3263 = vadd.f32 %v2974, %v3262
    %v3264 = vpop.f32.mrb[0].mxu0
    %3265 = vmatprep.mubr.bf16.mxu0 %v1558
    %3266 = vmatmul.mubr.bf16.gmra.mrb[0].mxu0 %v1557
    %v3267 = vpop.f32.mrb[0].mxu0
    %v3268 = vadd.f32 %v2979, %v3267
    %v3269 = vpop.f32.mrb[0].mxu0
    %v3270 = vpop.f32.mrb[0].mxu0
    %v3271 = vadd.f32 %v2982, %v3270
    %v3272 = vpop.f32.mrb[0].mxu0
    %3273 = vmatprep.mubr.bf16.mxu0 %v1568
    %3274 = vmatmul.mubr.bf16.gmra.mrb[0].mxu0 %v1567
    %v3275 = vpop.f32.mrb[0].mxu0
    %v3276 = vadd.f32 %v2987, %v3275
    %v3277 = vpop.f32.mrb[0].mxu0
    %v3278 = vpop.f32.mrb[0].mxu0
    %v3279 = vadd.f32 %v2990, %v3278
    %v3280 = vpop.f32.mrb[0].mxu0
    %3281 = vmatprep.mubr.bf16.mxu0 %v1578
    %3282 = vmatmul.mubr.bf16.gmra.mrb[0].mxu0 %v1577
    %v3283 = vpop.f32.mrb[0].mxu0
    %v3284 = vadd.f32 %v2995, %v3283
    %v3285 = vpop.f32.mrb[0].mxu0
    %v3286 = vpop.f32.mrb[0].mxu0
    %v3287 = vadd.f32 %v2998, %v3286
    %v3288 = vpop.f32.mrb[0].mxu0
    %3289 = vmatprep.mubr.bf16.mxu0 %v1588
    %3290 = vmatmul.mubr.bf16.gmra.mrb[0].mxu0 %v1587
    %v3291 = vpop.f32.mrb[0].mxu0
    %v3292 = vadd.f32 %v3003, %v3291
    %v3293 = vpop.f32.mrb[0].mxu0
    %v3294 = vpop.f32.mrb[0].mxu0
    %v3295 = vadd.f32 %v3006, %v3294
    %v3296 = vpop.f32.mrb[0].mxu0
    %3297 = vmatprep.mubr.bf16.mxu0 %v1598
    %3298 = vmatmul.mubr.bf16.gmra.mrb[0].mxu0 %v1597
    %v3299 = vpop.f32.mrb[0].mxu0
    %v3300 = vadd.f32 %v3011, %v3299
    %v3301 = vpop.f32.mrb[0].mxu0
    %v3302 = vpop.f32.mrb[0].mxu0
    %v3303 = vadd.f32 %v3014, %v3302
    %v3304 = vpop.f32.mrb[0].mxu0
    %3305 = vmatprep.mubr.bf16.mxu0 %v1608
    %3306 = vmatmul.mubr.bf16.gmra.mrb[0].mxu0 %v1607
    %v3307 = vpop.f32.mrb[0].mxu0
    %v3308 = vadd.f32 %v3019, %v3307
    %v3309 = vpop.f32.mrb[0].mxu0
    %v3310 = vpop.f32.mrb[0].mxu0
    %v3311 = vadd.f32 %v3022, %v3310
    %v3312 = vpop.f32.mrb[0].mxu0
    %3313 = vmatprep.mubr.bf16.mxu0 %v1618
    %3314 = vmatmul.mubr.bf16.gmra.mrb[0].mxu0 %v1617
    %v3315 = vpop.f32.mrb[0].mxu0
    %v3316 = vadd.f32 %v3027, %v3315
    %v3317 = vpop.f32.mrb[0].mxu0
    %v3318 = vpop.f32.mrb[0].mxu0
    %v3319 = vadd.f32 %v3030, %v3318
    %v3320 = vpop.f32.mrb[0].mxu0
    %3321 = vmatprep.mubr.bf16.mxu0 %v1628
    %3322 = vmatmul.mubr.bf16.gmra.mrb[0].mxu0 %v1627
    %v3323 = vpop.f32.mrb[0].mxu0
    %v3324 = vadd.f32 %v3035, %v3323
    %v3325 = vpop.f32.mrb[0].mxu0
    %v3326 = vpop.f32.mrb[0].mxu0
    %v3327 = vadd.f32 %v3038, %v3326
    %v3328 = vpop.f32.mrb[0].mxu0
    %3329 = vmatprep.mubr.bf16.mxu0 %v1638
    %3330 = vmatmul.mubr.bf16.gmra.mrb[0].mxu0 %v1637
    %v3331 = vpop.f32.mrb[0].mxu0
    %v3332 = vadd.f32 %v3043, %v3331
    %v3333 = vpop.f32.mrb[0].mxu0
    %v3334 = vpop.f32.mrb[0].mxu0
    %v3335 = vadd.f32 %v3046, %v3334
    %v3336 = vpop.f32.mrb[0].mxu0
    %3337 = vmatprep.mubr.bf16.mxu0 %v1648
    %3338 = vmatmul.mubr.bf16.gmra.mrb[0].mxu0 %v1647
    %v3339 = vpop.f32.mrb[0].mxu0
    %v3340 = vadd.f32 %v3051, %v3339
    %v3341 = vpop.f32.mrb[0].mxu0
    %v3342 = vpop.f32.mrb[0].mxu0
    %v3343 = vadd.f32 %v3054, %v3342
    %v3344 = vpop.f32.mrb[0].mxu0
    %3345 = vmatprep.mubr.bf16.mxu0 %v1658
    %3346 = vmatmul.mubr.bf16.gmra.mrb[0].mxu0 %v1657
    %v3347 = vpop.f32.mrb[0].mxu0
    %v3348 = vadd.f32 %v3059, %v3347
    %v3349 = vpop.f32.mrb[0].mxu0
    %v3350 = vpop.f32.mrb[0].mxu0
    %v3351 = vadd.f32 %v3062, %v3350
    %v3352 = vpop.f32.mrb[0].mxu0
    %3353 = vmatprep.mubr.bf16.mxu0 %v1668
    %3354 = vmatmul.mubr.bf16.gmra.mrb[0].mxu0 %v1667
    %v3355 = vpop.f32.mrb[0].mxu0
    %v3356 = vadd.f32 %v3067, %v3355
    %v3357 = vpop.f32.mrb[0].mxu0
    %v3358 = vpop.f32.mrb[0].mxu0
    %v3359 = vadd.f32 %v3070, %v3358
    %v3360 = vpop.f32.mrb[0].mxu0
    %3361 = vmatprep.mubr.bf16.mxu0 %v1678
    %3362 = vmatmul.mubr.bf16.gmra.mrb[0].mxu0 %v1677
    %v3363 = vpop.f32.mrb[0].mxu0
    %v3364 = vadd.f32 %v3075, %v3363
    %v3365 = vpop.f32.mrb[0].mxu0
    %v3366 = vpop.f32.mrb[0].mxu0
    %v3367 = vadd.f32 %v3078, %v3366
    %v3368 = vpop.f32.mrb[0].mxu0
    %3369 = vmatprep.mubr.bf16.mxu0 %v1688
    %3370 = vmatmul.mubr.bf16.gmra.mrb[0].mxu0 %v1687
    %v3371 = vpop.f32.mrb[0].mxu0
    %v3372 = vadd.f32 %v3083, %v3371
    %v3373 = vpop.f32.mrb[0].mxu0
    %v3374 = vpop.f32.mrb[0].mxu0
    %v3375 = vadd.f32 %v3086, %v3374
    %v3376 = vpop.f32.mrb[0].mxu0
    %3377 = vmatprep.mubr.bf16.mxu0 %v1698
    %3378 = vmatmul.mubr.bf16.gmra.mrb[0].mxu0 %v1697
    %v3379 = vpop.f32.mrb[0].mxu0
    %v3380 = vadd.f32 %v3091, %v3379
    %v3381 = vpop.f32.mrb[0].mxu0
    %v3382 = vpop.f32.mrb[0].mxu0
    %v3383 = vadd.f32 %v3094, %v3382
    %v3384 = vpop.f32.mrb[0].mxu0
    %3385 = vmatprep.mubr.bf16.mxu0 %v1708
    %3386 = vmatmul.mubr.bf16.gmra.mrb[0].mxu0 %v1707
    %v3387 = vpop.f32.mrb[0].mxu0
    %v3388 = vadd.f32 %v3099, %v3387
    %v3389 = vpop.f32.mrb[0].mxu0
    %v3390 = vpop.f32.mrb[0].mxu0
    %v3391 = vadd.f32 %v3102, %v3390
    %v3392 = vpop.f32.mrb[0].mxu0
    %3393 = vmatprep.mubr.bf16.mxu0 %v1718
    %3394 = vmatmul.mubr.bf16.gmra.mrb[0].mxu0 %v1717
    %v3395 = vpop.f32.mrb[0].mxu0
    %v3396 = vadd.f32 %v3107, %v3395
    %v3397 = vpop.f32.mrb[0].mxu0
    %v3398 = vpop.f32.mrb[0].mxu0
    %v3399 = vadd.f32 %v3110, %v3398
    %v3400 = vpop.f32.mrb[0].mxu0
    %3401 = vmatprep.mubr.bf16.mxu0 %v1728
    %3402 = vmatmul.mubr.bf16.gmra.mrb[0].mxu0 %v1727
    %v3403 = vpop.f32.mrb[0].mxu0
    %v3404 = vadd.f32 %v3115, %v3403
    %v3405 = vpop.f32.mrb[0].mxu0
    %v3406 = vpop.f32.mrb[0].mxu0
    %v3407 = vadd.f32 %v3118, %v3406
    %v3408 = vpop.f32.mrb[0].mxu0
    %3409 = vmatprep.mubr.bf16.mxu0 %v1738
    %3410 = vmatmul.mubr.bf16.gmra.mrb[0].mxu0 %v1737
    %v3411 = vpop.f32.mrb[0].mxu0
    %v3412 = vadd.f32 %v3123, %v3411
    %v3413 = vpop.f32.mrb[0].mxu0
    %v3414 = vpop.f32.mrb[0].mxu0
    %v3415 = vadd.f32 %v3126, %v3414
    %v3416 = vpop.f32.mrb[0].mxu0
    %3417 = vmatprep.mubr.bf16.mxu0 %v1748
    %3418 = vmatmul.mubr.bf16.gmra.mrb[0].mxu0 %v1747
    %v3419 = vpop.f32.mrb[0].mxu0
    %v3420 = vadd.f32 %v3131, %v3419
    %v3421 = vpop.f32.mrb[0].mxu0
    %v3422 = vpop.f32.mrb[0].mxu0
    %v3423 = vadd.f32 %v3134, %v3422
    %v3424 = vpop.f32.mrb[0].mxu0
    %3425 = vmatprep.mubr.bf16.mxu0 %v1758
    %3426 = vmatmul.mubr.bf16.gmra.mrb[0].mxu0 %v1757
    %v3427 = vpop.f32.mrb[0].mxu0
    %v3428 = vadd.f32 %v3139, %v3427
    %v3429 = vpop.f32.mrb[0].mxu0
    %v3430 = vpop.f32.mrb[0].mxu0
    %v3431 = vadd.f32 %v3142, %v3430
    %v3432 = vpop.f32.mrb[0].mxu0
    %3433 = vmatprep.mubr.bf16.mxu0 %v1768
    %3434 = vmatmul.mubr.bf16.gmra.mrb[0].mxu0 %v1767
    %v3435 = vpop.f32.mrb[0].mxu0
    %v3436 = vadd.f32 %v3147, %v3435
    %v3437 = vpop.f32.mrb[0].mxu0
    %v3438 = vpop.f32.mrb[0].mxu0
    %v3439 = vadd.f32 %v3150, %v3438
    %v3440 = vpop.f32.mrb[0].mxu0
    %3441 = vmatprep.mubr.bf16.mxu0 %v1778
    %3442 = vmatmul.mubr.bf16.gmra.mrb[0].mxu0 %v1777
    %v3443 = vpop.f32.mrb[0].mxu0
    %v3444 = vadd.f32 %v3155, %v3443
    %v3445 = vpop.f32.mrb[0].mxu0
    %v3446 = vpop.f32.mrb[0].mxu0
    %v3447 = vadd.f32 %v3158, %v3446
    %v3448 = vpop.f32.mrb[0].mxu0
    %3449 = vdwg.mxu0
    %3450 = vmatprep.subr.bf16.mxu0 0
    %3451 = vmatpush1.bf16.msra.mxu0 %v2471
    %3452 = vmatprep.subr.bf16.mxu0 0
    %3453 = vmatpush1.bf16.msra.mxu0 %v2472
    %3454 = vmatprep.subr.bf16.mxu0 0
    %3455 = vmatpush1.bf16.msra.mxu0 %v2473
    %3456 = vmatprep.subr.bf16.mxu0 0
    %3457 = vmatpush1.bf16.msra.mxu0 %v2474
    %3458 = vmatprep.subr.bf16.mxu0 0
    %3459 = vmatpush1.bf16.msra.mxu0 %v2475
    %3460 = vmatprep.subr.bf16.mxu0 0
    %3461 = vmatpush1.bf16.msra.mxu0 %v2476
    %3462 = vmatprep.subr.bf16.mxu0 0
    %3463 = vmatpush1.bf16.msra.mxu0 %v2477
    %3464 = vmatprep.subr.bf16.mxu0 0
    %3465 = vmatpush1.bf16.msra.mxu0 %v2478
    %3466 = vmatprep.subr.bf16.mxu0 0
    %3467 = vmatpush1.bf16.msra.mxu0 %v2479
    %3468 = vmatprep.subr.bf16.mxu0 0
    %3469 = vmatpush1.bf16.msra.mxu0 %v2480
    %3470 = vmatprep.subr.bf16.mxu0 0
    %3471 = vmatpush1.bf16.msra.mxu0 %v2481
    %3472 = vmatprep.subr.bf16.mxu0 0
    %3473 = vmatpush1.bf16.msra.mxu0 %v2482
    %3474 = vmatprep.subr.bf16.mxu0 0
    %3475 = vmatpush1.bf16.msra.mxu0 %v2483
    %3476 = vmatprep.subr.bf16.mxu0 0
    %3477 = vmatpush1.bf16.msra.mxu0 %v2484
    %3478 = vmatprep.subr.bf16.mxu0 0
    %3479 = vmatpush1.bf16.msra.mxu0 %v2485
    %3480 = vmatprep.subr.bf16.mxu0 0
    %3481 = vmatpush1.bf16.msra.mxu0 %v2486
    %3482 = vmatprep.mubr.bf16.mxu0 %v1470
    %3483 = vmatmul.mubr.bf16.gmra.mrb[0].mxu0 %v1469
    %v3484 = vpop.f32.mrb[0].mxu0
    %v3485 = vadd.f32 %v3196, %v3484
    %v3486 = vpop.f32.mrb[0].mxu0
    %v3487 = vpop.f32.mrb[0].mxu0
    %v3488 = vadd.f32 %v3199, %v3487
    %v3489 = vpop.f32.mrb[0].mxu0
    %3490 = vmatprep.mubr.bf16.mxu0 %v1480
    %3491 = vmatmul.mubr.bf16.gmra.mrb[0].mxu0 %v1479
    %v3492 = vpop.f32.mrb[0].mxu0
    %v3493 = vadd.f32 %v3204, %v3492
    %v3494 = vpop.f32.mrb[0].mxu0
    %v3495 = vpop.f32.mrb[0].mxu0
    %v3496 = vadd.f32 %v3207, %v3495
    %v3497 = vpop.f32.mrb[0].mxu0
    %3498 = vmatprep.mubr.bf16.mxu0 %v1490
    %3499 = vmatmul.mubr.bf16.gmra.mrb[0].mxu0 %v1489
    %v3500 = vpop.f32.mrb[0].mxu0
    %v3501 = vadd.f32 %v3212, %v3500
    %v3502 = vpop.f32.mrb[0].mxu0
    %v3503 = vpop.f32.mrb[0].mxu0
    %v3504 = vadd.f32 %v3215, %v3503
    %v3505 = vpop.f32.mrb[0].mxu0
    %3506 = vmatprep.mubr.bf16.mxu0 %v1500
    %3507 = vmatmul.mubr.bf16.gmra.mrb[0].mxu0 %v1499
    %v3508 = vpop.f32.mrb[0].mxu0
    %v3509 = vadd.f32 %v3220, %v3508
    %v3510 = vpop.f32.mrb[0].mxu0
    %v3511 = vpop.f32.mrb[0].mxu0
    %v3512 = vadd.f32 %v3223, %v3511
    %v3513 = vpop.f32.mrb[0].mxu0
    %3514 = vmatprep.mubr.bf16.mxu0 %v1510
    %3515 = vmatmul.mubr.bf16.gmra.mrb[0].mxu0 %v1509
    %v3516 = vpop.f32.mrb[0].mxu0
    %v3517 = vadd.f32 %v3228, %v3516
    %v3518 = vpop.f32.mrb[0].mxu0
    %v3519 = vpop.f32.mrb[0].mxu0
    %v3520 = vadd.f32 %v3231, %v3519
    %v3521 = vpop.f32.mrb[0].mxu0
    %3522 = vmatprep.mubr.bf16.mxu0 %v1520
    %3523 = vmatmul.mubr.bf16.gmra.mrb[0].mxu0 %v1519
    %v3524 = vpop.f32.mrb[0].mxu0
    %v3525 = vadd.f32 %v3236, %v3524
    %v3526 = vpop.f32.mrb[0].mxu0
    %v3527 = vpop.f32.mrb[0].mxu0
    %v3528 = vadd.f32 %v3239, %v3527
    %v3529 = vpop.f32.mrb[0].mxu0
    %3530 = vmatprep.mubr.bf16.mxu0 %v1530
    %3531 = vmatmul.mubr.bf16.gmra.mrb[0].mxu0 %v1529
    %v3532 = vpop.f32.mrb[0].mxu0
    %v3533 = vadd.f32 %v3244, %v3532
    %v3534 = vpop.f32.mrb[0].mxu0
    %v3535 = vpop.f32.mrb[0].mxu0
    %v3536 = vadd.f32 %v3247, %v3535
    %v3537 = vpop.f32.mrb[0].mxu0
    %3538 = vmatprep.mubr.bf16.mxu0 %v1540
    %3539 = vmatmul.mubr.bf16.gmra.mrb[0].mxu0 %v1539
    %v3540 = vpop.f32.mrb[0].mxu0
    %v3541 = vadd.f32 %v3252, %v3540
    %v3542 = vpop.f32.mrb[0].mxu0
    %v3543 = vpop.f32.mrb[0].mxu0
    %v3544 = vadd.f32 %v3255, %v3543
    %v3545 = vpop.f32.mrb[0].mxu0
    %3546 = vmatprep.mubr.bf16.mxu0 %v1550
    %3547 = vmatmul.mubr.bf16.gmra.mrb[0].mxu0 %v1549
    %v3548 = vpop.f32.mrb[0].mxu0
    %v3549 = vadd.f32 %v3260, %v3548
    %v3550 = vpop.f32.mrb[0].mxu0
    %v3551 = vpop.f32.mrb[0].mxu0
    %v3552 = vadd.f32 %v3263, %v3551
    %v3553 = vpop.f32.mrb[0].mxu0
    %3554 = vmatprep.mubr.bf16.mxu0 %v1560
    %3555 = vmatmul.mubr.bf16.gmra.mrb[0].mxu0 %v1559
    %v3556 = vpop.f32.mrb[0].mxu0
    %v3557 = vadd.f32 %v3268, %v3556
    %v3558 = vpop.f32.mrb[0].mxu0
    %v3559 = vpop.f32.mrb[0].mxu0
    %v3560 = vadd.f32 %v3271, %v3559
    %v3561 = vpop.f32.mrb[0].mxu0
    %3562 = vmatprep.mubr.bf16.mxu0 %v1570
    %3563 = vmatmul.mubr.bf16.gmra.mrb[0].mxu0 %v1569
    %v3564 = vpop.f32.mrb[0].mxu0
    %v3565 = vadd.f32 %v3276, %v3564
    %v3566 = vpop.f32.mrb[0].mxu0
    %v3567 = vpop.f32.mrb[0].mxu0
    %v3568 = vadd.f32 %v3279, %v3567
    %v3569 = vpop.f32.mrb[0].mxu0
    %3570 = vmatprep.mubr.bf16.mxu0 %v1580
    %3571 = vmatmul.mubr.bf16.gmra.mrb[0].mxu0 %v1579
    %v3572 = vpop.f32.mrb[0].mxu0
    %v3573 = vadd.f32 %v3284, %v3572
    %v3574 = vpop.f32.mrb[0].mxu0
    %v3575 = vpop.f32.mrb[0].mxu0
    %v3576 = vadd.f32 %v3287, %v3575
    %v3577 = vpop.f32.mrb[0].mxu0
    %3578 = vmatprep.mubr.bf16.mxu0 %v1590
    %3579 = vmatmul.mubr.bf16.gmra.mrb[0].mxu0 %v1589
    %v3580 = vpop.f32.mrb[0].mxu0
    %v3581 = vadd.f32 %v3292, %v3580
    %v3582 = vpop.f32.mrb[0].mxu0
    %v3583 = vpop.f32.mrb[0].mxu0
    %v3584 = vadd.f32 %v3295, %v3583
    %v3585 = vpop.f32.mrb[0].mxu0
    %3586 = vmatprep.mubr.bf16.mxu0 %v1600
    %3587 = vmatmul.mubr.bf16.gmra.mrb[0].mxu0 %v1599
    %v3588 = vpop.f32.mrb[0].mxu0
    %v3589 = vadd.f32 %v3300, %v3588
    %v3590 = vpop.f32.mrb[0].mxu0
    %v3591 = vpop.f32.mrb[0].mxu0
    %v3592 = vadd.f32 %v3303, %v3591
    %v3593 = vpop.f32.mrb[0].mxu0
    %3594 = vmatprep.mubr.bf16.mxu0 %v1610
    %3595 = vmatmul.mubr.bf16.gmra.mrb[0].mxu0 %v1609
    %v3596 = vpop.f32.mrb[0].mxu0
    %v3597 = vadd.f32 %v3308, %v3596
    %v3598 = vpop.f32.mrb[0].mxu0
    %v3599 = vpop.f32.mrb[0].mxu0
    %v3600 = vadd.f32 %v3311, %v3599
    %v3601 = vpop.f32.mrb[0].mxu0
    %3602 = vmatprep.mubr.bf16.mxu0 %v1620
    %3603 = vmatmul.mubr.bf16.gmra.mrb[0].mxu0 %v1619
    %v3604 = vpop.f32.mrb[0].mxu0
    %v3605 = vadd.f32 %v3316, %v3604
    %v3606 = vpop.f32.mrb[0].mxu0
    %v3607 = vpop.f32.mrb[0].mxu0
    %v3608 = vadd.f32 %v3319, %v3607
    %v3609 = vpop.f32.mrb[0].mxu0
    %3610 = vmatprep.mubr.bf16.mxu0 %v1630
    %3611 = vmatmul.mubr.bf16.gmra.mrb[0].mxu0 %v1629
    %v3612 = vpop.f32.mrb[0].mxu0
    %v3613 = vadd.f32 %v3324, %v3612
    %v3614 = vpop.f32.mrb[0].mxu0
    %v3615 = vpop.f32.mrb[0].mxu0
    %v3616 = vadd.f32 %v3327, %v3615
    %v3617 = vpop.f32.mrb[0].mxu0
    %3618 = vmatprep.mubr.bf16.mxu0 %v1640
    %3619 = vmatmul.mubr.bf16.gmra.mrb[0].mxu0 %v1639
    %v3620 = vpop.f32.mrb[0].mxu0
    %v3621 = vadd.f32 %v3332, %v3620
    %v3622 = vpop.f32.mrb[0].mxu0
    %v3623 = vpop.f32.mrb[0].mxu0
    %v3624 = vadd.f32 %v3335, %v3623
    %v3625 = vpop.f32.mrb[0].mxu0
    %3626 = vmatprep.mubr.bf16.mxu0 %v1650
    %3627 = vmatmul.mubr.bf16.gmra.mrb[0].mxu0 %v1649
    %v3628 = vpop.f32.mrb[0].mxu0
    %v3629 = vadd.f32 %v3340, %v3628
    %v3630 = vpop.f32.mrb[0].mxu0
    %v3631 = vpop.f32.mrb[0].mxu0
    %v3632 = vadd.f32 %v3343, %v3631
    %v3633 = vpop.f32.mrb[0].mxu0
    %3634 = vmatprep.mubr.bf16.mxu0 %v1660
    %3635 = vmatmul.mubr.bf16.gmra.mrb[0].mxu0 %v1659
    %v3636 = vpop.f32.mrb[0].mxu0
    %v3637 = vadd.f32 %v3348, %v3636
    %v3638 = vpop.f32.mrb[0].mxu0
    %v3639 = vpop.f32.mrb[0].mxu0
    %v3640 = vadd.f32 %v3351, %v3639
    %v3641 = vpop.f32.mrb[0].mxu0
    %3642 = vmatprep.mubr.bf16.mxu0 %v1670
    %3643 = vmatmul.mubr.bf16.gmra.mrb[0].mxu0 %v1669
    %v3644 = vpop.f32.mrb[0].mxu0
    %v3645 = vadd.f32 %v3356, %v3644
    %v3646 = vpop.f32.mrb[0].mxu0
    %v3647 = vpop.f32.mrb[0].mxu0
    %v3648 = vadd.f32 %v3359, %v3647
    %v3649 = vpop.f32.mrb[0].mxu0
    %3650 = vmatprep.mubr.bf16.mxu0 %v1680
    %3651 = vmatmul.mubr.bf16.gmra.mrb[0].mxu0 %v1679
    %v3652 = vpop.f32.mrb[0].mxu0
    %v3653 = vadd.f32 %v3364, %v3652
    %v3654 = vpop.f32.mrb[0].mxu0
    %v3655 = vpop.f32.mrb[0].mxu0
    %v3656 = vadd.f32 %v3367, %v3655
    %v3657 = vpop.f32.mrb[0].mxu0
    %3658 = vmatprep.mubr.bf16.mxu0 %v1690
    %3659 = vmatmul.mubr.bf16.gmra.mrb[0].mxu0 %v1689
    %v3660 = vpop.f32.mrb[0].mxu0
    %v3661 = vadd.f32 %v3372, %v3660
    %v3662 = vpop.f32.mrb[0].mxu0
    %v3663 = vpop.f32.mrb[0].mxu0
    %v3664 = vadd.f32 %v3375, %v3663
    %v3665 = vpop.f32.mrb[0].mxu0
    %3666 = vmatprep.mubr.bf16.mxu0 %v1700
    %3667 = vmatmul.mubr.bf16.gmra.mrb[0].mxu0 %v1699
    %v3668 = vpop.f32.mrb[0].mxu0
    %v3669 = vadd.f32 %v3380, %v3668
    %v3670 = vpop.f32.mrb[0].mxu0
    %v3671 = vpop.f32.mrb[0].mxu0
    %v3672 = vadd.f32 %v3383, %v3671
    %v3673 = vpop.f32.mrb[0].mxu0
    %3674 = vmatprep.mubr.bf16.mxu0 %v1710
    %3675 = vmatmul.mubr.bf16.gmra.mrb[0].mxu0 %v1709
    %v3676 = vpop.f32.mrb[0].mxu0
    %v3677 = vadd.f32 %v3388, %v3676
    %v3678 = vpop.f32.mrb[0].mxu0
    %v3679 = vpop.f32.mrb[0].mxu0
    %v3680 = vadd.f32 %v3391, %v3679
    %v3681 = vpop.f32.mrb[0].mxu0
    %3682 = vmatprep.mubr.bf16.mxu0 %v1720
    %3683 = vmatmul.mubr.bf16.gmra.mrb[0].mxu0 %v1719
    %v3684 = vpop.f32.mrb[0].mxu0
    %v3685 = vadd.f32 %v3396, %v3684
    %v3686 = vpop.f32.mrb[0].mxu0
    %v3687 = vpop.f32.mrb[0].mxu0
    %v3688 = vadd.f32 %v3399, %v3687
    %v3689 = vpop.f32.mrb[0].mxu0
    %3690 = vmatprep.mubr.bf16.mxu0 %v1730
    %3691 = vmatmul.mubr.bf16.gmra.mrb[0].mxu0 %v1729
    %v3692 = vpop.f32.mrb[0].mxu0
    %v3693 = vadd.f32 %v3404, %v3692
    %v3694 = vpop.f32.mrb[0].mxu0
    %v3695 = vpop.f32.mrb[0].mxu0
    %v3696 = vadd.f32 %v3407, %v3695
    %v3697 = vpop.f32.mrb[0].mxu0
    %3698 = vmatprep.mubr.bf16.mxu0 %v1740
    %3699 = vmatmul.mubr.bf16.gmra.mrb[0].mxu0 %v1739
    %v3700 = vpop.f32.mrb[0].mxu0
    %v3701 = vadd.f32 %v3412, %v3700
    %v3702 = vpop.f32.mrb[0].mxu0
    %v3703 = vpop.f32.mrb[0].mxu0
    %v3704 = vadd.f32 %v3415, %v3703
    %v3705 = vpop.f32.mrb[0].mxu0
    %3706 = vmatprep.mubr.bf16.mxu0 %v1750
    %3707 = vmatmul.mubr.bf16.gmra.mrb[0].mxu0 %v1749
    %v3708 = vpop.f32.mrb[0].mxu0
    %v3709 = vadd.f32 %v3420, %v3708
    %v3710 = vpop.f32.mrb[0].mxu0
    %v3711 = vpop.f32.mrb[0].mxu0
    %v3712 = vadd.f32 %v3423, %v3711
    %v3713 = vpop.f32.mrb[0].mxu0
    %3714 = vmatprep.mubr.bf16.mxu0 %v1760
    %3715 = vmatmul.mubr.bf16.gmra.mrb[0].mxu0 %v1759
    %v3716 = vpop.f32.mrb[0].mxu0
    %v3717 = vadd.f32 %v3428, %v3716
    %v3718 = vpop.f32.mrb[0].mxu0
    %v3719 = vpop.f32.mrb[0].mxu0
    %v3720 = vadd.f32 %v3431, %v3719
    %v3721 = vpop.f32.mrb[0].mxu0
    %3722 = vmatprep.mubr.bf16.mxu0 %v1770
    %3723 = vmatmul.mubr.bf16.gmra.mrb[0].mxu0 %v1769
    %v3724 = vpop.f32.mrb[0].mxu0
    %v3725 = vadd.f32 %v3436, %v3724
    %v3726 = vpop.f32.mrb[0].mxu0
    %v3727 = vpop.f32.mrb[0].mxu0
    %v3728 = vadd.f32 %v3439, %v3727
    %v3729 = vpop.f32.mrb[0].mxu0
    %3730 = vmatprep.mubr.bf16.mxu0 %v1780
    %3731 = vmatmul.mubr.bf16.gmra.mrb[0].mxu0 %v1779
    %v3732 = vpop.f32.mrb[0].mxu0
    %v3733 = vadd.f32 %v3444, %v3732
    %v3734 = vpop.f32.mrb[0].mxu0
    %v3735 = vpop.f32.mrb[0].mxu0
    %v3736 = vadd.f32 %v3447, %v3735
    %v3737 = vpop.f32.mrb[0].mxu0
    %3738 = vdwg.mxu0
    %3739 = vmatprep.subr.bf16.mxu0 0
    %3740 = vmatpush1.bf16.msra.mxu0 %v2487
    %3741 = vmatprep.subr.bf16.mxu0 0
    %3742 = vmatpush1.bf16.msra.mxu0 %v2488
    %3743 = vmatprep.subr.bf16.mxu0 0
    %3744 = vmatpush1.bf16.msra.mxu0 %v2489
    %3745 = vmatprep.subr.bf16.mxu0 0
    %3746 = vmatpush1.bf16.msra.mxu0 %v2490
    %3747 = vmatprep.subr.bf16.mxu0 0
    %3748 = vmatpush1.bf16.msra.mxu0 %v2491
    %3749 = vmatprep.subr.bf16.mxu0 0
    %3750 = vmatpush1.bf16.msra.mxu0 %v2492
    %3751 = vmatprep.subr.bf16.mxu0 0
    %3752 = vmatpush1.bf16.msra.mxu0 %v2493
    %3753 = vmatprep.subr.bf16.mxu0 0
    %3754 = vmatpush1.bf16.msra.mxu0 %v2494
    %3755 = vmatprep.subr.bf16.mxu0 0
    %3756 = vmatpush1.bf16.msra.mxu0 %v2495
    %3757 = vmatprep.subr.bf16.mxu0 0
    %3758 = vmatpush1.bf16.msra.mxu0 %v2496
    %3759 = vmatprep.subr.bf16.mxu0 0
    %3760 = vmatpush1.bf16.msra.mxu0 %v2497
    %3761 = vmatprep.subr.bf16.mxu0 0
    %3762 = vmatpush1.bf16.msra.mxu0 %v2498
    %3763 = vmatprep.subr.bf16.mxu0 0
    %3764 = vmatpush1.bf16.msra.mxu0 %v2499
    %3765 = vmatprep.subr.bf16.mxu0 0
    %3766 = vmatpush1.bf16.msra.mxu0 %v2500
    %3767 = vmatprep.subr.bf16.mxu0 0
    %3768 = vmatpush1.bf16.msra.mxu0 %v2501
    %3769 = vmatprep.subr.bf16.mxu0 0
    %3770 = vmatpush1.bf16.msra.mxu0 %v2502
    %3771 = vmatprep.mubr.bf16.mxu0 %v1472
    %3772 = vmatmul.mubr.bf16.gmra.mrb[0].mxu0 %v1471
    %v3773 = vpop.f32.mrb[0].mxu0
    %v3774 = vadd.f32 %v3485, %v3773
    %v3775 = vpop.f32.mrb[0].mxu0
    %v3776 = vpop.f32.mrb[0].mxu0
    %v3777 = vadd.f32 %v3488, %v3776
    %v3778 = vpop.f32.mrb[0].mxu0
    %3779 = vmatprep.mubr.bf16.mxu0 %v1482
    %3780 = vmatmul.mubr.bf16.gmra.mrb[0].mxu0 %v1481
    %v3781 = vpop.f32.mrb[0].mxu0
    %v3782 = vadd.f32 %v3493, %v3781
    %v3783 = vpop.f32.mrb[0].mxu0
    %v3784 = vpop.f32.mrb[0].mxu0
    %v3785 = vadd.f32 %v3496, %v3784
    %v3786 = vpop.f32.mrb[0].mxu0
    %3787 = vmatprep.mubr.bf16.mxu0 %v1492
    %3788 = vmatmul.mubr.bf16.gmra.mrb[0].mxu0 %v1491
    %v3789 = vpop.f32.mrb[0].mxu0
    %v3790 = vadd.f32 %v3501, %v3789
    %v3791 = vpop.f32.mrb[0].mxu0
    %v3792 = vpop.f32.mrb[0].mxu0
    %v3793 = vadd.f32 %v3504, %v3792
    %v3794 = vpop.f32.mrb[0].mxu0
    %3795 = vmatprep.mubr.bf16.mxu0 %v1502
    %3796 = vmatmul.mubr.bf16.gmra.mrb[0].mxu0 %v1501
    %v3797 = vpop.f32.mrb[0].mxu0
    %v3798 = vadd.f32 %v3509, %v3797
    %v3799 = vpop.f32.mrb[0].mxu0
    %v3800 = vpop.f32.mrb[0].mxu0
    %v3801 = vadd.f32 %v3512, %v3800
    %v3802 = vpop.f32.mrb[0].mxu0
    %3803 = vmatprep.mubr.bf16.mxu0 %v1512
    %3804 = vmatmul.mubr.bf16.gmra.mrb[0].mxu0 %v1511
    %v3805 = vpop.f32.mrb[0].mxu0
    %v3806 = vadd.f32 %v3517, %v3805
    %v3807 = vpop.f32.mrb[0].mxu0
    %v3808 = vpop.f32.mrb[0].mxu0
    %v3809 = vadd.f32 %v3520, %v3808
    %v3810 = vpop.f32.mrb[0].mxu0
    %3811 = vmatprep.mubr.bf16.mxu0 %v1522
    %3812 = vmatmul.mubr.bf16.gmra.mrb[0].mxu0 %v1521
    %v3813 = vpop.f32.mrb[0].mxu0
    %v3814 = vadd.f32 %v3525, %v3813
    %v3815 = vpop.f32.mrb[0].mxu0
    %v3816 = vpop.f32.mrb[0].mxu0
    %v3817 = vadd.f32 %v3528, %v3816
    %v3818 = vpop.f32.mrb[0].mxu0
    %3819 = vmatprep.mubr.bf16.mxu0 %v1532
    %3820 = vmatmul.mubr.bf16.gmra.mrb[0].mxu0 %v1531
    %v3821 = vpop.f32.mrb[0].mxu0
    %v3822 = vadd.f32 %v3533, %v3821
    %v3823 = vpop.f32.mrb[0].mxu0
    %v3824 = vpop.f32.mrb[0].mxu0
    %v3825 = vadd.f32 %v3536, %v3824
    %v3826 = vpop.f32.mrb[0].mxu0
    %3827 = vmatprep.mubr.bf16.mxu0 %v1542
    %3828 = vmatmul.mubr.bf16.gmra.mrb[0].mxu0 %v1541
    %v3829 = vpop.f32.mrb[0].mxu0
    %v3830 = vadd.f32 %v3541, %v3829
    %v3831 = vpop.f32.mrb[0].mxu0
    %v3832 = vpop.f32.mrb[0].mxu0
    %v3833 = vadd.f32 %v3544, %v3832
    %v3834 = vpop.f32.mrb[0].mxu0
    %3835 = vmatprep.mubr.bf16.mxu0 %v1552
    %3836 = vmatmul.mubr.bf16.gmra.mrb[0].mxu0 %v1551
    %v3837 = vpop.f32.mrb[0].mxu0
    %v3838 = vadd.f32 %v3549, %v3837
    %v3839 = vpop.f32.mrb[0].mxu0
    %v3840 = vpop.f32.mrb[0].mxu0
    %v3841 = vadd.f32 %v3552, %v3840
    %v3842 = vpop.f32.mrb[0].mxu0
    %3843 = vmatprep.mubr.bf16.mxu0 %v1562
    %3844 = vmatmul.mubr.bf16.gmra.mrb[0].mxu0 %v1561
    %v3845 = vpop.f32.mrb[0].mxu0
    %v3846 = vadd.f32 %v3557, %v3845
    %v3847 = vpop.f32.mrb[0].mxu0
    %v3848 = vpop.f32.mrb[0].mxu0
    %v3849 = vadd.f32 %v3560, %v3848
    %v3850 = vpop.f32.mrb[0].mxu0
    %3851 = vmatprep.mubr.bf16.mxu0 %v1572
    %3852 = vmatmul.mubr.bf16.gmra.mrb[0].mxu0 %v1571
    %v3853 = vpop.f32.mrb[0].mxu0
    %v3854 = vadd.f32 %v3565, %v3853
    %v3855 = vpop.f32.mrb[0].mxu0
    %v3856 = vpop.f32.mrb[0].mxu0
    %v3857 = vadd.f32 %v3568, %v3856
    %v3858 = vpop.f32.mrb[0].mxu0
    %3859 = vmatprep.mubr.bf16.mxu0 %v1582
    %3860 = vmatmul.mubr.bf16.gmra.mrb[0].mxu0 %v1581
    %v3861 = vpop.f32.mrb[0].mxu0
    %v3862 = vadd.f32 %v3573, %v3861
    %v3863 = vpop.f32.mrb[0].mxu0
    %v3864 = vpop.f32.mrb[0].mxu0
    %v3865 = vadd.f32 %v3576, %v3864
    %v3866 = vpop.f32.mrb[0].mxu0
    %3867 = vmatprep.mubr.bf16.mxu0 %v1592
    %3868 = vmatmul.mubr.bf16.gmra.mrb[0].mxu0 %v1591
    %v3869 = vpop.f32.mrb[0].mxu0
    %v3870 = vadd.f32 %v3581, %v3869
    %v3871 = vpop.f32.mrb[0].mxu0
    %v3872 = vpop.f32.mrb[0].mxu0
    %v3873 = vadd.f32 %v3584, %v3872
    %v3874 = vpop.f32.mrb[0].mxu0
    %3875 = vmatprep.mubr.bf16.mxu0 %v1602
    %3876 = vmatmul.mubr.bf16.gmra.mrb[0].mxu0 %v1601
    %v3877 = vpop.f32.mrb[0].mxu0
    %v3878 = vadd.f32 %v3589, %v3877
    %v3879 = vpop.f32.mrb[0].mxu0
    %v3880 = vpop.f32.mrb[0].mxu0
    %v3881 = vadd.f32 %v3592, %v3880
    %v3882 = vpop.f32.mrb[0].mxu0
    %3883 = vmatprep.mubr.bf16.mxu0 %v1612
    %3884 = vmatmul.mubr.bf16.gmra.mrb[0].mxu0 %v1611
    %v3885 = vpop.f32.mrb[0].mxu0
    %v3886 = vadd.f32 %v3597, %v3885
    %v3887 = vpop.f32.mrb[0].mxu0
    %v3888 = vpop.f32.mrb[0].mxu0
    %v3889 = vadd.f32 %v3600, %v3888
    %v3890 = vpop.f32.mrb[0].mxu0
    %3891 = vmatprep.mubr.bf16.mxu0 %v1622
    %3892 = vmatmul.mubr.bf16.gmra.mrb[0].mxu0 %v1621
    %v3893 = vpop.f32.mrb[0].mxu0
    %v3894 = vadd.f32 %v3605, %v3893
    %v3895 = vpop.f32.mrb[0].mxu0
    %v3896 = vpop.f32.mrb[0].mxu0
    %v3897 = vadd.f32 %v3608, %v3896
    %v3898 = vpop.f32.mrb[0].mxu0
    %3899 = vmatprep.mubr.bf16.mxu0 %v1632
    %3900 = vmatmul.mubr.bf16.gmra.mrb[0].mxu0 %v1631
    %v3901 = vpop.f32.mrb[0].mxu0
    %v3902 = vadd.f32 %v3613, %v3901
    %v3903 = vpop.f32.mrb[0].mxu0
    %v3904 = vpop.f32.mrb[0].mxu0
    %v3905 = vadd.f32 %v3616, %v3904
    %v3906 = vpop.f32.mrb[0].mxu0
    %3907 = vmatprep.mubr.bf16.mxu0 %v1642
    %3908 = vmatmul.mubr.bf16.gmra.mrb[0].mxu0 %v1641
    %v3909 = vpop.f32.mrb[0].mxu0
    %v3910 = vadd.f32 %v3621, %v3909
    %v3911 = vpop.f32.mrb[0].mxu0
    %v3912 = vpop.f32.mrb[0].mxu0
    %v3913 = vadd.f32 %v3624, %v3912
    %v3914 = vpop.f32.mrb[0].mxu0
    %3915 = vmatprep.mubr.bf16.mxu0 %v1652
    %3916 = vmatmul.mubr.bf16.gmra.mrb[0].mxu0 %v1651
    %v3917 = vpop.f32.mrb[0].mxu0
    %v3918 = vadd.f32 %v3629, %v3917
    %v3919 = vpop.f32.mrb[0].mxu0
    %v3920 = vpop.f32.mrb[0].mxu0
    %v3921 = vadd.f32 %v3632, %v3920
    %v3922 = vpop.f32.mrb[0].mxu0
    %3923 = vmatprep.mubr.bf16.mxu0 %v1662
    %3924 = vmatmul.mubr.bf16.gmra.mrb[0].mxu0 %v1661
    %v3925 = vpop.f32.mrb[0].mxu0
    %v3926 = vadd.f32 %v3637, %v3925
    %v3927 = vpop.f32.mrb[0].mxu0
    %v3928 = vpop.f32.mrb[0].mxu0
    %v3929 = vadd.f32 %v3640, %v3928
    %v3930 = vpop.f32.mrb[0].mxu0
    %3931 = vmatprep.mubr.bf16.mxu0 %v1672
    %3932 = vmatmul.mubr.bf16.gmra.mrb[0].mxu0 %v1671
    %v3933 = vpop.f32.mrb[0].mxu0
    %v3934 = vadd.f32 %v3645, %v3933
    %v3935 = vpop.f32.mrb[0].mxu0
    %v3936 = vpop.f32.mrb[0].mxu0
    %v3937 = vadd.f32 %v3648, %v3936
    %v3938 = vpop.f32.mrb[0].mxu0
    %3939 = vmatprep.mubr.bf16.mxu0 %v1682
    %3940 = vmatmul.mubr.bf16.gmra.mrb[0].mxu0 %v1681
    %v3941 = vpop.f32.mrb[0].mxu0
    %v3942 = vadd.f32 %v3653, %v3941
    %v3943 = vpop.f32.mrb[0].mxu0
    %v3944 = vpop.f32.mrb[0].mxu0
    %v3945 = vadd.f32 %v3656, %v3944
    %v3946 = vpop.f32.mrb[0].mxu0
    %3947 = vmatprep.mubr.bf16.mxu0 %v1692
    %3948 = vmatmul.mubr.bf16.gmra.mrb[0].mxu0 %v1691
    %v3949 = vpop.f32.mrb[0].mxu0
    %v3950 = vadd.f32 %v3661, %v3949
    %v3951 = vpop.f32.mrb[0].mxu0
    %v3952 = vpop.f32.mrb[0].mxu0
    %v3953 = vadd.f32 %v3664, %v3952
    %v3954 = vpop.f32.mrb[0].mxu0
    %3955 = vmatprep.mubr.bf16.mxu0 %v1702
    %3956 = vmatmul.mubr.bf16.gmra.mrb[0].mxu0 %v1701
    %v3957 = vpop.f32.mrb[0].mxu0
    %v3958 = vadd.f32 %v3669, %v3957
    %v3959 = vpop.f32.mrb[0].mxu0
    %v3960 = vpop.f32.mrb[0].mxu0
    %v3961 = vadd.f32 %v3672, %v3960
    %v3962 = vpop.f32.mrb[0].mxu0
    %3963 = vmatprep.mubr.bf16.mxu0 %v1712
    %3964 = vmatmul.mubr.bf16.gmra.mrb[0].mxu0 %v1711
    %v3965 = vpop.f32.mrb[0].mxu0
    %v3966 = vadd.f32 %v3677, %v3965
    %v3967 = vpop.f32.mrb[0].mxu0
    %v3968 = vpop.f32.mrb[0].mxu0
    %v3969 = vadd.f32 %v3680, %v3968
    %v3970 = vpop.f32.mrb[0].mxu0
    %3971 = vmatprep.mubr.bf16.mxu0 %v1722
    %3972 = vmatmul.mubr.bf16.gmra.mrb[0].mxu0 %v1721
    %v3973 = vpop.f32.mrb[0].mxu0
    %v3974 = vadd.f32 %v3685, %v3973
    %v3975 = vpop.f32.mrb[0].mxu0
    %v3976 = vpop.f32.mrb[0].mxu0
    %v3977 = vadd.f32 %v3688, %v3976
    %v3978 = vpop.f32.mrb[0].mxu0
    %3979 = vmatprep.mubr.bf16.mxu0 %v1732
    %3980 = vmatmul.mubr.bf16.gmra.mrb[0].mxu0 %v1731
    %v3981 = vpop.f32.mrb[0].mxu0
    %v3982 = vadd.f32 %v3693, %v3981
    %v3983 = vpop.f32.mrb[0].mxu0
    %v3984 = vpop.f32.mrb[0].mxu0
    %v3985 = vadd.f32 %v3696, %v3984
    %v3986 = vpop.f32.mrb[0].mxu0
    %3987 = vmatprep.mubr.bf16.mxu0 %v1742
    %3988 = vmatmul.mubr.bf16.gmra.mrb[0].mxu0 %v1741
    %v3989 = vpop.f32.mrb[0].mxu0
    %v3990 = vadd.f32 %v3701, %v3989
    %v3991 = vpop.f32.mrb[0].mxu0
    %v3992 = vpop.f32.mrb[0].mxu0
    %v3993 = vadd.f32 %v3704, %v3992
    %v3994 = vpop.f32.mrb[0].mxu0
    %3995 = vmatprep.mubr.bf16.mxu0 %v1752
    %3996 = vmatmul.mubr.bf16.gmra.mrb[0].mxu0 %v1751
    %v3997 = vpop.f32.mrb[0].mxu0
    %v3998 = vadd.f32 %v3709, %v3997
    %v3999 = vpop.f32.mrb[0].mxu0
    %v4000 = vpop.f32.mrb[0].mxu0
    %v4001 = vadd.f32 %v3712, %v4000
    %v4002 = vpop.f32.mrb[0].mxu0
    %4003 = vmatprep.mubr.bf16.mxu0 %v1762
    %4004 = vmatmul.mubr.bf16.gmra.mrb[0].mxu0 %v1761
    %v4005 = vpop.f32.mrb[0].mxu0
    %v4006 = vadd.f32 %v3717, %v4005
    %v4007 = vpop.f32.mrb[0].mxu0
    %v4008 = vpop.f32.mrb[0].mxu0
    %v4009 = vadd.f32 %v3720, %v4008
    %v4010 = vpop.f32.mrb[0].mxu0
    %4011 = vmatprep.mubr.bf16.mxu0 %v1772
    %4012 = vmatmul.mubr.bf16.gmra.mrb[0].mxu0 %v1771
    %v4013 = vpop.f32.mrb[0].mxu0
    %v4014 = vadd.f32 %v3725, %v4013
    %v4015 = vpop.f32.mrb[0].mxu0
    %v4016 = vpop.f32.mrb[0].mxu0
    %v4017 = vadd.f32 %v3728, %v4016
    %v4018 = vpop.f32.mrb[0].mxu0
    %4019 = vmatprep.mubr.bf16.mxu0 %v1782
    %4020 = vmatmul.mubr.bf16.gmra.mrb[0].mxu0 %v1781
    %v4021 = vpop.f32.mrb[0].mxu0
    %v4022 = vadd.f32 %v3733, %v4021
    %v4023 = vpop.f32.mrb[0].mxu0
    %v4024 = vpop.f32.mrb[0].mxu0
    %v4025 = vadd.f32 %v3736, %v4024
    %v4026 = vpop.f32.mrb[0].mxu0
    %4027 = vdwg.mxu0
    %v4028 = vmax.f32 %v3774, 0.0
    %v4029 = vmax.f32 %v3777, 0.0
    %v4030 = vmax.f32 %v3782, 0.0
    %v4031 = vmax.f32 %v3785, 0.0
    %v4032 = vmax.f32 %v3790, 0.0
    %v4033 = vmax.f32 %v3793, 0.0
    %v4034 = vmax.f32 %v3798, 0.0
    %v4035 = vmax.f32 %v3801, 0.0
    %v4036 = vmax.f32 %v3806, 0.0
    %v4037 = vmax.f32 %v3809, 0.0
    %v4038 = vmax.f32 %v3814, 0.0
    %v4039 = vmax.f32 %v3817, 0.0
    %v4040 = vmax.f32 %v3822, 0.0
    %v4041 = vmax.f32 %v3825, 0.0
    %v4042 = vmax.f32 %v3830, 0.0
    %v4043 = vmax.f32 %v3833, 0.0
    %v4044 = vmax.f32 %v3838, 0.0
    %v4045 = vmax.f32 %v3841, 0.0
    %v4046 = vmax.f32 %v3846, 0.0
    %v4047 = vmax.f32 %v3849, 0.0
    %v4048 = vmax.f32 %v3854, 0.0
    %v4049 = vmax.f32 %v3857, 0.0
    %v4050 = vmax.f32 %v3862, 0.0
    %v4051 = vmax.f32 %v3865, 0.0
    %v4052 = vmax.f32 %v3870, 0.0
    %v4053 = vmax.f32 %v3873, 0.0
    %v4054 = vmax.f32 %v3878, 0.0
    %v4055 = vmax.f32 %v3881, 0.0
    %v4056 = vmax.f32 %v3886, 0.0
    %v4057 = vmax.f32 %v3889, 0.0
    %v4058 = vmax.f32 %v3894, 0.0
    %v4059 = vmax.f32 %v3897, 0.0
    %v4060 = vmax.f32 %v3902, 0.0
    %v4061 = vmax.f32 %v3905, 0.0
    %v4062 = vmax.f32 %v3910, 0.0
    %v4063 = vmax.f32 %v3913, 0.0
    %v4064 = vmax.f32 %v3918, 0.0
    %v4065 = vmax.f32 %v3921, 0.0
    %v4066 = vmax.f32 %v3926, 0.0
    %v4067 = vmax.f32 %v3929, 0.0
    %v4068 = vmax.f32 %v3934, 0.0
    %v4069 = vmax.f32 %v3937, 0.0
    %v4070 = vmax.f32 %v3942, 0.0
    %v4071 = vmax.f32 %v3945, 0.0
    %v4072 = vmax.f32 %v3950, 0.0
    %v4073 = vmax.f32 %v3953, 0.0
    %v4074 = vmax.f32 %v3958, 0.0
    %v4075 = vmax.f32 %v3961, 0.0
    %v4076 = vmax.f32 %v3966, 0.0
    %v4077 = vmax.f32 %v3969, 0.0
    %v4078 = vmax.f32 %v3974, 0.0
    %v4079 = vmax.f32 %v3977, 0.0
    %v4080 = vmax.f32 %v3982, 0.0
    %v4081 = vmax.f32 %v3985, 0.0
    %v4082 = vmax.f32 %v3990, 0.0
    %v4083 = vmax.f32 %v3993, 0.0
    %v4084 = vmax.f32 %v3998, 0.0
    %v4085 = vmax.f32 %v4001, 0.0
    %v4086 = vmax.f32 %v4006, 0.0
    %v4087 = vmax.f32 %v4009, 0.0
    %v4088 = vmax.f32 %v4014, 0.0
    %v4089 = vmax.f32 %v4017, 0.0
    %v4090 = vmax.f32 %v4022, 0.0
    %v4091 = vmax.f32 %v4025, 0.0
    %v4092 = vpack.c.bf16 %v4029, %v4028
    %v4093 = vpack.c.bf16 %v4031, %v4030
    %v4094 = vpack.c.bf16 %v4033, %v4032
    %v4095 = vpack.c.bf16 %v4035, %v4034
    %v4096 = vpack.c.bf16 %v4037, %v4036
    %v4097 = vpack.c.bf16 %v4039, %v4038
    %v4098 = vpack.c.bf16 %v4041, %v4040
    %v4099 = vpack.c.bf16 %v4043, %v4042
    %v4100 = vpack.c.bf16 %v4045, %v4044
    %v4101 = vpack.c.bf16 %v4047, %v4046
    %v4102 = vpack.c.bf16 %v4049, %v4048
    %v4103 = vpack.c.bf16 %v4051, %v4050
    %v4104 = vpack.c.bf16 %v4053, %v4052
    %v4105 = vpack.c.bf16 %v4055, %v4054
    %v4106 = vpack.c.bf16 %v4057, %v4056
    %v4107 = vpack.c.bf16 %v4059, %v4058
    %v4108 = vpack.c.bf16 %v4061, %v4060
    %v4109 = vpack.c.bf16 %v4063, %v4062
    %v4110 = vpack.c.bf16 %v4065, %v4064
    %v4111 = vpack.c.bf16 %v4067, %v4066
    %v4112 = vpack.c.bf16 %v4069, %v4068
    %v4113 = vpack.c.bf16 %v4071, %v4070
    %v4114 = vpack.c.bf16 %v4073, %v4072
    %v4115 = vpack.c.bf16 %v4075, %v4074
    %v4116 = vpack.c.bf16 %v4077, %v4076
    %v4117 = vpack.c.bf16 %v4079, %v4078
    %v4118 = vpack.c.bf16 %v4081, %v4080
    %v4119 = vpack.c.bf16 %v4083, %v4082
    %v4120 = vpack.c.bf16 %v4085, %v4084
    %v4121 = vpack.c.bf16 %v4087, %v4086
    %v4122 = vpack.c.bf16 %v4089, %v4088
    %v4123 = vpack.c.bf16 %v4091, %v4090
    %v4156 = vunpack.c.l.b16 %v4092
    %v4157 = vunpack.c.h.b16 %v4092
    %v4158 = vunpack.c.l.b16 %v4093
    %v4159 = vunpack.c.h.b16 %v4093
    %v4160 = vunpack.c.l.b16 %v4094
    %v4161 = vunpack.c.h.b16 %v4094
    %v4162 = vunpack.c.l.b16 %v4095
    %v4163 = vunpack.c.h.b16 %v4095
    %v4164 = vunpack.c.l.b16 %v4096
    %v4165 = vunpack.c.h.b16 %v4096
    %v4166 = vunpack.c.l.b16 %v4097
    %v4167 = vunpack.c.h.b16 %v4097
    %v4168 = vunpack.c.l.b16 %v4098
    %v4169 = vunpack.c.h.b16 %v4098
    %v4170 = vunpack.c.l.b16 %v4099
    %v4171 = vunpack.c.h.b16 %v4099
    %v4172 = vunpack.c.l.b16 %v4100
    %v4173 = vunpack.c.h.b16 %v4100
    %v4174 = vunpack.c.l.b16 %v4101
    %v4175 = vunpack.c.h.b16 %v4101
    %v4176 = vunpack.c.l.b16 %v4102
    %v4177 = vunpack.c.h.b16 %v4102
    %v4178 = vunpack.c.l.b16 %v4103
    %v4179 = vunpack.c.h.b16 %v4103
    %v4180 = vunpack.c.l.b16 %v4104
    %v4181 = vunpack.c.h.b16 %v4104
    %v4182 = vunpack.c.l.b16 %v4105
    %v4183 = vunpack.c.h.b16 %v4105
    %v4184 = vunpack.c.l.b16 %v4106
    %v4185 = vunpack.c.h.b16 %v4106
    %v4186 = vunpack.c.l.b16 %v4107
    %v4187 = vunpack.c.h.b16 %v4107
    %v4188 = vunpack.c.l.b16 %v4108
    %v4189 = vunpack.c.h.b16 %v4108
    %v4190 = vunpack.c.l.b16 %v4109
    %v4191 = vunpack.c.h.b16 %v4109
    %v4192 = vunpack.c.l.b16 %v4110
    %v4193 = vunpack.c.h.b16 %v4110
    %v4194 = vunpack.c.l.b16 %v4111
    %v4195 = vunpack.c.h.b16 %v4111
    %v4196 = vunpack.c.l.b16 %v4112
    %v4197 = vunpack.c.h.b16 %v4112
    %v4198 = vunpack.c.l.b16 %v4113
    %v4199 = vunpack.c.h.b16 %v4113
    %v4200 = vunpack.c.l.b16 %v4114
    %v4201 = vunpack.c.h.b16 %v4114
    %v4202 = vunpack.c.l.b16 %v4115
    %v4203 = vunpack.c.h.b16 %v4115
    %v4204 = vunpack.c.l.b16 %v4116
    %v4205 = vunpack.c.h.b16 %v4116
    %v4206 = vunpack.c.l.b16 %v4117
    %v4207 = vunpack.c.h.b16 %v4117
    %v4208 = vunpack.c.l.b16 %v4118
    %v4209 = vunpack.c.h.b16 %v4118
    %v4210 = vunpack.c.l.b16 %v4119
    %v4211 = vunpack.c.h.b16 %v4119
    %v4212 = vunpack.c.l.b16 %v4120
    %v4213 = vunpack.c.h.b16 %v4120
    %v4214 = vunpack.c.l.b16 %v4121
    %v4215 = vunpack.c.h.b16 %v4121
    %v4216 = vunpack.c.l.b16 %v4122
    %v4217 = vunpack.c.h.b16 %v4122
    %v4218 = vunpack.c.l.b16 %v4123
    %v4219 = vunpack.c.h.b16 %v4123
    %v4220 = vpack.c.b16 %v4156, %v4156
    %v4221 = vpack.c.b16 %v4157, %v4157
    %v4222 = vpack.c.b16 %v4158, %v4158
    %v4223 = vpack.c.b16 %v4159, %v4159
    %v4224 = vpack.c.b16 %v4160, %v4160
    %v4225 = vpack.c.b16 %v4161, %v4161
    %v4226 = vpack.c.b16 %v4162, %v4162
    %v4227 = vpack.c.b16 %v4163, %v4163
    %v4228 = vpack.c.b16 %v4164, %v4164
    %v4229 = vpack.c.b16 %v4165, %v4165
    %v4230 = vpack.c.b16 %v4166, %v4166
    %v4231 = vpack.c.b16 %v4167, %v4167
    %v4232 = vpack.c.b16 %v4168, %v4168
    %v4233 = vpack.c.b16 %v4169, %v4169
    %v4234 = vpack.c.b16 %v4170, %v4170
    %v4235 = vpack.c.b16 %v4171, %v4171
    %v4236 = vpack.c.b16 %v4172, %v4172
    %v4237 = vpack.c.b16 %v4173, %v4173
    %v4238 = vpack.c.b16 %v4174, %v4174
    %v4239 = vpack.c.b16 %v4175, %v4175
    %v4240 = vpack.c.b16 %v4176, %v4176
    %v4241 = vpack.c.b16 %v4177, %v4177
    %v4242 = vpack.c.b16 %v4178, %v4178
    %v4243 = vpack.c.b16 %v4179, %v4179
    %v4244 = vpack.c.b16 %v4180, %v4180
    %v4245 = vpack.c.b16 %v4181, %v4181
    %v4246 = vpack.c.b16 %v4182, %v4182
    %v4247 = vpack.c.b16 %v4183, %v4183
    %v4248 = vpack.c.b16 %v4184, %v4184
    %v4249 = vpack.c.b16 %v4185, %v4185
    %v4250 = vpack.c.b16 %v4186, %v4186
    %v4251 = vpack.c.b16 %v4187, %v4187
    %v4252 = vpack.c.b16 %v4188, %v4188
    %v4253 = vpack.c.b16 %v4189, %v4189
    %v4254 = vpack.c.b16 %v4190, %v4190
    %v4255 = vpack.c.b16 %v4191, %v4191
    %v4256 = vpack.c.b16 %v4192, %v4192
    %v4257 = vpack.c.b16 %v4193, %v4193
    %v4258 = vpack.c.b16 %v4194, %v4194
    %v4259 = vpack.c.b16 %v4195, %v4195
    %v4260 = vpack.c.b16 %v4196, %v4196
    %v4261 = vpack.c.b16 %v4197, %v4197
    %v4262 = vpack.c.b16 %v4198, %v4198
    %v4263 = vpack.c.b16 %v4199, %v4199
    %v4264 = vpack.c.b16 %v4200, %v4200
    %v4265 = vpack.c.b16 %v4201, %v4201
    %v4266 = vpack.c.b16 %v4202, %v4202
    %v4267 = vpack.c.b16 %v4203, %v4203
    %v4268 = vpack.c.b16 %v4204, %v4204
    %v4269 = vpack.c.b16 %v4205, %v4205
    %v4270 = vpack.c.b16 %v4206, %v4206
    %v4271 = vpack.c.b16 %v4207, %v4207
    %v4272 = vpack.c.b16 %v4208, %v4208
    %v4273 = vpack.c.b16 %v4209, %v4209
    %v4274 = vpack.c.b16 %v4210, %v4210
    %v4275 = vpack.c.b16 %v4211, %v4211
    %v4276 = vpack.c.b16 %v4212, %v4212
    %v4277 = vpack.c.b16 %v4213, %v4213
    %v4278 = vpack.c.b16 %v4214, %v4214
    %v4279 = vpack.c.b16 %v4215, %v4215
    %v4280 = vpack.c.b16 %v4216, %v4216
    %v4281 = vpack.c.b16 %v4217, %v4217
    %v4282 = vpack.c.b16 %v4218, %v4218
    %v4283 = vpack.c.b16 %v4219, %v4219
    %4348 = vst [vmem:[#allocation2] sm:$0xf] %v4220
    %4349 = vst [vmem:[#allocation2 + $0x4] sm:$0xf] %v4221
    %4350 = vst [vmem:[#allocation2 + $0x8] sm:$0xf] %v4222
    %4351 = vst [vmem:[#allocation2 + $0xc] sm:$0xf] %v4223
    %4352 = vst [vmem:[#allocation2 + $0x10] sm:$0xf] %v4224
    %4353 = vst [vmem:[#allocation2 + $0x14] sm:$0xf] %v4225
    %4354 = vst [vmem:[#allocation2 + $0x18] sm:$0xf] %v4226
    %4355 = vst [vmem:[#allocation2 + $0x1c] sm:$0xf] %v4227
    %4356 = vst [vmem:[#allocation2 + $0x20] sm:$0xf] %v4228
    %4357 = vst [vmem:[#allocation2 + $0x24] sm:$0xf] %v4229
    %4358 = vst [vmem:[#allocation2 + $0x28] sm:$0xf] %v4230
    %4359 = vst [vmem:[#allocation2 + $0x2c] sm:$0xf] %v4231
    %4360 = vst [vmem:[#allocation2 + $0x30] sm:$0xf] %v4232
    %4361 = vst [vmem:[#allocation2 + $0x34] sm:$0xf] %v4233
    %4362 = vst [vmem:[#allocation2 + $0x38] sm:$0xf] %v4234
    %4363 = vst [vmem:[#allocation2 + $0x3c] sm:$0xf] %v4235
    %4364 = vst [vmem:[#allocation2 + $0x40] sm:$0xf] %v4236
    %4365 = vst [vmem:[#allocation2 + $0x44] sm:$0xf] %v4237
    %4366 = vst [vmem:[#allocation2 + $0x48] sm:$0xf] %v4238
    %4367 = vst [vmem:[#allocation2 + $0x4c] sm:$0xf] %v4239
    %4368 = vst [vmem:[#allocation2 + $0x50] sm:$0xf] %v4240
    %4369 = vst [vmem:[#allocation2 + $0x54] sm:$0xf] %v4241
    %4370 = vst [vmem:[#allocation2 + $0x58] sm:$0xf] %v4242
    %4371 = vst [vmem:[#allocation2 + $0x5c] sm:$0xf] %v4243
    %4372 = vst [vmem:[#allocation2 + $0x60] sm:$0xf] %v4244
    %4373 = vst [vmem:[#allocation2 + $0x64] sm:$0xf] %v4245
    %4374 = vst [vmem:[#allocation2 + $0x68] sm:$0xf] %v4246
    %4375 = vst [vmem:[#allocation2 + $0x6c] sm:$0xf] %v4247
    %4376 = vst [vmem:[#allocation2 + $0x70] sm:$0xf] %v4248
    %4377 = vst [vmem:[#allocation2 + $0x74] sm:$0xf] %v4249
    %4378 = vst [vmem:[#allocation2 + $0x78] sm:$0xf] %v4250
    %4379 = vst [vmem:[#allocation2 + $0x7c] sm:$0xf] %v4251
    %4380 = vst [vmem:[#allocation2 + $0x80] sm:$0xf] %v4252
    %4381 = vst [vmem:[#allocation2 + $0x84] sm:$0xf] %v4253
    %4382 = vst [vmem:[#allocation2 + $0x88] sm:$0xf] %v4254
    %4383 = vst [vmem:[#allocation2 + $0x8c] sm:$0xf] %v4255
    %4384 = vst [vmem:[#allocation2 + $0x90] sm:$0xf] %v4256
    %4385 = vst [vmem:[#allocation2 + $0x94] sm:$0xf] %v4257
    %4386 = vst [vmem:[#allocation2 + $0x98] sm:$0xf] %v4258
    %4387 = vst [vmem:[#allocation2 + $0x9c] sm:$0xf] %v4259
    %4388 = vst [vmem:[#allocation2 + $0xa0] sm:$0xf] %v4260
    %4389 = vst [vmem:[#allocation2 + $0xa4] sm:$0xf] %v4261
    %4390 = vst [vmem:[#allocation2 + $0xa8] sm:$0xf] %v4262
    %4391 = vst [vmem:[#allocation2 + $0xac] sm:$0xf] %v4263
    %4392 = vst [vmem:[#allocation2 + $0xb0] sm:$0xf] %v4264
    %4393 = vst [vmem:[#allocation2 + $0xb4] sm:$0xf] %v4265
    %4394 = vst [vmem:[#allocation2 + $0xb8] sm:$0xf] %v4266
    %4395 = vst [vmem:[#allocation2 + $0xbc] sm:$0xf] %v4267
    %4396 = vst [vmem:[#allocation2 + $0xc0] sm:$0xf] %v4268
    %4397 = vst [vmem:[#allocation2 + $0xc4] sm:$0xf] %v4269
    %4398 = vst [vmem:[#allocation2 + $0xc8] sm:$0xf] %v4270
    %4399 = vst [vmem:[#allocation2 + $0xcc] sm:$0xf] %v4271
    %4400 = vst [vmem:[#allocation2 + $0xd0] sm:$0xf] %v4272
    %4401 = vst [vmem:[#allocation2 + $0xd4] sm:$0xf] %v4273
    %4402 = vst [vmem:[#allocation2 + $0xd8] sm:$0xf] %v4274
    %4403 = vst [vmem:[#allocation2 + $0xdc] sm:$0xf] %v4275
    %4404 = vst [vmem:[#allocation2 + $0xe0] sm:$0xf] %v4276
    %4405 = vst [vmem:[#allocation2 + $0xe4] sm:$0xf] %v4277
    %4406 = vst [vmem:[#allocation2 + $0xe8] sm:$0xf] %v4278
    %4407 = vst [vmem:[#allocation2 + $0xec] sm:$0xf] %v4279
    %4408 = vst [vmem:[#allocation2 + $0xf0] sm:$0xf] %v4280
    %4409 = vst [vmem:[#allocation2 + $0xf4] sm:$0xf] %v4281
    %4410 = vst [vmem:[#allocation2 + $0xf8] sm:$0xf] %v4282
    %4411 = vst [vmem:[#allocation2 + $0xfc] sm:$0xf] %v4283
    // Predicated region
    $region14: #{ppm_forward.1} parent=1 // pred_check
      _
    $region15: #{ppm_forward.1} parent=1 // pred_check_branch
      %4413 = sbr.rel (0) target = $region17
    $region16: #{ppm_forward.1} parent=1 // pred_region
      %s4415 = ssub.s32 4096, 4096
      %4416 = vsyncadd [#allocation3], %s4415
      %s4417 = sshll.u32 [#allocation2], 4
      %s4418 = int_to_ptr.vmem [resolvable:$true] %s4417
      %4423 = dma.vmem_to_hbm [thread:$0]  %s4418, 4096, %s3, [#allocation3], 64, 64, 4
    $region17: #{ppm_forward.1} parent=1 // pred_fallthru
      _
    // Predicated region
    $region18: #{ppm_forward.1} parent=1 // pred_check
      _
    $region19: #{ppm_forward.1} parent=1 // pred_check_branch
      %4425 = sbr.rel (0) target = $region21
    $region20: #{ppm_forward.1} parent=1 // pred_region
      %4426 = dma.done [#allocation3], 4096
    $region21: #{ppm_forward.1} parent=1 // pred_fallthru
      _
    %4427 = vsyncpa [#allocation3], 1

</llo_original>
